<compile_context>
chip_gen: v6e
topology: v6e:2x2x1
jax: 0.10.0
libtpu: 0.0.40
codegen_flags: <defaults>
</compile_context>

<pallas_src>
import math
import functools

import jax
import jax.numpy as jnp
from jax import lax
from jax.experimental import pallas as pl
from jax.experimental.pallas import tpu as pltpu


# ----------------------------------------------------------------------------
# Fused forward kernel: one grid step == one batch-window.
# ----------------------------------------------------------------------------

def _window_attention_kernel(x_ref, pos_ref, bias_ref,
                             wqs_ref, wqm_ref, wp_ref, bp_ref,
                             o_ref, *, num_heads, head_dim, scale, mm_dtype):
    """Refs per grid step:
         x_ref    : (1, N, C)  f32   input tokens of this window
         pos_ref  : (N, C)     f32   tiled sine position encoding (grid-invariant)
         bias_ref : (H, N, N)  f32   pre-gathered relative position bias
         wqs_ref  : (C, 3C)    bf16  qkv_self weight, pre-transposed
         wqm_ref  : (C, 3C)    bf16  qkv_mut  weight, pre-transposed
         wp_ref   : (2C, C)    bf16  proj weight, pre-transposed
         bp_ref   : (1, C)     f32   proj bias
         o_ref    : (1, N, C)        output
    """
    f32 = jnp.float32
    C = num_heads * head_dim
    N = x_ref.shape[1]
    half = N // 2

    def mm(a, b):
        # a @ b on the MXU: bf16 operands, f32 accumulation.
        return jnp.dot(a.astype(mm_dtype), b.astype(mm_dtype),
                       preferred_element_type=f32)

    def mm_nt(a, b):
        # a @ b.T without materializing the transpose (contract last dims).
        return lax.dot_general(a.astype(mm_dtype), b.astype(mm_dtype),
                               (((1,), (1,)), ((), ())),
                               preferred_element_type=f32)

    def head_attn(q, k, v, bias):
        # q:(Nq,D) k,v:(Nk,D) bias:(Nq,Nk) or None -> (Nq,D) f32
        s = mm_nt(q, k) * scale                       # f32 scores
        if bias is not None:
            s = s + bias
        s = s - jnp.max(s, axis=-1, keepdims=True)    # stable softmax, f32
        p = jnp.exp(s)
        p = p * pl.reciprocal(jnp.sum(p, axis=-1, keepdims=True), approx=True)
        return mm(p, v)

    x = x_ref[0]                                      # (N, C) f32

    # ---- self attention -----------------------------------------------------
    qkv_s = mm(x, wqs_ref[...])                       # (N, 3C) f32
    outs_self = []
    for h in range(num_heads):                        # heads unrolled in-kernel
        lo = h * head_dim
        q = qkv_s[:, lo:lo + head_dim]
        k = qkv_s[:, C + lo:C + lo + head_dim]
        v = qkv_s[:, 2 * C + lo:2 * C + lo + head_dim]
        outs_self.append(head_attn(q, k, v, bias_ref[h]))
    out_self = jnp.concatenate(outs_self, axis=-1)    # (N, C) lane-dense

    # ---- mutual attention (bias-free; no zero-bias tensor) ------------------
    xm = x + pos_ref[...]
    qkv_m = mm(xm, wqm_ref[...])                      # (N, 3C) f32
    outs_x1, outs_x2 = [], []
    for h in range(num_heads):
        lo = h * head_dim
        qh = qkv_m[:, lo:lo + head_dim]
        kh = qkv_m[:, C + lo:C + lo + head_dim]
        vh = qkv_m[:, 2 * C + lo:2 * C + lo + head_dim]
        q1, q2 = qh[:half], qh[half:]
        k1, k2 = kh[:half], kh[half:]
        v1, v2 = vh[:half], vh[half:]
        outs_x1.append(head_attn(q2, k1, v1, None))   # (half, D)
        outs_x2.append(head_attn(q1, k2, v2, None))
    x1_aligned = jnp.concatenate(outs_x1, axis=-1)    # (half, C)
    x2_aligned = jnp.concatenate(outs_x2, axis=-1)    # (half, C)
    x_mut = jnp.concatenate([x1_aligned, x2_aligned], axis=0)   # (N, C)

    x_cat = jnp.concatenate([x_mut, out_self], axis=-1)         # (N, 2C)

    # ---- output projection ---------------------------------------------------
    y = mm(x_cat, wp_ref[...]) + bp_ref[...]
    o_ref[0] = y.astype(o_ref.dtype)


def window_attention_forward(params, x, num_heads, mm_dtype=jnp.bfloat16):
    """Fused WindowAttention forward (mask=None, mut_attn=True)."""
    # TODO(synk): optional attention `mask` (0/-inf, shape (nW, N, N)) not wired
    #             in; this matches the mask=None code path of the module only.
    B_, N, C = x.shape
    H = num_heads
    D = C // H
    scale = D ** (-0.5)

    pos = params["position_bias_tiled"]                       # (N, C) f32
    rel_bias = params["relative_position_bias"][:, :N, :N]    # (H, N, N) f32
    wqs = params["qkv_self_w_t"].astype(mm_dtype)             # (C, 3C)
    wqm = params["qkv_mut_w_t"].astype(mm_dtype)              # (C, 3C)
    wp = params["proj_w_t"].astype(mm_dtype)                  # (2C, C)
    bp = params["proj_b"].reshape(1, C)                       # (1, C) f32

    kernel = functools.partial(_window_attention_kernel,
                               num_heads=H, head_dim=D, scale=scale,
                               mm_dtype=mm_dtype)
    return pl.pallas_call(
        kernel,
        out_shape=jax.ShapeDtypeStruct((B_, N, C), x.dtype),
        grid=(B_,),
        in_specs=[
            pl.BlockSpec((1, N, C), lambda b: (b, 0, 0)),        # x
            pl.BlockSpec((N, C), lambda b: (0, 0)),              # pos (invariant)
            pl.BlockSpec((H, N, N), lambda b: (0, 0, 0)),        # rel bias (invariant)
            pl.BlockSpec((C, 3 * C), lambda b: (0, 0)),          # qkv_self W^T
            pl.BlockSpec((C, 3 * C), lambda b: (0, 0)),          # qkv_mut  W^T
            pl.BlockSpec((2 * C, C), lambda b: (0, 0)),          # proj W^T
            pl.BlockSpec((1, C), lambda b: (0, 0)),              # proj bias
        ],
        out_specs=pl.BlockSpec((1, N, C), lambda b: (b, 0, 0)),
        compiler_params=pltpu.CompilerParams(
            dimension_semantics=("parallel",)),
    )(x, pos, rel_bias, wqs, wqm, wp, bp)


# ----------------------------------------------------------------------------
# Parameter / buffer construction (deterministic, in-script)
# ----------------------------------------------------------------------------

def get_position_index(window_size):
    """Pair-wise relative position index inside the 3D window."""
    d, h, w = window_size
    coords = jnp.stack(jnp.meshgrid(jnp.arange(d), jnp.arange(h), jnp.arange(w),
                                    indexing="ij"))                    # (3, d, h, w)
    coords_flatten = coords.reshape(3, -1)                             # (3, N)
    rel = coords_flatten[:, :, None] - coords_flatten[:, None, :]      # (3, N, N)
    rel = jnp.transpose(rel, (1, 2, 0))                                # (N, N, 3)
    rel = rel + jnp.array([d - 1, h - 1, w - 1])
    rel = rel * jnp.array([(2 * h - 1) * (2 * w - 1), 2 * w - 1, 1])
    return jnp.sum(rel, axis=-1).astype(jnp.int32)                     # (N, N)


def get_sine_position_encoding(HW, num_pos_feats=64, temperature=10000,
                               normalize=False, scale=None):
    if scale is None:
        scale = 2 * math.pi
    h, w = HW
    not_mask = jnp.ones((1, h, w), jnp.float32)
    y_embed = jnp.cumsum(not_mask, axis=1)
    x_embed = jnp.cumsum(not_mask, axis=2)
    if normalize:
        eps = 1e-6
        y_embed = y_embed / (y_embed[:, -1:, :] + eps) * scale
        x_embed = x_embed / (x_embed[:, :, -1:] + eps) * scale
    dim_t = jnp.arange(num_pos_feats, dtype=jnp.float32)
    dim_t = temperature ** (2 * jnp.floor(dim_t / 2) / num_pos_feats)
    pos_x = x_embed[:, :, :, None] / dim_t
    pos_y = y_embed[:, :, :, None] / dim_t
    pos_x = jnp.stack((jnp.sin(pos_x[:, :, :, 0::2]),
                       jnp.cos(pos_x[:, :, :, 1::2])), axis=4).reshape(1, h, w, -1)
    pos_y = jnp.stack((jnp.sin(pos_y[:, :, :, 0::2]),
                       jnp.cos(pos_y[:, :, :, 1::2])), axis=4).reshape(1, h, w, -1)
    pos = jnp.concatenate((pos_y, pos_x), axis=3)      # (1, h, w, 2*num_pos_feats)
    return pos.reshape(1, h * w, -1)                   # (1, h*w, C)


def init_params(key, dim, window_size, num_heads, qkv_bias=False):
    """Pre-computes everything static: transposed weights, gathered rel-pos
    bias (H, N, N), and the sine position encoding tiled to (N, C)."""
    assert not qkv_bias                    # module default: no qkv bias
    assert dim % num_heads == 0
    d, h, w = window_size
    N = d * h * w
    k1, k2, k3, k4, k5 = jax.random.split(key, 5)

    table_len = (2 * d - 1) * (2 * h - 1) * (2 * w - 1)
    # nn.Parameter is zero-init in the module; use small random values so the
    # relative position bias is actually exercised (deterministically).
    table = 0.02 * jax.random.normal(k1, (table_len, num_heads), jnp.float32)
    rel_index = get_position_index(window_size)                       # (N, N)
    rel_bias = table[rel_index.reshape(-1)].reshape(N, N, num_heads)
    rel_bias = jnp.transpose(rel_bias, (2, 0, 1))                     # (H, N, N)

    qkv_self_w = 0.02 * jax.random.normal(k2, (3 * dim, dim), jnp.float32)
    qkv_mut_w = 0.02 * jax.random.normal(k3, (3 * dim, dim), jnp.float32)
    proj_w = 0.02 * jax.random.normal(k4, (dim, 2 * dim), jnp.float32)
    proj_b = 0.02 * jax.random.normal(k5, (dim,), jnp.float32)

    pos = get_sine_position_encoding((h, w), dim // 2, normalize=True)  # (1,h*w,C)
    pos_tiled = jnp.tile(pos, (1, 2, 1)).reshape(N, dim)  # module hard-codes repeat(1,2,1)

    return {
        "relative_position_bias": rel_bias,            # (H, N, N)
        "qkv_self_w_t": jnp.transpose(qkv_self_w),     # (C, 3C)
        "qkv_mut_w_t": jnp.transpose(qkv_mut_w),       # (C, 3C)
        "proj_w_t": jnp.transpose(proj_w),             # (2C, C)
        "proj_b": proj_b,                              # (C,)
        "position_bias_tiled": pos_tiled,              # (N, C)
    }


# ----------------------------------------------------------------------------
# Pure-JAX (f32) reference, mirroring the PyTorch module, for a sanity check.
# ----------------------------------------------------------------------------

def reference_forward(params, x, num_heads):
    B_, N, C = x.shape
    H, D = num_heads, C // num_heads
    scale = D ** (-0.5)

    def mha(q, k, v, bias, n_tok):
        s = jnp.einsum('bhqd,bhkd->bhqk', q * scale, k)
        if bias is not None:
            s = s + bias[None]
        p = jax.nn.softmax(s, axis=-1)
        o = jnp.einsum('bhqk,bhkd->bhqd', p, v)
        return o.transpose(0, 2, 1, 3).reshape(B_, n_tok, C)

    qkv = (x @ params["qkv_self_w_t"]).reshape(B_, N, 3, H, D).transpose(2, 0, 3, 1, 4)
    out_self = mha(qkv[0], qkv[1], qkv[2],
                   params["relative_position_bias"][:, :N, :N], N)

    xm = x + params["position_bias_tiled"][None]
    qkvm = (xm @ params["qkv_mut_w_t"]).reshape(B_, N, 3, H, D).transpose(2, 0, 3, 1, 4)
    half = N // 2
    q1, q2 = qkvm[0][:, :, :half], qkvm[0][:, :, half:]
    k1, k2 = qkvm[1][:, :, :half], qkvm[1][:, :, half:]
    v1, v2 = qkvm[2][:, :, :half], qkvm[2][:, :, half:]
    x1 = mha(q2, k1, v1, None, half)
    x2 = mha(q1, k2, v2, None, half)
    x_out = jnp.concatenate([jnp.concatenate([x1, x2], axis=1), out_self], axis=2)
    return x_out @ params["proj_w_t"] + params["proj_b"].reshape(1, 1, C)


# ----------------------------------------------------------------------------

if __name__ == "__main__":
    key = jax.random.PRNGKey(0)

    dim = 32
    num_heads = 4
    window_size = (2, 4, 4)                 # (T, H, W) -> N = 32 tokens
    N = window_size[0] * window_size[1] * window_size[2]
    B_ = 2                                  # num_windows * batch

    k_param, k_x = jax.random.split(key)
    params = init_params(k_param, dim, window_size, num_heads)
    x = jax.random.normal(k_x, (B_, N, dim), jnp.float32)

    fwd = jax.jit(functools.partial(window_attention_forward,
                                    num_heads=num_heads))
    y = fwd(params, x)
    jax.block_until_ready(y)
    assert y.shape == (B_, N, dim), y.shape

    # loose tolerance: bf16 MXU operands + approx reciprocal vs f32 reference
    y_ref = reference_forward(params, x, num_heads)
    err = float(jnp.max(jnp.abs(y - y_ref)))
    assert err < 2e-2, f"max abs err vs reference: {err}"
    print("KERNEL_OK")
</pallas_src>

<mosaic_0001>
module attributes {stable_mosaic.version = 11 : i64} {
  func.func @_window_attention_kernel(%arg0: i32, %arg1: memref<1x32x32xf32, #tpu.memory_space<vmem>>, %arg2: memref<32x32xf32, #tpu.memory_space<vmem>>, %arg3: memref<4x32x32xf32, #tpu.memory_space<vmem>>, %arg4: memref<32x96xbf16, #tpu.memory_space<vmem>>, %arg5: memref<32x96xbf16, #tpu.memory_space<vmem>>, %arg6: memref<64x32xbf16, #tpu.memory_space<vmem>>, %arg7: memref<1x32xf32, #tpu.memory_space<vmem>>, %arg8: memref<1x32x32xf32, #tpu.memory_space<vmem>>) attributes {dimension_semantics = [#tpu.dimension_semantics<parallel>], iteration_bounds = array<i64: 2>, scalar_prefetch = 0 : i64, scratch_operands = 0 : i64, tpu.core_type = #tpu.core_type<tc>, window_params = [{transform_indices = @transform_0, window_bounds = array<i64: 1, 32, 32>}, {pipeline_mode = #tpu.pipeline_mode<synchronous>, transform_indices = @transform_1, window_bounds = array<i64: 32, 32>}, {pipeline_mode = #tpu.pipeline_mode<synchronous>, transform_indices = @transform_2, window_bounds = array<i64: 4, 32, 32>}, {pipeline_mode = #tpu.pipeline_mode<synchronous>, transform_indices = @transform_3, window_bounds = array<i64: 32, 96>}, {pipeline_mode = #tpu.pipeline_mode<synchronous>, transform_indices = @transform_4, window_bounds = array<i64: 32, 96>}, {pipeline_mode = #tpu.pipeline_mode<synchronous>, transform_indices = @transform_5, window_bounds = array<i64: 64, 32>}, {pipeline_mode = #tpu.pipeline_mode<synchronous>, transform_indices = @transform_6, window_bounds = array<i64: 1, 32>}, {transform_indices = @transform_7, window_bounds = array<i64: 1, 32, 32>}]} {
    %c0 = arith.constant 0 : index
    %c0_0 = arith.constant 0 : index
    %c0_1 = arith.constant 0 : index
    %0 = vector.load %arg1[%c0, %c0_0, %c0_1] : memref<1x32x32xf32, #tpu.memory_space<vmem>>, vector<1x32x32xf32>
    %1 = vector.shape_cast %0 : vector<1x32x32xf32> to vector<32x32xf32>
    %c0_2 = arith.constant 0 : index
    %c0_3 = arith.constant 0 : index
    %2 = vector.load %arg4[%c0_2, %c0_3] : memref<32x96xbf16, #tpu.memory_space<vmem>>, vector<32x96xbf16>
    %3 = arith.truncf %1 : vector<32x32xf32> to vector<32x32xbf16>
    %cst = arith.constant dense<0.000000e+00> : vector<32x96xf32>
    %4 = tpu.matmul %3, %2, %cst {dimension_numbers = #tpu.dot_dimension_numbers<[1], [0], [0], [1], [0, 0, 1, 1], [], []>} : vector<32x32xbf16>, vector<32x96xbf16>, vector<32x96xf32> -> vector<32x96xf32>
    %5 = vector.extract_strided_slice %4 {offsets = [0, 0], sizes = [32, 8], strides = [1, 1]} : vector<32x96xf32> to vector<32x8xf32>
    %6 = vector.extract_strided_slice %4 {offsets = [0, 32], sizes = [32, 8], strides = [1, 1]} : vector<32x96xf32> to vector<32x8xf32>
    %7 = vector.extract_strided_slice %4 {offsets = [0, 64], sizes = [32, 8], strides = [1, 1]} : vector<32x96xf32> to vector<32x8xf32>
    %c0_4 = arith.constant 0 : index
    %c0_5 = arith.constant 0 : index
    %c0_6 = arith.constant 0 : index
    %8 = vector.load %arg3[%c0_4, %c0_5, %c0_6] : memref<4x32x32xf32, #tpu.memory_space<vmem>>, vector<1x32x32xf32>
    %9 = vector.shape_cast %8 : vector<1x32x32xf32> to vector<32x32xf32>
    %10 = arith.truncf %5 : vector<32x8xf32> to vector<32x8xbf16>
    %11 = arith.truncf %6 : vector<32x8xf32> to vector<32x8xbf16>
    %cst_7 = arith.constant dense<0.000000e+00> : vector<32x32xf32>
    %12 = tpu.matmul %10, %11, %cst_7 {dimension_numbers = #tpu.dot_dimension_numbers<[1], [1], [0], [0], [0, 0, 1, 0], [], []>} : vector<32x8xbf16>, vector<32x8xbf16>, vector<32x32xf32> -> vector<32x32xf32>
    %cst_8 = arith.constant 0.353553385 : f32
    %13 = vector.broadcast %cst_8 : f32 to vector<32x32xf32>
    %14 = arith.mulf %12, %13 : vector<32x32xf32>
    %15 = arith.addf %14, %9 : vector<32x32xf32>
    %cst_9 = arith.constant dense<0xFF800000> : vector<32xf32>
    %16 = vector.multi_reduction <maximumf>, %15, %cst_9 [1] : vector<32x32xf32> to vector<32xf32>
    %17 = vector.shape_cast %16 : vector<32xf32> to vector<32x1xf32>
    %18 = vector.broadcast %17 : vector<32x1xf32> to vector<32x32xf32>
    %19 = arith.subf %15, %18 : vector<32x32xf32>
    %20 = math.exp %19 : vector<32x32xf32>
    %cst_10 = arith.constant dense<0.000000e+00> : vector<32xf32>
    %21 = vector.multi_reduction <add>, %20, %cst_10 [1] : vector<32x32xf32> to vector<32xf32>
    %22 = vector.shape_cast %21 : vector<32xf32> to vector<32x1xf32>
    %23 = tpu.reciprocal %22 {approx = true} : vector<32x1xf32> -> vector<32x1xf32>
    %24 = vector.broadcast %23 : vector<32x1xf32> to vector<32x32xf32>
    %25 = arith.mulf %20, %24 : vector<32x32xf32>
    %26 = arith.truncf %25 : vector<32x32xf32> to vector<32x32xbf16>
    %27 = arith.truncf %7 : vector<32x8xf32> to vector<32x8xbf16>
    %cst_11 = arith.constant dense<0.000000e+00> : vector<32x8xf32>
    %28 = tpu.matmul %26, %27, %cst_11 {dimension_numbers = #tpu.dot_dimension_numbers<[1], [0], [0], [1], [0, 0, 1, 1], [], []>} : vector<32x32xbf16>, vector<32x8xbf16>, vector<32x8xf32> -> vector<32x8xf32>
    %29 = vector.extract_strided_slice %4 {offsets = [0, 8], sizes = [32, 8], strides = [1, 1]} : vector<32x96xf32> to vector<32x8xf32>
    %30 = vector.extract_strided_slice %4 {offsets = [0, 40], sizes = [32, 8], strides = [1, 1]} : vector<32x96xf32> to vector<32x8xf32>
    %31 = vector.extract_strided_slice %4 {offsets = [0, 72], sizes = [32, 8], strides = [1, 1]} : vector<32x96xf32> to vector<32x8xf32>
    %c1 = arith.constant 1 : index
    %c0_12 = arith.constant 0 : index
    %c0_13 = arith.constant 0 : index
    %32 = vector.load %arg3[%c1, %c0_12, %c0_13] : memref<4x32x32xf32, #tpu.memory_space<vmem>>, vector<1x32x32xf32>
    %33 = vector.shape_cast %32 : vector<1x32x32xf32> to vector<32x32xf32>
    %34 = arith.truncf %29 : vector<32x8xf32> to vector<32x8xbf16>
    %35 = arith.truncf %30 : vector<32x8xf32> to vector<32x8xbf16>
    %cst_14 = arith.constant dense<0.000000e+00> : vector<32x32xf32>
    %36 = tpu.matmul %34, %35, %cst_14 {dimension_numbers = #tpu.dot_dimension_numbers<[1], [1], [0], [0], [0, 0, 1, 0], [], []>} : vector<32x8xbf16>, vector<32x8xbf16>, vector<32x32xf32> -> vector<32x32xf32>
    %cst_15 = arith.constant 0.353553385 : f32
    %37 = vector.broadcast %cst_15 : f32 to vector<32x32xf32>
    %38 = arith.mulf %36, %37 : vector<32x32xf32>
    %39 = arith.addf %38, %33 : vector<32x32xf32>
    %cst_16 = arith.constant dense<0xFF800000> : vector<32xf32>
    %40 = vector.multi_reduction <maximumf>, %39, %cst_16 [1] : vector<32x32xf32> to vector<32xf32>
    %41 = vector.shape_cast %40 : vector<32xf32> to vector<32x1xf32>
    %42 = vector.broadcast %41 : vector<32x1xf32> to vector<32x32xf32>
    %43 = arith.subf %39, %42 : vector<32x32xf32>
    %44 = math.exp %43 : vector<32x32xf32>
    %cst_17 = arith.constant dense<0.000000e+00> : vector<32xf32>
    %45 = vector.multi_reduction <add>, %44, %cst_17 [1] : vector<32x32xf32> to vector<32xf32>
    %46 = vector.shape_cast %45 : vector<32xf32> to vector<32x1xf32>
    %47 = tpu.reciprocal %46 {approx = true} : vector<32x1xf32> -> vector<32x1xf32>
    %48 = vector.broadcast %47 : vector<32x1xf32> to vector<32x32xf32>
    %49 = arith.mulf %44, %48 : vector<32x32xf32>
    %50 = arith.truncf %49 : vector<32x32xf32> to vector<32x32xbf16>
    %51 = arith.truncf %31 : vector<32x8xf32> to vector<32x8xbf16>
    %cst_18 = arith.constant dense<0.000000e+00> : vector<32x8xf32>
    %52 = tpu.matmul %50, %51, %cst_18 {dimension_numbers = #tpu.dot_dimension_numbers<[1], [0], [0], [1], [0, 0, 1, 1], [], []>} : vector<32x32xbf16>, vector<32x8xbf16>, vector<32x8xf32> -> vector<32x8xf32>
    %53 = vector.extract_strided_slice %4 {offsets = [0, 16], sizes = [32, 8], strides = [1, 1]} : vector<32x96xf32> to vector<32x8xf32>
    %54 = vector.extract_strided_slice %4 {offsets = [0, 48], sizes = [32, 8], strides = [1, 1]} : vector<32x96xf32> to vector<32x8xf32>
    %55 = vector.extract_strided_slice %4 {offsets = [0, 80], sizes = [32, 8], strides = [1, 1]} : vector<32x96xf32> to vector<32x8xf32>
    %c2 = arith.constant 2 : index
    %c0_19 = arith.constant 0 : index
    %c0_20 = arith.constant 0 : index
    %56 = vector.load %arg3[%c2, %c0_19, %c0_20] : memref<4x32x32xf32, #tpu.memory_space<vmem>>, vector<1x32x32xf32>
    %57 = vector.shape_cast %56 : vector<1x32x32xf32> to vector<32x32xf32>
    %58 = arith.truncf %53 : vector<32x8xf32> to vector<32x8xbf16>
    %59 = arith.truncf %54 : vector<32x8xf32> to vector<32x8xbf16>
    %cst_21 = arith.constant dense<0.000000e+00> : vector<32x32xf32>
    %60 = tpu.matmul %58, %59, %cst_21 {dimension_numbers = #tpu.dot_dimension_numbers<[1], [1], [0], [0], [0, 0, 1, 0], [], []>} : vector<32x8xbf16>, vector<32x8xbf16>, vector<32x32xf32> -> vector<32x32xf32>
    %cst_22 = arith.constant 0.353553385 : f32
    %61 = vector.broadcast %cst_22 : f32 to vector<32x32xf32>
    %62 = arith.mulf %60, %61 : vector<32x32xf32>
    %63 = arith.addf %62, %57 : vector<32x32xf32>
    %cst_23 = arith.constant dense<0xFF800000> : vector<32xf32>
    %64 = vector.multi_reduction <maximumf>, %63, %cst_23 [1] : vector<32x32xf32> to vector<32xf32>
    %65 = vector.shape_cast %64 : vector<32xf32> to vector<32x1xf32>
    %66 = vector.broadcast %65 : vector<32x1xf32> to vector<32x32xf32>
    %67 = arith.subf %63, %66 : vector<32x32xf32>
    %68 = math.exp %67 : vector<32x32xf32>
    %cst_24 = arith.constant dense<0.000000e+00> : vector<32xf32>
    %69 = vector.multi_reduction <add>, %68, %cst_24 [1] : vector<32x32xf32> to vector<32xf32>
    %70 = vector.shape_cast %69 : vector<32xf32> to vector<32x1xf32>
    %71 = tpu.reciprocal %70 {approx = true} : vector<32x1xf32> -> vector<32x1xf32>
    %72 = vector.broadcast %71 : vector<32x1xf32> to vector<32x32xf32>
    %73 = arith.mulf %68, %72 : vector<32x32xf32>
    %74 = arith.truncf %73 : vector<32x32xf32> to vector<32x32xbf16>
    %75 = arith.truncf %55 : vector<32x8xf32> to vector<32x8xbf16>
    %cst_25 = arith.constant dense<0.000000e+00> : vector<32x8xf32>
    %76 = tpu.matmul %74, %75, %cst_25 {dimension_numbers = #tpu.dot_dimension_numbers<[1], [0], [0], [1], [0, 0, 1, 1], [], []>} : vector<32x32xbf16>, vector<32x8xbf16>, vector<32x8xf32> -> vector<32x8xf32>
    %77 = vector.extract_strided_slice %4 {offsets = [0, 24], sizes = [32, 8], strides = [1, 1]} : vector<32x96xf32> to vector<32x8xf32>
    %78 = vector.extract_strided_slice %4 {offsets = [0, 56], sizes = [32, 8], strides = [1, 1]} : vector<32x96xf32> to vector<32x8xf32>
    %79 = vector.extract_strided_slice %4 {offsets = [0, 88], sizes = [32, 8], strides = [1, 1]} : vector<32x96xf32> to vector<32x8xf32>
    %c3 = arith.constant 3 : index
    %c0_26 = arith.constant 0 : index
    %c0_27 = arith.constant 0 : index
    %80 = vector.load %arg3[%c3, %c0_26, %c0_27] : memref<4x32x32xf32, #tpu.memory_space<vmem>>, vector<1x32x32xf32>
    %81 = vector.shape_cast %80 : vector<1x32x32xf32> to vector<32x32xf32>
    %82 = arith.truncf %77 : vector<32x8xf32> to vector<32x8xbf16>
    %83 = arith.truncf %78 : vector<32x8xf32> to vector<32x8xbf16>
    %cst_28 = arith.constant dense<0.000000e+00> : vector<32x32xf32>
    %84 = tpu.matmul %82, %83, %cst_28 {dimension_numbers = #tpu.dot_dimension_numbers<[1], [1], [0], [0], [0, 0, 1, 0], [], []>} : vector<32x8xbf16>, vector<32x8xbf16>, vector<32x32xf32> -> vector<32x32xf32>
    %cst_29 = arith.constant 0.353553385 : f32
    %85 = vector.broadcast %cst_29 : f32 to vector<32x32xf32>
    %86 = arith.mulf %84, %85 : vector<32x32xf32>
    %87 = arith.addf %86, %81 : vector<32x32xf32>
    %cst_30 = arith.constant dense<0xFF800000> : vector<32xf32>
    %88 = vector.multi_reduction <maximumf>, %87, %cst_30 [1] : vector<32x32xf32> to vector<32xf32>
    %89 = vector.shape_cast %88 : vector<32xf32> to vector<32x1xf32>
    %90 = vector.broadcast %89 : vector<32x1xf32> to vector<32x32xf32>
    %91 = arith.subf %87, %90 : vector<32x32xf32>
    %92 = math.exp %91 : vector<32x32xf32>
    %cst_31 = arith.constant dense<0.000000e+00> : vector<32xf32>
    %93 = vector.multi_reduction <add>, %92, %cst_31 [1] : vector<32x32xf32> to vector<32xf32>
    %94 = vector.shape_cast %93 : vector<32xf32> to vector<32x1xf32>
    %95 = tpu.reciprocal %94 {approx = true} : vector<32x1xf32> -> vector<32x1xf32>
    %96 = vector.broadcast %95 : vector<32x1xf32> to vector<32x32xf32>
    %97 = arith.mulf %92, %96 : vector<32x32xf32>
    %98 = arith.truncf %97 : vector<32x32xf32> to vector<32x32xbf16>
    %99 = arith.truncf %79 : vector<32x8xf32> to vector<32x8xbf16>
    %cst_32 = arith.constant dense<0.000000e+00> : vector<32x8xf32>
    %100 = tpu.matmul %98, %99, %cst_32 {dimension_numbers = #tpu.dot_dimension_numbers<[1], [0], [0], [1], [0, 0, 1, 1], [], []>} : vector<32x32xbf16>, vector<32x8xbf16>, vector<32x8xf32> -> vector<32x8xf32>
    %101 = tpu.concatenate %28, %52, %76, %100 in 1 : vector<32x8xf32>, vector<32x8xf32>, vector<32x8xf32>, vector<32x8xf32> -> vector<32x32xf32>
    %c0_33 = arith.constant 0 : index
    %c0_34 = arith.constant 0 : index
    %102 = vector.load %arg2[%c0_33, %c0_34] : memref<32x32xf32, #tpu.memory_space<vmem>>, vector<32x32xf32>
    %103 = arith.addf %1, %102 : vector<32x32xf32>
    %c0_35 = arith.constant 0 : index
    %c0_36 = arith.constant 0 : index
    %104 = vector.load %arg5[%c0_35, %c0_36] : memref<32x96xbf16, #tpu.memory_space<vmem>>, vector<32x96xbf16>
    %105 = arith.truncf %103 : vector<32x32xf32> to vector<32x32xbf16>
    %cst_37 = arith.constant dense<0.000000e+00> : vector<32x96xf32>
    %106 = tpu.matmul %105, %104, %cst_37 {dimension_numbers = #tpu.dot_dimension_numbers<[1], [0], [0], [1], [0, 0, 1, 1], [], []>} : vector<32x32xbf16>, vector<32x96xbf16>, vector<32x96xf32> -> vector<32x96xf32>
    %107 = vector.extract_strided_slice %106 {offsets = [0, 0], sizes = [32, 8], strides = [1, 1]} : vector<32x96xf32> to vector<32x8xf32>
    %108 = vector.extract_strided_slice %106 {offsets = [0, 32], sizes = [32, 8], strides = [1, 1]} : vector<32x96xf32> to vector<32x8xf32>
    %109 = vector.extract_strided_slice %106 {offsets = [0, 64], sizes = [32, 8], strides = [1, 1]} : vector<32x96xf32> to vector<32x8xf32>
    %110 = vector.extract_strided_slice %107 {offsets = [0, 0], sizes = [16, 8], strides = [1, 1]} : vector<32x8xf32> to vector<16x8xf32>
    %111 = vector.extract_strided_slice %107 {offsets = [16, 0], sizes = [16, 8], strides = [1, 1]} : vector<32x8xf32> to vector<16x8xf32>
    %112 = vector.extract_strided_slice %108 {offsets = [0, 0], sizes = [16, 8], strides = [1, 1]} : vector<32x8xf32> to vector<16x8xf32>
    %113 = vector.extract_strided_slice %108 {offsets = [16, 0], sizes = [16, 8], strides = [1, 1]} : vector<32x8xf32> to vector<16x8xf32>
    %114 = vector.extract_strided_slice %109 {offsets = [0, 0], sizes = [16, 8], strides = [1, 1]} : vector<32x8xf32> to vector<16x8xf32>
    %115 = vector.extract_strided_slice %109 {offsets = [16, 0], sizes = [16, 8], strides = [1, 1]} : vector<32x8xf32> to vector<16x8xf32>
    %116 = arith.truncf %111 : vector<16x8xf32> to vector<16x8xbf16>
    %117 = arith.truncf %112 : vector<16x8xf32> to vector<16x8xbf16>
    %cst_38 = arith.constant dense<0.000000e+00> : vector<16x16xf32>
    %118 = tpu.matmul %116, %117, %cst_38 {dimension_numbers = #tpu.dot_dimension_numbers<[1], [1], [0], [0], [0, 0, 1, 0], [], []>} : vector<16x8xbf16>, vector<16x8xbf16>, vector<16x16xf32> -> vector<16x16xf32>
    %cst_39 = arith.constant 0.353553385 : f32
    %119 = vector.broadcast %cst_39 : f32 to vector<16x16xf32>
    %120 = arith.mulf %118, %119 : vector<16x16xf32>
    %cst_40 = arith.constant dense<0xFF800000> : vector<16xf32>
    %121 = vector.multi_reduction <maximumf>, %120, %cst_40 [1] : vector<16x16xf32> to vector<16xf32>
    %122 = vector.shape_cast %121 : vector<16xf32> to vector<16x1xf32>
    %123 = vector.broadcast %122 : vector<16x1xf32> to vector<16x16xf32>
    %124 = arith.subf %120, %123 : vector<16x16xf32>
    %125 = math.exp %124 : vector<16x16xf32>
    %cst_41 = arith.constant dense<0.000000e+00> : vector<16xf32>
    %126 = vector.multi_reduction <add>, %125, %cst_41 [1] : vector<16x16xf32> to vector<16xf32>
    %127 = vector.shape_cast %126 : vector<16xf32> to vector<16x1xf32>
    %128 = tpu.reciprocal %127 {approx = true} : vector<16x1xf32> -> vector<16x1xf32>
    %129 = vector.broadcast %128 : vector<16x1xf32> to vector<16x16xf32>
    %130 = arith.mulf %125, %129 : vector<16x16xf32>
    %131 = arith.truncf %130 : vector<16x16xf32> to vector<16x16xbf16>
    %132 = arith.truncf %114 : vector<16x8xf32> to vector<16x8xbf16>
    %cst_42 = arith.constant dense<0.000000e+00> : vector<16x8xf32>
    %133 = tpu.matmul %131, %132, %cst_42 {dimension_numbers = #tpu.dot_dimension_numbers<[1], [0], [0], [1], [0, 0, 1, 1], [], []>} : vector<16x16xbf16>, vector<16x8xbf16>, vector<16x8xf32> -> vector<16x8xf32>
    %134 = arith.truncf %110 : vector<16x8xf32> to vector<16x8xbf16>
    %135 = arith.truncf %113 : vector<16x8xf32> to vector<16x8xbf16>
    %cst_43 = arith.constant dense<0.000000e+00> : vector<16x16xf32>
    %136 = tpu.matmul %134, %135, %cst_43 {dimension_numbers = #tpu.dot_dimension_numbers<[1], [1], [0], [0], [0, 0, 1, 0], [], []>} : vector<16x8xbf16>, vector<16x8xbf16>, vector<16x16xf32> -> vector<16x16xf32>
    %cst_44 = arith.constant 0.353553385 : f32
    %137 = vector.broadcast %cst_44 : f32 to vector<16x16xf32>
    %138 = arith.mulf %136, %137 : vector<16x16xf32>
    %cst_45 = arith.constant dense<0xFF800000> : vector<16xf32>
    %139 = vector.multi_reduction <maximumf>, %138, %cst_45 [1] : vector<16x16xf32> to vector<16xf32>
    %140 = vector.shape_cast %139 : vector<16xf32> to vector<16x1xf32>
    %141 = vector.broadcast %140 : vector<16x1xf32> to vector<16x16xf32>
    %142 = arith.subf %138, %141 : vector<16x16xf32>
    %143 = math.exp %142 : vector<16x16xf32>
    %cst_46 = arith.constant dense<0.000000e+00> : vector<16xf32>
    %144 = vector.multi_reduction <add>, %143, %cst_46 [1] : vector<16x16xf32> to vector<16xf32>
    %145 = vector.shape_cast %144 : vector<16xf32> to vector<16x1xf32>
    %146 = tpu.reciprocal %145 {approx = true} : vector<16x1xf32> -> vector<16x1xf32>
    %147 = vector.broadcast %146 : vector<16x1xf32> to vector<16x16xf32>
    %148 = arith.mulf %143, %147 : vector<16x16xf32>
    %149 = arith.truncf %148 : vector<16x16xf32> to vector<16x16xbf16>
    %150 = arith.truncf %115 : vector<16x8xf32> to vector<16x8xbf16>
    %cst_47 = arith.constant dense<0.000000e+00> : vector<16x8xf32>
    %151 = tpu.matmul %149, %150, %cst_47 {dimension_numbers = #tpu.dot_dimension_numbers<[1], [0], [0], [1], [0, 0, 1, 1], [], []>} : vector<16x16xbf16>, vector<16x8xbf16>, vector<16x8xf32> -> vector<16x8xf32>
    %152 = vector.extract_strided_slice %106 {offsets = [0, 8], sizes = [32, 8], strides = [1, 1]} : vector<32x96xf32> to vector<32x8xf32>
    %153 = vector.extract_strided_slice %106 {offsets = [0, 40], sizes = [32, 8], strides = [1, 1]} : vector<32x96xf32> to vector<32x8xf32>
    %154 = vector.extract_strided_slice %106 {offsets = [0, 72], sizes = [32, 8], strides = [1, 1]} : vector<32x96xf32> to vector<32x8xf32>
    %155 = vector.extract_strided_slice %152 {offsets = [0, 0], sizes = [16, 8], strides = [1, 1]} : vector<32x8xf32> to vector<16x8xf32>
    %156 = vector.extract_strided_slice %152 {offsets = [16, 0], sizes = [16, 8], strides = [1, 1]} : vector<32x8xf32> to vector<16x8xf32>
    %157 = vector.extract_strided_slice %153 {offsets = [0, 0], sizes = [16, 8], strides = [1, 1]} : vector<32x8xf32> to vector<16x8xf32>
    %158 = vector.extract_strided_slice %153 {offsets = [16, 0], sizes = [16, 8], strides = [1, 1]} : vector<32x8xf32> to vector<16x8xf32>
    %159 = vector.extract_strided_slice %154 {offsets = [0, 0], sizes = [16, 8], strides = [1, 1]} : vector<32x8xf32> to vector<16x8xf32>
    %160 = vector.extract_strided_slice %154 {offsets = [16, 0], sizes = [16, 8], strides = [1, 1]} : vector<32x8xf32> to vector<16x8xf32>
    %161 = arith.truncf %156 : vector<16x8xf32> to vector<16x8xbf16>
    %162 = arith.truncf %157 : vector<16x8xf32> to vector<16x8xbf16>
    %cst_48 = arith.constant dense<0.000000e+00> : vector<16x16xf32>
    %163 = tpu.matmul %161, %162, %cst_48 {dimension_numbers = #tpu.dot_dimension_numbers<[1], [1], [0], [0], [0, 0, 1, 0], [], []>} : vector<16x8xbf16>, vector<16x8xbf16>, vector<16x16xf32> -> vector<16x16xf32>
    %cst_49 = arith.constant 0.353553385 : f32
    %164 = vector.broadcast %cst_49 : f32 to vector<16x16xf32>
    %165 = arith.mulf %163, %164 : vector<16x16xf32>
    %cst_50 = arith.constant dense<0xFF800000> : vector<16xf32>
    %166 = vector.multi_reduction <maximumf>, %165, %cst_50 [1] : vector<16x16xf32> to vector<16xf32>
    %167 = vector.shape_cast %166 : vector<16xf32> to vector<16x1xf32>
    %168 = vector.broadcast %167 : vector<16x1xf32> to vector<16x16xf32>
    %169 = arith.subf %165, %168 : vector<16x16xf32>
    %170 = math.exp %169 : vector<16x16xf32>
    %cst_51 = arith.constant dense<0.000000e+00> : vector<16xf32>
    %171 = vector.multi_reduction <add>, %170, %cst_51 [1] : vector<16x16xf32> to vector<16xf32>
    %172 = vector.shape_cast %171 : vector<16xf32> to vector<16x1xf32>
    %173 = tpu.reciprocal %172 {approx = true} : vector<16x1xf32> -> vector<16x1xf32>
    %174 = vector.broadcast %173 : vector<16x1xf32> to vector<16x16xf32>
    %175 = arith.mulf %170, %174 : vector<16x16xf32>
    %176 = arith.truncf %175 : vector<16x16xf32> to vector<16x16xbf16>
    %177 = arith.truncf %159 : vector<16x8xf32> to vector<16x8xbf16>
    %cst_52 = arith.constant dense<0.000000e+00> : vector<16x8xf32>
    %178 = tpu.matmul %176, %177, %cst_52 {dimension_numbers = #tpu.dot_dimension_numbers<[1], [0], [0], [1], [0, 0, 1, 1], [], []>} : vector<16x16xbf16>, vector<16x8xbf16>, vector<16x8xf32> -> vector<16x8xf32>
    %179 = arith.truncf %155 : vector<16x8xf32> to vector<16x8xbf16>
    %180 = arith.truncf %158 : vector<16x8xf32> to vector<16x8xbf16>
    %cst_53 = arith.constant dense<0.000000e+00> : vector<16x16xf32>
    %181 = tpu.matmul %179, %180, %cst_53 {dimension_numbers = #tpu.dot_dimension_numbers<[1], [1], [0], [0], [0, 0, 1, 0], [], []>} : vector<16x8xbf16>, vector<16x8xbf16>, vector<16x16xf32> -> vector<16x16xf32>
    %cst_54 = arith.constant 0.353553385 : f32
    %182 = vector.broadcast %cst_54 : f32 to vector<16x16xf32>
    %183 = arith.mulf %181, %182 : vector<16x16xf32>
    %cst_55 = arith.constant dense<0xFF800000> : vector<16xf32>
    %184 = vector.multi_reduction <maximumf>, %183, %cst_55 [1] : vector<16x16xf32> to vector<16xf32>
    %185 = vector.shape_cast %184 : vector<16xf32> to vector<16x1xf32>
    %186 = vector.broadcast %185 : vector<16x1xf32> to vector<16x16xf32>
    %187 = arith.subf %183, %186 : vector<16x16xf32>
    %188 = math.exp %187 : vector<16x16xf32>
    %cst_56 = arith.constant dense<0.000000e+00> : vector<16xf32>
    %189 = vector.multi_reduction <add>, %188, %cst_56 [1] : vector<16x16xf32> to vector<16xf32>
    %190 = vector.shape_cast %189 : vector<16xf32> to vector<16x1xf32>
    %191 = tpu.reciprocal %190 {approx = true} : vector<16x1xf32> -> vector<16x1xf32>
    %192 = vector.broadcast %191 : vector<16x1xf32> to vector<16x16xf32>
    %193 = arith.mulf %188, %192 : vector<16x16xf32>
    %194 = arith.truncf %193 : vector<16x16xf32> to vector<16x16xbf16>
    %195 = arith.truncf %160 : vector<16x8xf32> to vector<16x8xbf16>
    %cst_57 = arith.constant dense<0.000000e+00> : vector<16x8xf32>
    %196 = tpu.matmul %194, %195, %cst_57 {dimension_numbers = #tpu.dot_dimension_numbers<[1], [0], [0], [1], [0, 0, 1, 1], [], []>} : vector<16x16xbf16>, vector<16x8xbf16>, vector<16x8xf32> -> vector<16x8xf32>
    %197 = vector.extract_strided_slice %106 {offsets = [0, 16], sizes = [32, 8], strides = [1, 1]} : vector<32x96xf32> to vector<32x8xf32>
    %198 = vector.extract_strided_slice %106 {offsets = [0, 48], sizes = [32, 8], strides = [1, 1]} : vector<32x96xf32> to vector<32x8xf32>
    %199 = vector.extract_strided_slice %106 {offsets = [0, 80], sizes = [32, 8], strides = [1, 1]} : vector<32x96xf32> to vector<32x8xf32>
    %200 = vector.extract_strided_slice %197 {offsets = [0, 0], sizes = [16, 8], strides = [1, 1]} : vector<32x8xf32> to vector<16x8xf32>
    %201 = vector.extract_strided_slice %197 {offsets = [16, 0], sizes = [16, 8], strides = [1, 1]} : vector<32x8xf32> to vector<16x8xf32>
    %202 = vector.extract_strided_slice %198 {offsets = [0, 0], sizes = [16, 8], strides = [1, 1]} : vector<32x8xf32> to vector<16x8xf32>
    %203 = vector.extract_strided_slice %198 {offsets = [16, 0], sizes = [16, 8], strides = [1, 1]} : vector<32x8xf32> to vector<16x8xf32>
    %204 = vector.extract_strided_slice %199 {offsets = [0, 0], sizes = [16, 8], strides = [1, 1]} : vector<32x8xf32> to vector<16x8xf32>
    %205 = vector.extract_strided_slice %199 {offsets = [16, 0], sizes = [16, 8], strides = [1, 1]} : vector<32x8xf32> to vector<16x8xf32>
    %206 = arith.truncf %201 : vector<16x8xf32> to vector<16x8xbf16>
    %207 = arith.truncf %202 : vector<16x8xf32> to vector<16x8xbf16>
    %cst_58 = arith.constant dense<0.000000e+00> : vector<16x16xf32>
    %208 = tpu.matmul %206, %207, %cst_58 {dimension_numbers = #tpu.dot_dimension_numbers<[1], [1], [0], [0], [0, 0, 1, 0], [], []>} : vector<16x8xbf16>, vector<16x8xbf16>, vector<16x16xf32> -> vector<16x16xf32>
    %cst_59 = arith.constant 0.353553385 : f32
    %209 = vector.broadcast %cst_59 : f32 to vector<16x16xf32>
    %210 = arith.mulf %208, %209 : vector<16x16xf32>
    %cst_60 = arith.constant dense<0xFF800000> : vector<16xf32>
    %211 = vector.multi_reduction <maximumf>, %210, %cst_60 [1] : vector<16x16xf32> to vector<16xf32>
    %212 = vector.shape_cast %211 : vector<16xf32> to vector<16x1xf32>
    %213 = vector.broadcast %212 : vector<16x1xf32> to vector<16x16xf32>
    %214 = arith.subf %210, %213 : vector<16x16xf32>
    %215 = math.exp %214 : vector<16x16xf32>
    %cst_61 = arith.constant dense<0.000000e+00> : vector<16xf32>
    %216 = vector.multi_reduction <add>, %215, %cst_61 [1] : vector<16x16xf32> to vector<16xf32>
    %217 = vector.shape_cast %216 : vector<16xf32> to vector<16x1xf32>
    %218 = tpu.reciprocal %217 {approx = true} : vector<16x1xf32> -> vector<16x1xf32>
    %219 = vector.broadcast %218 : vector<16x1xf32> to vector<16x16xf32>
    %220 = arith.mulf %215, %219 : vector<16x16xf32>
    %221 = arith.truncf %220 : vector<16x16xf32> to vector<16x16xbf16>
    %222 = arith.truncf %204 : vector<16x8xf32> to vector<16x8xbf16>
    %cst_62 = arith.constant dense<0.000000e+00> : vector<16x8xf32>
    %223 = tpu.matmul %221, %222, %cst_62 {dimension_numbers = #tpu.dot_dimension_numbers<[1], [0], [0], [1], [0, 0, 1, 1], [], []>} : vector<16x16xbf16>, vector<16x8xbf16>, vector<16x8xf32> -> vector<16x8xf32>
    %224 = arith.truncf %200 : vector<16x8xf32> to vector<16x8xbf16>
    %225 = arith.truncf %203 : vector<16x8xf32> to vector<16x8xbf16>
    %cst_63 = arith.constant dense<0.000000e+00> : vector<16x16xf32>
    %226 = tpu.matmul %224, %225, %cst_63 {dimension_numbers = #tpu.dot_dimension_numbers<[1], [1], [0], [0], [0, 0, 1, 0], [], []>} : vector<16x8xbf16>, vector<16x8xbf16>, vector<16x16xf32> -> vector<16x16xf32>
    %cst_64 = arith.constant 0.353553385 : f32
    %227 = vector.broadcast %cst_64 : f32 to vector<16x16xf32>
    %228 = arith.mulf %226, %227 : vector<16x16xf32>
    %cst_65 = arith.constant dense<0xFF800000> : vector<16xf32>
    %229 = vector.multi_reduction <maximumf>, %228, %cst_65 [1] : vector<16x16xf32> to vector<16xf32>
    %230 = vector.shape_cast %229 : vector<16xf32> to vector<16x1xf32>
    %231 = vector.broadcast %230 : vector<16x1xf32> to vector<16x16xf32>
    %232 = arith.subf %228, %231 : vector<16x16xf32>
    %233 = math.exp %232 : vector<16x16xf32>
    %cst_66 = arith.constant dense<0.000000e+00> : vector<16xf32>
    %234 = vector.multi_reduction <add>, %233, %cst_66 [1] : vector<16x16xf32> to vector<16xf32>
    %235 = vector.shape_cast %234 : vector<16xf32> to vector<16x1xf32>
    %236 = tpu.reciprocal %235 {approx = true} : vector<16x1xf32> -> vector<16x1xf32>
    %237 = vector.broadcast %236 : vector<16x1xf32> to vector<16x16xf32>
    %238 = arith.mulf %233, %237 : vector<16x16xf32>
    %239 = arith.truncf %238 : vector<16x16xf32> to vector<16x16xbf16>
    %240 = arith.truncf %205 : vector<16x8xf32> to vector<16x8xbf16>
    %cst_67 = arith.constant dense<0.000000e+00> : vector<16x8xf32>
    %241 = tpu.matmul %239, %240, %cst_67 {dimension_numbers = #tpu.dot_dimension_numbers<[1], [0], [0], [1], [0, 0, 1, 1], [], []>} : vector<16x16xbf16>, vector<16x8xbf16>, vector<16x8xf32> -> vector<16x8xf32>
    %242 = vector.extract_strided_slice %106 {offsets = [0, 24], sizes = [32, 8], strides = [1, 1]} : vector<32x96xf32> to vector<32x8xf32>
    %243 = vector.extract_strided_slice %106 {offsets = [0, 56], sizes = [32, 8], strides = [1, 1]} : vector<32x96xf32> to vector<32x8xf32>
    %244 = vector.extract_strided_slice %106 {offsets = [0, 88], sizes = [32, 8], strides = [1, 1]} : vector<32x96xf32> to vector<32x8xf32>
    %245 = vector.extract_strided_slice %242 {offsets = [0, 0], sizes = [16, 8], strides = [1, 1]} : vector<32x8xf32> to vector<16x8xf32>
    %246 = vector.extract_strided_slice %242 {offsets = [16, 0], sizes = [16, 8], strides = [1, 1]} : vector<32x8xf32> to vector<16x8xf32>
    %247 = vector.extract_strided_slice %243 {offsets = [0, 0], sizes = [16, 8], strides = [1, 1]} : vector<32x8xf32> to vector<16x8xf32>
    %248 = vector.extract_strided_slice %243 {offsets = [16, 0], sizes = [16, 8], strides = [1, 1]} : vector<32x8xf32> to vector<16x8xf32>
    %249 = vector.extract_strided_slice %244 {offsets = [0, 0], sizes = [16, 8], strides = [1, 1]} : vector<32x8xf32> to vector<16x8xf32>
    %250 = vector.extract_strided_slice %244 {offsets = [16, 0], sizes = [16, 8], strides = [1, 1]} : vector<32x8xf32> to vector<16x8xf32>
    %251 = arith.truncf %246 : vector<16x8xf32> to vector<16x8xbf16>
    %252 = arith.truncf %247 : vector<16x8xf32> to vector<16x8xbf16>
    %cst_68 = arith.constant dense<0.000000e+00> : vector<16x16xf32>
    %253 = tpu.matmul %251, %252, %cst_68 {dimension_numbers = #tpu.dot_dimension_numbers<[1], [1], [0], [0], [0, 0, 1, 0], [], []>} : vector<16x8xbf16>, vector<16x8xbf16>, vector<16x16xf32> -> vector<16x16xf32>
    %cst_69 = arith.constant 0.353553385 : f32
    %254 = vector.broadcast %cst_69 : f32 to vector<16x16xf32>
    %255 = arith.mulf %253, %254 : vector<16x16xf32>
    %cst_70 = arith.constant dense<0xFF800000> : vector<16xf32>
    %256 = vector.multi_reduction <maximumf>, %255, %cst_70 [1] : vector<16x16xf32> to vector<16xf32>
    %257 = vector.shape_cast %256 : vector<16xf32> to vector<16x1xf32>
    %258 = vector.broadcast %257 : vector<16x1xf32> to vector<16x16xf32>
    %259 = arith.subf %255, %258 : vector<16x16xf32>
    %260 = math.exp %259 : vector<16x16xf32>
    %cst_71 = arith.constant dense<0.000000e+00> : vector<16xf32>
    %261 = vector.multi_reduction <add>, %260, %cst_71 [1] : vector<16x16xf32> to vector<16xf32>
    %262 = vector.shape_cast %261 : vector<16xf32> to vector<16x1xf32>
    %263 = tpu.reciprocal %262 {approx = true} : vector<16x1xf32> -> vector<16x1xf32>
    %264 = vector.broadcast %263 : vector<16x1xf32> to vector<16x16xf32>
    %265 = arith.mulf %260, %264 : vector<16x16xf32>
    %266 = arith.truncf %265 : vector<16x16xf32> to vector<16x16xbf16>
    %267 = arith.truncf %249 : vector<16x8xf32> to vector<16x8xbf16>
    %cst_72 = arith.constant dense<0.000000e+00> : vector<16x8xf32>
    %268 = tpu.matmul %266, %267, %cst_72 {dimension_numbers = #tpu.dot_dimension_numbers<[1], [0], [0], [1], [0, 0, 1, 1], [], []>} : vector<16x16xbf16>, vector<16x8xbf16>, vector<16x8xf32> -> vector<16x8xf32>
    %269 = arith.truncf %245 : vector<16x8xf32> to vector<16x8xbf16>
    %270 = arith.truncf %248 : vector<16x8xf32> to vector<16x8xbf16>
    %cst_73 = arith.constant dense<0.000000e+00> : vector<16x16xf32>
    %271 = tpu.matmul %269, %270, %cst_73 {dimension_numbers = #tpu.dot_dimension_numbers<[1], [1], [0], [0], [0, 0, 1, 0], [], []>} : vector<16x8xbf16>, vector<16x8xbf16>, vector<16x16xf32> -> vector<16x16xf32>
    %cst_74 = arith.constant 0.353553385 : f32
    %272 = vector.broadcast %cst_74 : f32 to vector<16x16xf32>
    %273 = arith.mulf %271, %272 : vector<16x16xf32>
    %cst_75 = arith.constant dense<0xFF800000> : vector<16xf32>
    %274 = vector.multi_reduction <maximumf>, %273, %cst_75 [1] : vector<16x16xf32> to vector<16xf32>
    %275 = vector.shape_cast %274 : vector<16xf32> to vector<16x1xf32>
    %276 = vector.broadcast %275 : vector<16x1xf32> to vector<16x16xf32>
    %277 = arith.subf %273, %276 : vector<16x16xf32>
    %278 = math.exp %277 : vector<16x16xf32>
    %cst_76 = arith.constant dense<0.000000e+00> : vector<16xf32>
    %279 = vector.multi_reduction <add>, %278, %cst_76 [1] : vector<16x16xf32> to vector<16xf32>
    %280 = vector.shape_cast %279 : vector<16xf32> to vector<16x1xf32>
    %281 = tpu.reciprocal %280 {approx = true} : vector<16x1xf32> -> vector<16x1xf32>
    %282 = vector.broadcast %281 : vector<16x1xf32> to vector<16x16xf32>
    %283 = arith.mulf %278, %282 : vector<16x16xf32>
    %284 = arith.truncf %283 : vector<16x16xf32> to vector<16x16xbf16>
    %285 = arith.truncf %250 : vector<16x8xf32> to vector<16x8xbf16>
    %cst_77 = arith.constant dense<0.000000e+00> : vector<16x8xf32>
    %286 = tpu.matmul %284, %285, %cst_77 {dimension_numbers = #tpu.dot_dimension_numbers<[1], [0], [0], [1], [0, 0, 1, 1], [], []>} : vector<16x16xbf16>, vector<16x8xbf16>, vector<16x8xf32> -> vector<16x8xf32>
    %287 = tpu.concatenate %133, %178, %223, %268 in 1 : vector<16x8xf32>, vector<16x8xf32>, vector<16x8xf32>, vector<16x8xf32> -> vector<16x32xf32>
    %288 = tpu.concatenate %151, %196, %241, %286 in 1 : vector<16x8xf32>, vector<16x8xf32>, vector<16x8xf32>, vector<16x8xf32> -> vector<16x32xf32>
    %289 = tpu.concatenate %287, %288 in 0 : vector<16x32xf32>, vector<16x32xf32> -> vector<32x32xf32>
    %290 = tpu.concatenate %289, %101 in 1 : vector<32x32xf32>, vector<32x32xf32> -> vector<32x64xf32>
    %c0_78 = arith.constant 0 : index
    %c0_79 = arith.constant 0 : index
    %291 = vector.load %arg6[%c0_78, %c0_79] : memref<64x32xbf16, #tpu.memory_space<vmem>>, vector<64x32xbf16>
    %292 = arith.truncf %290 : vector<32x64xf32> to vector<32x64xbf16>
    %cst_80 = arith.constant dense<0.000000e+00> : vector<32x32xf32>
    %293 = tpu.matmul %292, %291, %cst_80 {dimension_numbers = #tpu.dot_dimension_numbers<[1], [0], [0], [1], [0, 0, 1, 1], [], []>} : vector<32x64xbf16>, vector<64x32xbf16>, vector<32x32xf32> -> vector<32x32xf32>
    %c0_81 = arith.constant 0 : index
    %c0_82 = arith.constant 0 : index
    %294 = vector.load %arg7[%c0_81, %c0_82] : memref<1x32xf32, #tpu.memory_space<vmem>>, vector<1x32xf32>
    %295 = vector.broadcast %294 : vector<1x32xf32> to vector<32x32xf32>
    %296 = arith.addf %293, %295 : vector<32x32xf32>
    %c0_83 = arith.constant 0 : index
    %c0_84 = arith.constant 0 : index
    %c0_85 = arith.constant 0 : index
    %297 = vector.load %arg8[%c0_83, %c0_84, %c0_85] : memref<1x32x32xf32, #tpu.memory_space<vmem>>, vector<1x32x32xf32>
    %298 = vector.shape_cast %297 : vector<1x32x32xf32> to vector<32x32xf32>
    %299 = vector.shape_cast %296 : vector<32x32xf32> to vector<1x32x32xf32>
    tpu.vector_store %arg8[%c0_83, %c0_84, %c0_85], %299 {strides = array<i32>} : memref<1x32x32xf32, #tpu.memory_space<vmem>>, vector<1x32x32xf32>,
    return
  }
  func.func @transform_0(%arg0: i32) -> (i32, i32, i32) {
    %c0_i32 = arith.constant 0 : i32
    %c0_i32_0 = arith.constant 0 : i32
    %c0_i32_1 = arith.constant 0 : i32
    return %arg0, %c0_i32, %c0_i32_0 : i32, i32, i32
  }
  func.func @transform_1(%arg0: i32) -> (i32, i32) {
    %c0_i32 = arith.constant 0 : i32
    %c0_i32_0 = arith.constant 0 : i32
    %c0_i32_1 = arith.constant 0 : i32
    return %c0_i32, %c0_i32_0 : i32, i32
  }
  func.func @transform_2(%arg0: i32) -> (i32, i32, i32) {
    %c0_i32 = arith.constant 0 : i32
    %c0_i32_0 = arith.constant 0 : i32
    %c0_i32_1 = arith.constant 0 : i32
    %c0_i32_2 = arith.constant 0 : i32
    return %c0_i32, %c0_i32_0, %c0_i32_1 : i32, i32, i32
  }
  func.func @transform_3(%arg0: i32) -> (i32, i32) {
    %c0_i32 = arith.constant 0 : i32
    %c0_i32_0 = arith.constant 0 : i32
    %c0_i32_1 = arith.constant 0 : i32
    return %c0_i32, %c0_i32_0 : i32, i32
  }
  func.func @transform_4(%arg0: i32) -> (i32, i32) {
    %c0_i32 = arith.constant 0 : i32
    %c0_i32_0 = arith.constant 0 : i32
    %c0_i32_1 = arith.constant 0 : i32
    return %c0_i32, %c0_i32_0 : i32, i32
  }
  func.func @transform_5(%arg0: i32) -> (i32, i32) {
    %c0_i32 = arith.constant 0 : i32
    %c0_i32_0 = arith.constant 0 : i32
    %c0_i32_1 = arith.constant 0 : i32
    return %c0_i32, %c0_i32_0 : i32, i32
  }
  func.func @transform_6(%arg0: i32) -> (i32, i32) {
    %c0_i32 = arith.constant 0 : i32
    %c0_i32_0 = arith.constant 0 : i32
    %c0_i32_1 = arith.constant 0 : i32
    return %c0_i32, %c0_i32_0 : i32, i32
  }
  func.func @transform_7(%arg0: i32) -> (i32, i32, i32) {
    %c0_i32 = arith.constant 0 : i32
    %c0_i32_0 = arith.constant 0 : i32
    %c0_i32_1 = arith.constant 0 : i32
    return %arg0, %c0_i32, %c0_i32_0 : i32, i32, i32
  }
}

</mosaic_0001>

<llo_original>
// kernel: window_attention_forward.1
$region0: #{window_attention_forward.1}
  #allocation0 [shape = 'u32[]', space=smem, size = 0x4, offset = 0x4, fixed_abs, tag = 'smem constant byte address 0x4 - core index']
  #allocation1 [shape = 'u32[144,128]{1,0:T(1,128)}', space=vmem, size = 0x12000, scoped, tag = 'internal scratch']
  %s0 = inlined_call_operand.vmem [shape: f32[2,32,32], index: 0, kind: input, shape index: {}]
  %s1 = inlined_call_operand.hbm [shape: f32[32,32], index: 1, kind: input, shape index: {}]
  %s2 = inlined_call_operand.vmem [shape: f32[4,32,32], index: 2, kind: input, shape index: {}]
  %s3 = inlined_call_operand.vmem [shape: bf16[32,96], index: 3, kind: input, shape index: {}]
  %s4 = inlined_call_operand.vmem [shape: bf16[32,96], index: 4, kind: input, shape index: {}]
  %s5 = inlined_call_operand.vmem [shape: bf16[64,32], index: 5, kind: input, shape index: {}]
  %s6 = inlined_call_operand.vmem [shape: f32[1,32], index: 6, kind: input, shape index: {}]
  %s7 = inlined_call_operand.hbm [shape: f32[2,32,32], index: 7, kind: output, shape index: {}]
  %s8 = sld [smem:[#allocation0]]
  $region65: #{window_attention_forward.1} parent=0
    _
  %s10 = ssub.s32 1, %s8
  %s11 = scalar_select 0, %s10, %s8
  $region1: #{window_attention_forward.1} parent=0
    #allocation2 [shape = 'u8[16384]{0}', space=vmem, size = 0x4000, scoped, tag = 'input window, operand 1, single buffered']
    #allocation3 [shape = 's32[2]{0}', space=sflag, size = 0x8, scoped, tag = 'scoped memory for window_attention_forward.1']
    #allocation4 [shape = 's32[2]{0}', space=sflag, size = 0x8, scoped, tag = 'scoped memory for window_attention_forward.1']
    #allocation5 [shape = 'u8[32768]{0}', space=vmem, size = 0x8000, scoped, tag = 'output window, operand 0']
    %12 = vsyncpa [#allocation3], 0
    %13 = vsyncpa [#allocation4], 0
    %s14 = scalar_lea.sflag [#allocation4], 1
    %15 = vsyncpa %s14, 0
    loop: start=0, step=1, limit=4
    $region2: #{window_attention_forward.1} parent=1 // loop_pre_header
      _
    $region3: #{window_attention_forward.1} parent=1 // loop_header
      %s17 = sphi 0, %s21
      %p18 = scmp.ge.s32.totalorder %s17, 4
      %s27 = sphi 0, %s29
      %s30 = sphi 0, %s27
      %s31 = sphi 0, %s30
      %s47 = sphi 0, %s31
      %s51 = sphi 0, %s51
      %s53 = sphi 0, %s51
      %s54 = sphi 0, %s53
      %s68 = sphi 0, %s54
      %s72 = sphi 0, %s72
      %s74 = sphi 0, %s72
      %s75 = sphi 0, %s74
      %s89 = sphi 0, %s75
      %s93 = sphi 0, %s93
      %s95 = sphi 0, %s93
      %s96 = sphi 0, %s95
      %s110 = sphi 0, %s96
      %s114 = sphi 0, %s114
      %s116 = sphi 0, %s114
      %s117 = sphi 0, %s116
      %s131 = sphi 0, %s117
      %s135 = sphi 0, %s135
      %s137 = sphi 0, %s135
      %s138 = sphi 0, %s137
      %s152 = sphi 0, %s138
      %s156 = sphi 0, %s156
      %s158 = sphi 0, %s156
      %s159 = sphi 0, %s158
      %s173 = sphi 0, %s159
      %s179 = sphi 0, %s181
      %s182 = sphi 0, %s179
      %s183 = sphi 0, %s182
      %s199 = sphi 0, %s183
    $region4: #{window_attention_forward.1} parent=1 // loop_header_branch
      %20 = sbr.rel (%p18) target = $region8
    $region5: #{window_attention_forward.1} parent=1 // loop_body
      %s22 = ssub.s32 %s17, 1
      %s23 = ssub.s32 %s17, 2
      %s24 = sadd.s32 %s17, 1
      %s25 = ssub.s32 %s17, %s24
      %p26 = scmp.eq.s32.totalorder %s25, 0
      %s28 = sadd.s32 %s27, 1
      %s29 = scalar_select %p26, %s27, %s28
      %p32 = pneg %p26
      %p33 = scmp.eq.s32.totalorder %s17, 1
      %p34 = por %p32, %p33
      %p35 = scmp.ne.s32.totalorder %s27, %s30
      %p36 = scmp.eq.s32.totalorder %s17, 0
      %p37 = por %p35, %p36
      %p38 = scmp.ne.s32.totalorder %s27, %s30
      %p39 = scmp.eq.s32.totalorder %s22, 1
      %p40 = por %p38, %p39
      %p41 = scmp.ne.s32.totalorder %s30, %s31
      %p42 = scmp.eq.s32.totalorder %s22, 0
      %p43 = por %p41, %p42
      %p44 = scmp.ne.s32.totalorder %s30, %s31
      %p45 = scmp.eq.s32.totalorder %s23, 1
      %p46 = por %p44, %p45
      %p48 = scmp.ne.s32.totalorder %s31, %s47
      %p49 = scmp.eq.s32.totalorder %s23, 0
      %p50 = por %p48, %p49
      %s52 = sadd.s32 %s51, 1
      %p55 = scmp.eq.s32.totalorder %s17, 1
      %p56 = scmp.ne.s32.totalorder %s51, %s53
      %p57 = scmp.eq.s32.totalorder %s17, 0
      %p58 = por %p56, %p57
      %p59 = scmp.ne.s32.totalorder %s51, %s53
      %p60 = scmp.eq.s32.totalorder %s22, 1
      %p61 = por %p59, %p60
      %p62 = scmp.ne.s32.totalorder %s53, %s54
      %p63 = scmp.eq.s32.totalorder %s22, 0
      %p64 = por %p62, %p63
      %p65 = scmp.ne.s32.totalorder %s53, %s54
      %p66 = scmp.eq.s32.totalorder %s23, 1
      %p67 = por %p65, %p66
      %p69 = scmp.ne.s32.totalorder %s54, %s68
      %p70 = scmp.eq.s32.totalorder %s23, 0
      %p71 = por %p69, %p70
      %s73 = sadd.s32 %s72, 1
      %p76 = scmp.eq.s32.totalorder %s17, 1
      %p77 = scmp.ne.s32.totalorder %s72, %s74
      %p78 = scmp.eq.s32.totalorder %s17, 0
      %p79 = por %p77, %p78
      %p80 = scmp.ne.s32.totalorder %s72, %s74
      %p81 = scmp.eq.s32.totalorder %s22, 1
      %p82 = por %p80, %p81
      %p83 = scmp.ne.s32.totalorder %s74, %s75
      %p84 = scmp.eq.s32.totalorder %s22, 0
      %p85 = por %p83, %p84
      %p86 = scmp.ne.s32.totalorder %s74, %s75
      %p87 = scmp.eq.s32.totalorder %s23, 1
      %p88 = por %p86, %p87
      %p90 = scmp.ne.s32.totalorder %s75, %s89
      %p91 = scmp.eq.s32.totalorder %s23, 0
      %p92 = por %p90, %p91
      %s94 = sadd.s32 %s93, 1
      %p97 = scmp.eq.s32.totalorder %s17, 1
      %p98 = scmp.ne.s32.totalorder %s93, %s95
      %p99 = scmp.eq.s32.totalorder %s17, 0
      %p100 = por %p98, %p99
      %p101 = scmp.ne.s32.totalorder %s93, %s95
      %p102 = scmp.eq.s32.totalorder %s22, 1
      %p103 = por %p101, %p102
      %p104 = scmp.ne.s32.totalorder %s95, %s96
      %p105 = scmp.eq.s32.totalorder %s22, 0
      %p106 = por %p104, %p105
      %p107 = scmp.ne.s32.totalorder %s95, %s96
      %p108 = scmp.eq.s32.totalorder %s23, 1
      %p109 = por %p107, %p108
      %p111 = scmp.ne.s32.totalorder %s96, %s110
      %p112 = scmp.eq.s32.totalorder %s23, 0
      %p113 = por %p111, %p112
      %s115 = sadd.s32 %s114, 1
      %p118 = scmp.eq.s32.totalorder %s17, 1
      %p119 = scmp.ne.s32.totalorder %s114, %s116
      %p120 = scmp.eq.s32.totalorder %s17, 0
      %p121 = por %p119, %p120
      %p122 = scmp.ne.s32.totalorder %s114, %s116
      %p123 = scmp.eq.s32.totalorder %s22, 1
      %p124 = por %p122, %p123
      %p125 = scmp.ne.s32.totalorder %s116, %s117
      %p126 = scmp.eq.s32.totalorder %s22, 0
      %p127 = por %p125, %p126
      %p128 = scmp.ne.s32.totalorder %s116, %s117
      %p129 = scmp.eq.s32.totalorder %s23, 1
      %p130 = por %p128, %p129
      %p132 = scmp.ne.s32.totalorder %s117, %s131
      %p133 = scmp.eq.s32.totalorder %s23, 0
      %p134 = por %p132, %p133
      %s136 = sadd.s32 %s135, 1
      %p139 = scmp.eq.s32.totalorder %s17, 1
      %p140 = scmp.ne.s32.totalorder %s135, %s137
      %p141 = scmp.eq.s32.totalorder %s17, 0
      %p142 = por %p140, %p141
      %p143 = scmp.ne.s32.totalorder %s135, %s137
      %p144 = scmp.eq.s32.totalorder %s22, 1
      %p145 = por %p143, %p144
      %p146 = scmp.ne.s32.totalorder %s137, %s138
      %p147 = scmp.eq.s32.totalorder %s22, 0
      %p148 = por %p146, %p147
      %p149 = scmp.ne.s32.totalorder %s137, %s138
      %p150 = scmp.eq.s32.totalorder %s23, 1
      %p151 = por %p149, %p150
      %p153 = scmp.ne.s32.totalorder %s138, %s152
      %p154 = scmp.eq.s32.totalorder %s23, 0
      %p155 = por %p153, %p154
      %s157 = sadd.s32 %s156, 1
      %p160 = scmp.eq.s32.totalorder %s17, 1
      %p161 = scmp.ne.s32.totalorder %s156, %s158
      %p162 = scmp.eq.s32.totalorder %s17, 0
      %p163 = por %p161, %p162
      %p164 = scmp.ne.s32.totalorder %s156, %s158
      %p165 = scmp.eq.s32.totalorder %s22, 1
      %p166 = por %p164, %p165
      %p167 = scmp.ne.s32.totalorder %s158, %s159
      %p168 = scmp.eq.s32.totalorder %s22, 0
      %p169 = por %p167, %p168
      %p170 = scmp.ne.s32.totalorder %s158, %s159
      %p171 = scmp.eq.s32.totalorder %s23, 1
      %p172 = por %p170, %p171
      %p174 = scmp.ne.s32.totalorder %s159, %s173
      %p175 = scmp.eq.s32.totalorder %s23, 0
      %p176 = por %p174, %p175
      %s177 = ssub.s32 %s17, %s24
      %p178 = scmp.eq.s32.totalorder %s177, 0
      %s180 = sadd.s32 %s179, 1
      %s181 = scalar_select %p178, %s179, %s180
      %p184 = pneg %p178
      %p185 = scmp.eq.s32.totalorder %s17, 1
      %p186 = por %p184, %p185
      %p187 = scmp.ne.s32.totalorder %s179, %s182
      %p188 = scmp.eq.s32.totalorder %s17, 0
      %p189 = por %p187, %p188
      %p190 = scmp.ne.s32.totalorder %s179, %s182
      %p191 = scmp.eq.s32.totalorder %s22, 1
      %p192 = por %p190, %p191
      %p193 = scmp.ne.s32.totalorder %s182, %s183
      %p194 = scmp.eq.s32.totalorder %s22, 0
      %p195 = por %p193, %p194
      %p196 = scmp.ne.s32.totalorder %s182, %s183
      %p197 = scmp.eq.s32.totalorder %s23, 1
      %p198 = por %p196, %p197
      %p200 = scmp.ne.s32.totalorder %s183, %s199
      %p201 = scmp.eq.s32.totalorder %s23, 0
      %p202 = por %p200, %p201
      %p203 = scmp.le.s32.totalorder 1, %s17
      %p204 = scmp.lt.s32.totalorder %s17, 3
      %p205 = pnand %p203, %p204
      %p206 = pneg %p205
      // Predicated region
      $region9: #{window_attention_forward.1} parent=5 // pred_check
        _
      $region10: #{window_attention_forward.1} parent=5 // pred_check_branch
        %208 = sbr.rel (%p205) target = $region12
      $region11: #{window_attention_forward.1} parent=5 // pred_region
        %s209 = ssub.s32 %s17, 1
        // Predicated region
        $region13: #{window_attention_forward.1} parent=11 // pred_check
          %p210 = pneg %p64
        $region14: #{window_attention_forward.1} parent=11 // pred_check_branch
          %212 = sbr.rel (%p210) target = $region16
        $region15: #{window_attention_forward.1} parent=11 // pred_region
          %s214 = ssub.s32 512, 512
          %215 = vsyncadd [#allocation3], %s214
          %s216 = sshll.u32 [#allocation2], 4
          %s217 = int_to_ptr.vmem [resolvable:$true] %s216
          %222 = dma.hbm_to_vmem [thread:$0]  %s1, 512, %s217, [#allocation3], 128, 128, 8
        $region16: #{window_attention_forward.1} parent=11 // pred_fallthru
          _
        // Predicated region
        $region17: #{window_attention_forward.1} parent=11 // pred_check
          %p223 = pneg %p85
        $region18: #{window_attention_forward.1} parent=11 // pred_check_branch
          %225 = sbr.rel (%p223) target = $region20
        $region19: #{window_attention_forward.1} parent=11 // pred_region
          _
        $region20: #{window_attention_forward.1} parent=11 // pred_fallthru
          _
        // Predicated region
        $region21: #{window_attention_forward.1} parent=11 // pred_check
          %p226 = pneg %p106
        $region22: #{window_attention_forward.1} parent=11 // pred_check_branch
          %228 = sbr.rel (%p226) target = $region24
        $region23: #{window_attention_forward.1} parent=11 // pred_region
          _
        $region24: #{window_attention_forward.1} parent=11 // pred_fallthru
          _
        // Predicated region
        $region25: #{window_attention_forward.1} parent=11 // pred_check
          %p229 = pneg %p127
        $region26: #{window_attention_forward.1} parent=11 // pred_check_branch
          %231 = sbr.rel (%p229) target = $region28
        $region27: #{window_attention_forward.1} parent=11 // pred_region
          _
        $region28: #{window_attention_forward.1} parent=11 // pred_fallthru
          _
        // Predicated region
        $region29: #{window_attention_forward.1} parent=11 // pred_check
          %p232 = pneg %p148
        $region30: #{window_attention_forward.1} parent=11 // pred_check_branch
          %234 = sbr.rel (%p232) target = $region32
        $region31: #{window_attention_forward.1} parent=11 // pred_region
          _
        $region32: #{window_attention_forward.1} parent=11 // pred_fallthru
          _
        // Predicated region
        $region33: #{window_attention_forward.1} parent=11 // pred_check
          %p235 = pneg %p169
        $region34: #{window_attention_forward.1} parent=11 // pred_check_branch
          %237 = sbr.rel (%p235) target = $region36
        $region35: #{window_attention_forward.1} parent=11 // pred_region
          _
        $region36: #{window_attention_forward.1} parent=11 // pred_fallthru
          _
      $region12: #{window_attention_forward.1} parent=5 // pred_fallthru
        _
      %p238 = scmp.lt.s32.totalorder %s17, 2
      // Predicated region
      $region37: #{window_attention_forward.1} parent=5 // pred_check
        %p239 = pneg %p238
      $region38: #{window_attention_forward.1} parent=5 // pred_check_branch
        %241 = sbr.rel (%p239) target = $region40
      $region39: #{window_attention_forward.1} parent=5 // pred_region
        // Predicated region
        $region41: #{window_attention_forward.1} parent=39 // pred_check
          %p242 = pneg %p37
        $region42: #{window_attention_forward.1} parent=39 // pred_check_branch
          %244 = sbr.rel (%p242) target = $region44
        $region43: #{window_attention_forward.1} parent=39 // pred_region
          %p245 = scmp.lt.s32.totalorder %s17, 1
          %s246 = scalar_select %p245, %s17, 1
          %s247 = smul.addr %s246, 4
          %s248 = smul.addr %s247, 8
          %s249 = scalar_lea.vmem %s0, %s248
        $region44: #{window_attention_forward.1} parent=39 // pred_fallthru
          _
      $region40: #{window_attention_forward.1} parent=5 // pred_fallthru
        _
      %p250 = scmp.le.s32.totalorder 1, %s17
      %p251 = scmp.lt.s32.totalorder %s17, 3
      %p252 = pnand %p250, %p251
      %p253 = pneg %p252
      // Predicated region
      $region45: #{window_attention_forward.1} parent=5 // pred_check
        _
      $region46: #{window_attention_forward.1} parent=5 // pred_check_branch
        %255 = sbr.rel (%p252) target = $region48
      $region47: #{window_attention_forward.1} parent=5 // pred_region
        %s256 = ssub.s32 %s17, 1
        // Predicated region
        $region49: #{window_attention_forward.1} parent=47 // pred_check
          %p257 = pneg %p64
        $region50: #{window_attention_forward.1} parent=47 // pred_check_branch
          %259 = sbr.rel (%p257) target = $region52
        $region51: #{window_attention_forward.1} parent=47 // pred_region
          %260 = dma.done [#allocation3], 512
        $region52: #{window_attention_forward.1} parent=47 // pred_fallthru
          _
        %p261 = scmp.lt.s32.totalorder %s22, 1
        %s262 = scalar_select %p261, %s22, 1
        %s263 = smul.addr %s262, 4
        %s264 = smul.addr %s263, 8
        %s265 = scalar_lea.vmem %s0, %s264
        %p266 = pneg %p43
        %p267 = pneg %p40
        %p268 = pneg %p64
        %p269 = pneg %p61
        %p270 = pneg %p85
        %p271 = pneg %p82
        %p272 = pneg %p106
        %p273 = pneg %p103
        %p274 = pneg %p127
        %p275 = pneg %p124
        %p276 = pneg %p148
        %p277 = pneg %p145
        %p278 = pneg %p169
        %p279 = pneg %p166
        %p280 = pneg %p195
        %p281 = pneg %p192
        %s282 = sand.u32 %s182, 1
        %s283 = scalar_lea.sflag [#allocation4], %s282
        %s284 = sand.u32 %s182, 1
        %s285 = smul.addr %s284, 32
        %s286 = scalar_lea.vmem [#allocation5], %s285
        %p287 = scmp.lt.s32.totalorder %s22, 1
        %s288 = scalar_select %p287, %s22, 1
        %s289 = smul.addr %s288, 4
        %s290 = smul.addr %s289, 8
        %s291 = scalar_lea.vmem %s0, %s290
        %v293 = vld [vmem:[%s291] sm:$0xff]
        %v294 = vld [vmem:[%s291 + $0x8] sm:$0xff]
        %v295 = vld [vmem:[%s291 + $0x10] sm:$0xff]
        %v296 = vld [vmem:[%s291 + $0x18] sm:$0xff]
        %v297 = vld [vmem:[%s3] sm:$0xf]
        %v298 = vld [vmem:[%s3 + $0x4] sm:$0xf]
        %v299 = vld [vmem:[%s3 + $0x8] sm:$0xf]
        %v300 = vld [vmem:[%s3 + $0xc] sm:$0xf]
        %v301 = vpack.c.bf16 %v294, %v293
        %v302 = vpack.c.bf16 %v296, %v295
        %v307 = vunpack.c.l.b16 %v297
        %v308 = vunpack.c.l.b16 %v298
        %v309 = vunpack.c.l.b16 %v299
        %v310 = vunpack.c.l.b16 %v300
        %v311 = vpack.c.b16 %v308, %v307
        %v312 = vpack.c.b16 %v310, %v309
        %vm315 = vcmask 261120
        %v317 = vsel %vm315, %v301, 0
        %v320 = vsel %vm315, %v302, 0
        %322 = vmatprep.subr.bf16.mxu0 0
        %323 = vmatpush1.bf16.msra.mxu0 0
        %324 = vmatprep.subr.bf16.mxu0 0
        %325 = vmatpush1.bf16.msra.mxu0 0
        %326 = vmatprep.subr.bf16.mxu0 0
        %327 = vmatpush1.bf16.msra.mxu0 0
        %328 = vmatprep.subr.bf16.mxu0 0
        %329 = vmatpush1.bf16.msra.mxu0 0
        %330 = vmatprep.subr.bf16.mxu0 0
        %331 = vmatpush1.bf16.msra.mxu0 0
        %332 = vmatprep.subr.bf16.mxu0 0
        %333 = vmatpush1.bf16.msra.mxu0 0
        %334 = vmatprep.subr.bf16.mxu0 0
        %335 = vmatpush1.bf16.msra.mxu0 %v312
        %336 = vmatprep.subr.bf16.mxu0 0
        %337 = vmatpush1.bf16.msra.mxu0 %v311
        %338 = vmatprep.subr.bf16.mxu0 0
        %339 = vmatpush2.bf16.msra.mxu0 0
        %340 = vmatprep.subr.bf16.mxu0 0
        %341 = vmatpush2.bf16.msra.mxu0 0
        %342 = vmatprep.subr.bf16.mxu0 0
        %343 = vmatpush2.bf16.msra.mxu0 0
        %344 = vmatprep.subr.bf16.mxu0 0
        %345 = vmatpush2.bf16.msra.mxu0 0
        %346 = vmatprep.subr.bf16.mxu0 0
        %347 = vmatpush2.bf16.msra.mxu0 0
        %348 = vmatprep.subr.bf16.mxu0 0
        %349 = vmatpush2.bf16.msra.mxu0 0
        %350 = vmatprep.subr.bf16.mxu0 0
        %351 = vmatpush2.bf16.msra.mxu0 0
        %352 = vmatprep.subr.bf16.mxu0 0
        %353 = vmatpush2.bf16.msra.mxu0 0
        %354 = vmatprep.mubr.bf16.mxu0 0
        %355 = vmatmul.mubr.bf16.gmra.mxu0 %v317
        %v356 = vpop.f32.mrf.mxu0
        %v357 = vadd.f32 0.0, %v356
        %v358 = vpop.f32.mrf.mxu0
        %v359 = vpop.f32.mrf.mxu0
        %v360 = vadd.f32 0.0, %v359
        %v361 = vpop.f32.mrf.mxu0
        %362 = vmatprep.mubr.bf16.mxu0 0
        %363 = vmatmul.mubr.bf16.gmra.mxu0 %v320
        %v364 = vpop.f32.mrf.mxu0
        %v365 = vadd.f32 0.0, %v364
        %v366 = vpop.f32.mrf.mxu0
        %v367 = vpop.f32.mrf.mxu0
        %v368 = vadd.f32 0.0, %v367
        %v369 = vpop.f32.mrf.mxu0
        %370 = vdwg.mxu0
        %v371 = vld [vmem:[%s2] sm:$0xff]
        %v372 = vld [vmem:[%s2 + $0x8] sm:$0xff]
        %v373 = vld [vmem:[%s2 + $0x10] sm:$0xff]
        %v374 = vld [vmem:[%s2 + $0x18] sm:$0xff]
        %v375 = vpack.c.bf16 %v360, %v357
        %v376 = vpack.c.bf16 %v368, %v365
        %379 = vrot.lane.b32.xlu0 %v375, 96
        %v380 = vpop.permute.xlu0 %379
        %381 = vrot.lane.b32.xlu0 %v376, 96
        %v382 = vpop.permute.xlu0 %381
        %vm383 = vcmask 64512
        %v385 = vsel %vm383, %v375, 0
        %v388 = vsel %vm383, %v376, 0
        %v391 = vsel %vm383, %v380, 0
        %v394 = vsel %vm383, %v382, 0
        %396 = vmatprep.subr.bf16.mxu0 0
        %397 = vmatpush1.bf16.xpose.msra.mxu0 0
        %398 = vmatprep.subr.bf16.mxu0 0
        %399 = vmatpush1.bf16.xpose.msra.mxu0 0
        %400 = vmatprep.subr.bf16.mxu0 0
        %401 = vmatpush1.bf16.xpose.msra.mxu0 0
        %402 = vmatprep.subr.bf16.mxu0 0
        %403 = vmatpush1.bf16.xpose.msra.mxu0 0
        %404 = vmatprep.subr.bf16.mxu0 0
        %405 = vmatpush1.bf16.xpose.msra.mxu0 0
        %406 = vmatprep.subr.bf16.mxu0 0
        %407 = vmatpush1.bf16.xpose.msra.mxu0 0
        %408 = vmatprep.subr.bf16.mxu0 0
        %409 = vmatpush1.bf16.xpose.msra.mxu0 %v394
        %410 = vmatprep.subr.bf16.mxu0 0
        %411 = vmatpush1.bf16.xpose.msra.mxu0 %v391
        %412 = vmatprep.subr.bf16.mxu0 0
        %413 = vmatpush2.bf16.xpose.msra.mxu0 0
        %414 = vmatprep.subr.bf16.mxu0 0
        %415 = vmatpush2.bf16.xpose.msra.mxu0 0
        %416 = vmatprep.subr.bf16.mxu0 0
        %417 = vmatpush2.bf16.xpose.msra.mxu0 0
        %418 = vmatprep.subr.bf16.mxu0 0
        %419 = vmatpush2.bf16.xpose.msra.mxu0 0
        %420 = vmatprep.subr.bf16.mxu0 0
        %421 = vmatpush2.bf16.xpose.msra.mxu0 0
        %422 = vmatprep.subr.bf16.mxu0 0
        %423 = vmatpush2.bf16.xpose.msra.mxu0 0
        %424 = vmatprep.subr.bf16.mxu0 0
        %425 = vmatpush2.bf16.xpose.msra.mxu0 0
        %426 = vmatprep.subr.bf16.mxu0 0
        %427 = vmatpush2.bf16.xpose.msra.mxu0 0
        %428 = vmatprep.mubr.bf16.mxu0 0
        %429 = vmatmul.mubr.bf16.gmra.mxu0 %v385
        %v430 = vpop.f32.mrf.mxu0
        %v431 = vadd.f32 0.0, %v430
        %v432 = vpop.f32.mrf.mxu0
        %v433 = vpop.f32.mrf.mxu0
        %v434 = vadd.f32 0.0, %v433
        %v435 = vpop.f32.mrf.mxu0
        %436 = vmatprep.mubr.bf16.mxu0 0
        %437 = vmatmul.mubr.bf16.gmra.mxu0 %v388
        %v438 = vpop.f32.mrf.mxu0
        %v439 = vadd.f32 0.0, %v438
        %v440 = vpop.f32.mrf.mxu0
        %v441 = vpop.f32.mrf.mxu0
        %v442 = vadd.f32 0.0, %v441
        %v443 = vpop.f32.mrf.mxu0
        %444 = vdwg.mxu0
        %v445 = vmul.f32 %v431, 0.35355338
        %v446 = vmul.f32 %v434, 0.35355338
        %v447 = vmul.f32 %v439, 0.35355338
        %v448 = vmul.f32 %v442, 0.35355338
        %v449 = vadd.f32 %v445, %v371
        %v450 = vadd.f32 %v446, %v372
        %v451 = vadd.f32 %v447, %v373
        %v452 = vadd.f32 %v448, %v374
        %v453 = vsel %vm315, %v449, -inf
        %454 = vmax.xlane.f32.xlu0 %v453
        %v455 = vpop.xlane.xlu0 %454
        %v456 = vsel %vm315, %v450, -inf
        %457 = vmax.xlane.f32.xlu0 %v456
        %v458 = vpop.xlane.xlu0 %457
        %v459 = vsel %vm315, %v451, -inf
        %460 = vmax.xlane.f32.xlu0 %v459
        %v461 = vpop.xlane.xlu0 %460
        %v462 = vsel %vm315, %v452, -inf
        %463 = vmax.xlane.f32.xlu0 %v462
        %v464 = vpop.xlane.xlu0 %463
        %v465 = vsub.f32 %v449, %v455
        %v466 = vsub.f32 %v450, %v458
        %v467 = vsub.f32 %v451, %v461
        %v468 = vsub.f32 %v452, %v464
        %v469 = vmul.f32 %v465, 1.442695
        %v470 = vpow.pop %v469
        %v471 = vmul.f32 %v466, 1.442695
        %v472 = vpow.pop %v471
        %v473 = vmul.f32 %v467, 1.442695
        %v474 = vpow.pop %v473
        %v475 = vmul.f32 %v468, 1.442695
        %v476 = vpow.pop %v475
        %v477 = vsel %vm315, %v470, 0.0
        %478 = vadd.xlane.f32.xlu0 %v477
        %v479 = vpop.xlane.xlu0 %478
        %v480 = vsel %vm315, %v472, 0.0
        %481 = vadd.xlane.f32.xlu0 %v480
        %v482 = vpop.xlane.xlu0 %481
        %v483 = vsel %vm315, %v474, 0.0
        %484 = vadd.xlane.f32.xlu0 %v483
        %v485 = vpop.xlane.xlu0 %484
        %v486 = vsel %vm315, %v476, 0.0
        %487 = vadd.xlane.f32.xlu0 %v486
        %v488 = vpop.xlane.xlu0 %487
        %v489 = vrcp.pop %v479
        %v490 = vrcp.pop %v482
        %v491 = vrcp.pop %v485
        %v492 = vrcp.pop %v488
        %v493 = vmul.f32 %v470, %v489
        %v494 = vmul.f32 %v472, %v490
        %v495 = vmul.f32 %v474, %v491
        %v496 = vmul.f32 %v476, %v492
        %v497 = vpack.c.bf16 %v494, %v493
        %v498 = vpack.c.bf16 %v496, %v495
        %499 = vrot.lane.b32.xlu0 %v375, 64
        %v500 = vpop.permute.xlu0 %499
        %501 = vrot.lane.b32.xlu0 %v376, 64
        %v502 = vpop.permute.xlu0 %501
        %v506 = vsel %vm315, %v497, 0
        %v509 = vsel %vm315, %v498, 0
        %511 = vmatprep.subr.bf16.mxu0 0
        %512 = vmatpush1.bf16.msra.mxu0 0
        %513 = vmatprep.subr.bf16.mxu0 0
        %514 = vmatpush1.bf16.msra.mxu0 0
        %515 = vmatprep.subr.bf16.mxu0 0
        %516 = vmatpush1.bf16.msra.mxu0 0
        %517 = vmatprep.subr.bf16.mxu0 0
        %518 = vmatpush1.bf16.msra.mxu0 0
        %519 = vmatprep.subr.bf16.mxu0 0
        %520 = vmatpush1.bf16.msra.mxu0 0
        %521 = vmatprep.subr.bf16.mxu0 0
        %522 = vmatpush1.bf16.msra.mxu0 0
        %523 = vmatprep.subr.bf16.mxu0 0
        %524 = vmatpush1.bf16.msra.mxu0 %v502
        %525 = vmatprep.subr.bf16.mxu0 0
        %526 = vmatpush1.bf16.msra.mxu0 %v500
        %527 = vmatprep.subr.bf16.mxu0 0
        %528 = vmatpush2.bf16.msra.mxu0 0
        %529 = vmatprep.subr.bf16.mxu0 0
        %530 = vmatpush2.bf16.msra.mxu0 0
        %531 = vmatprep.subr.bf16.mxu0 0
        %532 = vmatpush2.bf16.msra.mxu0 0
        %533 = vmatprep.subr.bf16.mxu0 0
        %534 = vmatpush2.bf16.msra.mxu0 0
        %535 = vmatprep.subr.bf16.mxu0 0
        %536 = vmatpush2.bf16.msra.mxu0 0
        %537 = vmatprep.subr.bf16.mxu0 0
        %538 = vmatpush2.bf16.msra.mxu0 0
        %539 = vmatprep.subr.bf16.mxu0 0
        %540 = vmatpush2.bf16.msra.mxu0 0
        %541 = vmatprep.subr.bf16.mxu0 0
        %542 = vmatpush2.bf16.msra.mxu0 0
        %543 = vmatprep.mubr.bf16.mxu0 0
        %544 = vmatmul.mubr.bf16.gmra.mxu0 %v506
        %v545 = vpop.f32.mrf.mxu0
        %v546 = vadd.f32 0.0, %v545
        %v547 = vpop.f32.mrf.mxu0
        %v548 = vpop.f32.mrf.mxu0
        %v549 = vadd.f32 0.0, %v548
        %v550 = vpop.f32.mrf.mxu0
        %551 = vmatprep.mubr.bf16.mxu0 0
        %552 = vmatmul.mubr.bf16.gmra.mxu0 %v509
        %v553 = vpop.f32.mrf.mxu0
        %v554 = vadd.f32 0.0, %v553
        %v555 = vpop.f32.mrf.mxu0
        %v556 = vpop.f32.mrf.mxu0
        %v557 = vadd.f32 0.0, %v556
        %v558 = vpop.f32.mrf.mxu0
        %559 = vdwg.mxu0
        %s560 = scalar_lea.vmem %s2, 32
        %v561 = vld [vmem:[%s560] sm:$0xff]
        %v562 = vld [vmem:[%s560 + $0x8] sm:$0xff]
        %v563 = vld [vmem:[%s560 + $0x10] sm:$0xff]
        %v564 = vld [vmem:[%s560 + $0x18] sm:$0xff]
        %565 = vrot.lane.b32.xlu0 %v375, 120
        %v566 = vpop.permute.xlu0 %565
        %567 = vrot.lane.b32.xlu0 %v376, 120
        %v568 = vpop.permute.xlu0 %567
        %569 = vrot.lane.b32.xlu0 %v375, 88
        %v570 = vpop.permute.xlu0 %569
        %571 = vrot.lane.b32.xlu0 %v376, 88
        %v572 = vpop.permute.xlu0 %571
        %v574 = vsel %vm383, %v566, 0
        %v577 = vsel %vm383, %v568, 0
        %v580 = vsel %vm383, %v570, 0
        %v583 = vsel %vm383, %v572, 0
        %585 = vmatprep.subr.bf16.mxu0 0
        %586 = vmatpush1.bf16.xpose.msra.mxu0 0
        %587 = vmatprep.subr.bf16.mxu0 0
        %588 = vmatpush1.bf16.xpose.msra.mxu0 0
        %589 = vmatprep.subr.bf16.mxu0 0
        %590 = vmatpush1.bf16.xpose.msra.mxu0 0
        %591 = vmatprep.subr.bf16.mxu0 0
        %592 = vmatpush1.bf16.xpose.msra.mxu0 0
        %593 = vmatprep.subr.bf16.mxu0 0
        %594 = vmatpush1.bf16.xpose.msra.mxu0 0
        %595 = vmatprep.subr.bf16.mxu0 0
        %596 = vmatpush1.bf16.xpose.msra.mxu0 0
        %597 = vmatprep.subr.bf16.mxu0 0
        %598 = vmatpush1.bf16.xpose.msra.mxu0 %v583
        %599 = vmatprep.subr.bf16.mxu0 0
        %600 = vmatpush1.bf16.xpose.msra.mxu0 %v580
        %601 = vmatprep.subr.bf16.mxu0 0
        %602 = vmatpush2.bf16.xpose.msra.mxu0 0
        %603 = vmatprep.subr.bf16.mxu0 0
        %604 = vmatpush2.bf16.xpose.msra.mxu0 0
        %605 = vmatprep.subr.bf16.mxu0 0
        %606 = vmatpush2.bf16.xpose.msra.mxu0 0
        %607 = vmatprep.subr.bf16.mxu0 0
        %608 = vmatpush2.bf16.xpose.msra.mxu0 0
        %609 = vmatprep.subr.bf16.mxu0 0
        %610 = vmatpush2.bf16.xpose.msra.mxu0 0
        %611 = vmatprep.subr.bf16.mxu0 0
        %612 = vmatpush2.bf16.xpose.msra.mxu0 0
        %613 = vmatprep.subr.bf16.mxu0 0
        %614 = vmatpush2.bf16.xpose.msra.mxu0 0
        %615 = vmatprep.subr.bf16.mxu0 0
        %616 = vmatpush2.bf16.xpose.msra.mxu0 0
        %617 = vmatprep.mubr.bf16.mxu0 0
        %618 = vmatmul.mubr.bf16.gmra.mxu0 %v574
        %v619 = vpop.f32.mrf.mxu0
        %v620 = vadd.f32 0.0, %v619
        %v621 = vpop.f32.mrf.mxu0
        %v622 = vpop.f32.mrf.mxu0
        %v623 = vadd.f32 0.0, %v622
        %v624 = vpop.f32.mrf.mxu0
        %625 = vmatprep.mubr.bf16.mxu0 0
        %626 = vmatmul.mubr.bf16.gmra.mxu0 %v577
        %v627 = vpop.f32.mrf.mxu0
        %v628 = vadd.f32 0.0, %v627
        %v629 = vpop.f32.mrf.mxu0
        %v630 = vpop.f32.mrf.mxu0
        %v631 = vadd.f32 0.0, %v630
        %v632 = vpop.f32.mrf.mxu0
        %633 = vdwg.mxu0
        %v634 = vmul.f32 %v620, 0.35355338
        %v635 = vmul.f32 %v623, 0.35355338
        %v636 = vmul.f32 %v628, 0.35355338
        %v637 = vmul.f32 %v631, 0.35355338
        %v638 = vadd.f32 %v634, %v561
        %v639 = vadd.f32 %v635, %v562
        %v640 = vadd.f32 %v636, %v563
        %v641 = vadd.f32 %v637, %v564
        %v642 = vsel %vm315, %v638, -inf
        %643 = vmax.xlane.f32.xlu0 %v642
        %v644 = vpop.xlane.xlu0 %643
        %v645 = vsel %vm315, %v639, -inf
        %646 = vmax.xlane.f32.xlu0 %v645
        %v647 = vpop.xlane.xlu0 %646
        %v648 = vsel %vm315, %v640, -inf
        %649 = vmax.xlane.f32.xlu0 %v648
        %v650 = vpop.xlane.xlu0 %649
        %v651 = vsel %vm315, %v641, -inf
        %652 = vmax.xlane.f32.xlu0 %v651
        %v653 = vpop.xlane.xlu0 %652
        %v654 = vsub.f32 %v638, %v644
        %v655 = vsub.f32 %v639, %v647
        %v656 = vsub.f32 %v640, %v650
        %v657 = vsub.f32 %v641, %v653
        %v658 = vmul.f32 %v654, 1.442695
        %v659 = vpow.pop %v658
        %v660 = vmul.f32 %v655, 1.442695
        %v661 = vpow.pop %v660
        %v662 = vmul.f32 %v656, 1.442695
        %v663 = vpow.pop %v662
        %v664 = vmul.f32 %v657, 1.442695
        %v665 = vpow.pop %v664
        %v666 = vsel %vm315, %v659, 0.0
        %667 = vadd.xlane.f32.xlu0 %v666
        %v668 = vpop.xlane.xlu0 %667
        %v669 = vsel %vm315, %v661, 0.0
        %670 = vadd.xlane.f32.xlu0 %v669
        %v671 = vpop.xlane.xlu0 %670
        %v672 = vsel %vm315, %v663, 0.0
        %673 = vadd.xlane.f32.xlu0 %v672
        %v674 = vpop.xlane.xlu0 %673
        %v675 = vsel %vm315, %v665, 0.0
        %676 = vadd.xlane.f32.xlu0 %v675
        %v677 = vpop.xlane.xlu0 %676
        %v678 = vrcp.pop %v668
        %v679 = vrcp.pop %v671
        %v680 = vrcp.pop %v674
        %v681 = vrcp.pop %v677
        %v682 = vmul.f32 %v659, %v678
        %v683 = vmul.f32 %v661, %v679
        %v684 = vmul.f32 %v663, %v680
        %v685 = vmul.f32 %v665, %v681
        %v686 = vpack.c.bf16 %v683, %v682
        %v687 = vpack.c.bf16 %v685, %v684
        %688 = vrot.lane.b32.xlu0 %v375, 56
        %v689 = vpop.permute.xlu0 %688
        %690 = vrot.lane.b32.xlu0 %v376, 56
        %v691 = vpop.permute.xlu0 %690
        %v695 = vsel %vm315, %v686, 0
        %v698 = vsel %vm315, %v687, 0
        %700 = vmatprep.subr.bf16.mxu0 0
        %701 = vmatpush1.bf16.msra.mxu0 0
        %702 = vmatprep.subr.bf16.mxu0 0
        %703 = vmatpush1.bf16.msra.mxu0 0
        %704 = vmatprep.subr.bf16.mxu0 0
        %705 = vmatpush1.bf16.msra.mxu0 0
        %706 = vmatprep.subr.bf16.mxu0 0
        %707 = vmatpush1.bf16.msra.mxu0 0
        %708 = vmatprep.subr.bf16.mxu0 0
        %709 = vmatpush1.bf16.msra.mxu0 0
        %710 = vmatprep.subr.bf16.mxu0 0
        %711 = vmatpush1.bf16.msra.mxu0 0
        %712 = vmatprep.subr.bf16.mxu0 0
        %713 = vmatpush1.bf16.msra.mxu0 %v691
        %714 = vmatprep.subr.bf16.mxu0 0
        %715 = vmatpush1.bf16.msra.mxu0 %v689
        %716 = vmatprep.subr.bf16.mxu0 0
        %717 = vmatpush2.bf16.msra.mxu0 0
        %718 = vmatprep.subr.bf16.mxu0 0
        %719 = vmatpush2.bf16.msra.mxu0 0
        %720 = vmatprep.subr.bf16.mxu0 0
        %721 = vmatpush2.bf16.msra.mxu0 0
        %722 = vmatprep.subr.bf16.mxu0 0
        %723 = vmatpush2.bf16.msra.mxu0 0
        %724 = vmatprep.subr.bf16.mxu0 0
        %725 = vmatpush2.bf16.msra.mxu0 0
        %726 = vmatprep.subr.bf16.mxu0 0
        %727 = vmatpush2.bf16.msra.mxu0 0
        %728 = vmatprep.subr.bf16.mxu0 0
        %729 = vmatpush2.bf16.msra.mxu0 0
        %730 = vmatprep.subr.bf16.mxu0 0
        %731 = vmatpush2.bf16.msra.mxu0 0
        %732 = vmatprep.mubr.bf16.mxu0 0
        %733 = vmatmul.mubr.bf16.gmra.mxu0 %v695
        %v734 = vpop.f32.mrf.mxu0
        %v735 = vadd.f32 0.0, %v734
        %v736 = vpop.f32.mrf.mxu0
        %v737 = vpop.f32.mrf.mxu0
        %v738 = vadd.f32 0.0, %v737
        %v739 = vpop.f32.mrf.mxu0
        %740 = vmatprep.mubr.bf16.mxu0 0
        %741 = vmatmul.mubr.bf16.gmra.mxu0 %v698
        %v742 = vpop.f32.mrf.mxu0
        %v743 = vadd.f32 0.0, %v742
        %v744 = vpop.f32.mrf.mxu0
        %v745 = vpop.f32.mrf.mxu0
        %v746 = vadd.f32 0.0, %v745
        %v747 = vpop.f32.mrf.mxu0
        %748 = vdwg.mxu0
        %s749 = scalar_lea.vmem %s2, 64
        %v750 = vld [vmem:[%s749] sm:$0xff]
        %v751 = vld [vmem:[%s749 + $0x8] sm:$0xff]
        %v752 = vld [vmem:[%s749 + $0x10] sm:$0xff]
        %v753 = vld [vmem:[%s749 + $0x18] sm:$0xff]
        %754 = vrot.lane.b32.xlu0 %v375, 112
        %v755 = vpop.permute.xlu0 %754
        %756 = vrot.lane.b32.xlu0 %v376, 112
        %v757 = vpop.permute.xlu0 %756
        %758 = vrot.lane.b32.xlu0 %v375, 80
        %v759 = vpop.permute.xlu0 %758
        %760 = vrot.lane.b32.xlu0 %v376, 80
        %v761 = vpop.permute.xlu0 %760
        %v763 = vsel %vm383, %v755, 0
        %v766 = vsel %vm383, %v757, 0
        %v769 = vsel %vm383, %v759, 0
        %v772 = vsel %vm383, %v761, 0
        %774 = vmatprep.subr.bf16.mxu0 0
        %775 = vmatpush1.bf16.xpose.msra.mxu0 0
        %776 = vmatprep.subr.bf16.mxu0 0
        %777 = vmatpush1.bf16.xpose.msra.mxu0 0
        %778 = vmatprep.subr.bf16.mxu0 0
        %779 = vmatpush1.bf16.xpose.msra.mxu0 0
        %780 = vmatprep.subr.bf16.mxu0 0
        %781 = vmatpush1.bf16.xpose.msra.mxu0 0
        %782 = vmatprep.subr.bf16.mxu0 0
        %783 = vmatpush1.bf16.xpose.msra.mxu0 0
        %784 = vmatprep.subr.bf16.mxu0 0
        %785 = vmatpush1.bf16.xpose.msra.mxu0 0
        %786 = vmatprep.subr.bf16.mxu0 0
        %787 = vmatpush1.bf16.xpose.msra.mxu0 %v772
        %788 = vmatprep.subr.bf16.mxu0 0
        %789 = vmatpush1.bf16.xpose.msra.mxu0 %v769
        %790 = vmatprep.subr.bf16.mxu0 0
        %791 = vmatpush2.bf16.xpose.msra.mxu0 0
        %792 = vmatprep.subr.bf16.mxu0 0
        %793 = vmatpush2.bf16.xpose.msra.mxu0 0
        %794 = vmatprep.subr.bf16.mxu0 0
        %795 = vmatpush2.bf16.xpose.msra.mxu0 0
        %796 = vmatprep.subr.bf16.mxu0 0
        %797 = vmatpush2.bf16.xpose.msra.mxu0 0
        %798 = vmatprep.subr.bf16.mxu0 0
        %799 = vmatpush2.bf16.xpose.msra.mxu0 0
        %800 = vmatprep.subr.bf16.mxu0 0
        %801 = vmatpush2.bf16.xpose.msra.mxu0 0
        %802 = vmatprep.subr.bf16.mxu0 0
        %803 = vmatpush2.bf16.xpose.msra.mxu0 0
        %804 = vmatprep.subr.bf16.mxu0 0
        %805 = vmatpush2.bf16.xpose.msra.mxu0 0
        %806 = vmatprep.mubr.bf16.mxu0 0
        %807 = vmatmul.mubr.bf16.gmra.mxu0 %v763
        %v808 = vpop.f32.mrf.mxu0
        %v809 = vadd.f32 0.0, %v808
        %v810 = vpop.f32.mrf.mxu0
        %v811 = vpop.f32.mrf.mxu0
        %v812 = vadd.f32 0.0, %v811
        %v813 = vpop.f32.mrf.mxu0
        %814 = vmatprep.mubr.bf16.mxu0 0
        %815 = vmatmul.mubr.bf16.gmra.mxu0 %v766
        %v816 = vpop.f32.mrf.mxu0
        %v817 = vadd.f32 0.0, %v816
        %v818 = vpop.f32.mrf.mxu0
        %v819 = vpop.f32.mrf.mxu0
        %v820 = vadd.f32 0.0, %v819
        %v821 = vpop.f32.mrf.mxu0
        %822 = vdwg.mxu0
        %v823 = vmul.f32 %v809, 0.35355338
        %v824 = vmul.f32 %v812, 0.35355338
        %v825 = vmul.f32 %v817, 0.35355338
        %v826 = vmul.f32 %v820, 0.35355338
        %v827 = vadd.f32 %v823, %v750
        %v828 = vadd.f32 %v824, %v751
        %v829 = vadd.f32 %v825, %v752
        %v830 = vadd.f32 %v826, %v753
        %v831 = vsel %vm315, %v827, -inf
        %832 = vmax.xlane.f32.xlu0 %v831
        %v833 = vpop.xlane.xlu0 %832
        %v834 = vsel %vm315, %v828, -inf
        %835 = vmax.xlane.f32.xlu0 %v834
        %v836 = vpop.xlane.xlu0 %835
        %v837 = vsel %vm315, %v829, -inf
        %838 = vmax.xlane.f32.xlu0 %v837
        %v839 = vpop.xlane.xlu0 %838
        %v840 = vsel %vm315, %v830, -inf
        %841 = vmax.xlane.f32.xlu0 %v840
        %v842 = vpop.xlane.xlu0 %841
        %v843 = vsub.f32 %v827, %v833
        %v844 = vsub.f32 %v828, %v836
        %v845 = vsub.f32 %v829, %v839
        %v846 = vsub.f32 %v830, %v842
        %v847 = vmul.f32 %v843, 1.442695
        %v848 = vpow.pop %v847
        %v849 = vmul.f32 %v844, 1.442695
        %v850 = vpow.pop %v849
        %v851 = vmul.f32 %v845, 1.442695
        %v852 = vpow.pop %v851
        %v853 = vmul.f32 %v846, 1.442695
        %v854 = vpow.pop %v853
        %v855 = vsel %vm315, %v848, 0.0
        %856 = vadd.xlane.f32.xlu0 %v855
        %v857 = vpop.xlane.xlu0 %856
        %v858 = vsel %vm315, %v850, 0.0
        %859 = vadd.xlane.f32.xlu0 %v858
        %v860 = vpop.xlane.xlu0 %859
        %v861 = vsel %vm315, %v852, 0.0
        %862 = vadd.xlane.f32.xlu0 %v861
        %v863 = vpop.xlane.xlu0 %862
        %v864 = vsel %vm315, %v854, 0.0
        %865 = vadd.xlane.f32.xlu0 %v864
        %v866 = vpop.xlane.xlu0 %865
        %v867 = vrcp.pop %v857
        %v868 = vrcp.pop %v860
        %v869 = vrcp.pop %v863
        %v870 = vrcp.pop %v866
        %v871 = vmul.f32 %v848, %v867
        %v872 = vmul.f32 %v850, %v868
        %v873 = vmul.f32 %v852, %v869
        %v874 = vmul.f32 %v854, %v870
        %v875 = vpack.c.bf16 %v872, %v871
        %v876 = vpack.c.bf16 %v874, %v873
        %877 = vrot.lane.b32.xlu0 %v375, 48
        %v878 = vpop.permute.xlu0 %877
        %879 = vrot.lane.b32.xlu0 %v376, 48
        %v880 = vpop.permute.xlu0 %879
        %v884 = vsel %vm315, %v875, 0
        %v887 = vsel %vm315, %v876, 0
        %889 = vmatprep.subr.bf16.mxu0 0
        %890 = vmatpush1.bf16.msra.mxu0 0
        %891 = vmatprep.subr.bf16.mxu0 0
        %892 = vmatpush1.bf16.msra.mxu0 0
        %893 = vmatprep.subr.bf16.mxu0 0
        %894 = vmatpush1.bf16.msra.mxu0 0
        %895 = vmatprep.subr.bf16.mxu0 0
        %896 = vmatpush1.bf16.msra.mxu0 0
        %897 = vmatprep.subr.bf16.mxu0 0
        %898 = vmatpush1.bf16.msra.mxu0 0
        %899 = vmatprep.subr.bf16.mxu0 0
        %900 = vmatpush1.bf16.msra.mxu0 0
        %901 = vmatprep.subr.bf16.mxu0 0
        %902 = vmatpush1.bf16.msra.mxu0 %v880
        %903 = vmatprep.subr.bf16.mxu0 0
        %904 = vmatpush1.bf16.msra.mxu0 %v878
        %905 = vmatprep.subr.bf16.mxu0 0
        %906 = vmatpush2.bf16.msra.mxu0 0
        %907 = vmatprep.subr.bf16.mxu0 0
        %908 = vmatpush2.bf16.msra.mxu0 0
        %909 = vmatprep.subr.bf16.mxu0 0
        %910 = vmatpush2.bf16.msra.mxu0 0
        %911 = vmatprep.subr.bf16.mxu0 0
        %912 = vmatpush2.bf16.msra.mxu0 0
        %913 = vmatprep.subr.bf16.mxu0 0
        %914 = vmatpush2.bf16.msra.mxu0 0
        %915 = vmatprep.subr.bf16.mxu0 0
        %916 = vmatpush2.bf16.msra.mxu0 0
        %917 = vmatprep.subr.bf16.mxu0 0
        %918 = vmatpush2.bf16.msra.mxu0 0
        %919 = vmatprep.subr.bf16.mxu0 0
        %920 = vmatpush2.bf16.msra.mxu0 0
        %921 = vmatprep.mubr.bf16.mxu0 0
        %922 = vmatmul.mubr.bf16.gmra.mxu0 %v884
        %v923 = vpop.f32.mrf.mxu0
        %v924 = vadd.f32 0.0, %v923
        %v925 = vpop.f32.mrf.mxu0
        %v926 = vpop.f32.mrf.mxu0
        %v927 = vadd.f32 0.0, %v926
        %v928 = vpop.f32.mrf.mxu0
        %929 = vmatprep.mubr.bf16.mxu0 0
        %930 = vmatmul.mubr.bf16.gmra.mxu0 %v887
        %v931 = vpop.f32.mrf.mxu0
        %v932 = vadd.f32 0.0, %v931
        %v933 = vpop.f32.mrf.mxu0
        %v934 = vpop.f32.mrf.mxu0
        %v935 = vadd.f32 0.0, %v934
        %v936 = vpop.f32.mrf.mxu0
        %937 = vdwg.mxu0
        %s938 = scalar_lea.vmem %s2, 96
        %v939 = vld [vmem:[%s938] sm:$0xff]
        %v940 = vld [vmem:[%s938 + $0x8] sm:$0xff]
        %v941 = vld [vmem:[%s938 + $0x10] sm:$0xff]
        %v942 = vld [vmem:[%s938 + $0x18] sm:$0xff]
        %943 = vrot.lane.b32.xlu0 %v375, 104
        %v944 = vpop.permute.xlu0 %943
        %945 = vrot.lane.b32.xlu0 %v376, 104
        %v946 = vpop.permute.xlu0 %945
        %947 = vrot.lane.b32.xlu0 %v375, 72
        %v948 = vpop.permute.xlu0 %947
        %949 = vrot.lane.b32.xlu0 %v376, 72
        %v950 = vpop.permute.xlu0 %949
        %v952 = vsel %vm383, %v944, 0
        %v955 = vsel %vm383, %v946, 0
        %v958 = vsel %vm383, %v948, 0
        %v961 = vsel %vm383, %v950, 0
        %963 = vmatprep.subr.bf16.mxu0 0
        %964 = vmatpush1.bf16.xpose.msra.mxu0 0
        %965 = vmatprep.subr.bf16.mxu0 0
        %966 = vmatpush1.bf16.xpose.msra.mxu0 0
        %967 = vmatprep.subr.bf16.mxu0 0
        %968 = vmatpush1.bf16.xpose.msra.mxu0 0
        %969 = vmatprep.subr.bf16.mxu0 0
        %970 = vmatpush1.bf16.xpose.msra.mxu0 0
        %971 = vmatprep.subr.bf16.mxu0 0
        %972 = vmatpush1.bf16.xpose.msra.mxu0 0
        %973 = vmatprep.subr.bf16.mxu0 0
        %974 = vmatpush1.bf16.xpose.msra.mxu0 0
        %975 = vmatprep.subr.bf16.mxu0 0
        %976 = vmatpush1.bf16.xpose.msra.mxu0 %v961
        %977 = vmatprep.subr.bf16.mxu0 0
        %978 = vmatpush1.bf16.xpose.msra.mxu0 %v958
        %979 = vmatprep.subr.bf16.mxu0 0
        %980 = vmatpush2.bf16.xpose.msra.mxu0 0
        %981 = vmatprep.subr.bf16.mxu0 0
        %982 = vmatpush2.bf16.xpose.msra.mxu0 0
        %983 = vmatprep.subr.bf16.mxu0 0
        %984 = vmatpush2.bf16.xpose.msra.mxu0 0
        %985 = vmatprep.subr.bf16.mxu0 0
        %986 = vmatpush2.bf16.xpose.msra.mxu0 0
        %987 = vmatprep.subr.bf16.mxu0 0
        %988 = vmatpush2.bf16.xpose.msra.mxu0 0
        %989 = vmatprep.subr.bf16.mxu0 0
        %990 = vmatpush2.bf16.xpose.msra.mxu0 0
        %991 = vmatprep.subr.bf16.mxu0 0
        %992 = vmatpush2.bf16.xpose.msra.mxu0 0
        %993 = vmatprep.subr.bf16.mxu0 0
        %994 = vmatpush2.bf16.xpose.msra.mxu0 0
        %995 = vmatprep.mubr.bf16.mxu0 0
        %996 = vmatmul.mubr.bf16.gmra.mxu0 %v952
        %v997 = vpop.f32.mrf.mxu0
        %v998 = vadd.f32 0.0, %v997
        %v999 = vpop.f32.mrf.mxu0
        %v1000 = vpop.f32.mrf.mxu0
        %v1001 = vadd.f32 0.0, %v1000
        %v1002 = vpop.f32.mrf.mxu0
        %1003 = vmatprep.mubr.bf16.mxu0 0
        %1004 = vmatmul.mubr.bf16.gmra.mxu0 %v955
        %v1005 = vpop.f32.mrf.mxu0
        %v1006 = vadd.f32 0.0, %v1005
        %v1007 = vpop.f32.mrf.mxu0
        %v1008 = vpop.f32.mrf.mxu0
        %v1009 = vadd.f32 0.0, %v1008
        %v1010 = vpop.f32.mrf.mxu0
        %1011 = vdwg.mxu0
        %v1012 = vmul.f32 %v998, 0.35355338
        %v1013 = vmul.f32 %v1001, 0.35355338
        %v1014 = vmul.f32 %v1006, 0.35355338
        %v1015 = vmul.f32 %v1009, 0.35355338
        %v1016 = vadd.f32 %v1012, %v939
        %v1017 = vadd.f32 %v1013, %v940
        %v1018 = vadd.f32 %v1014, %v941
        %v1019 = vadd.f32 %v1015, %v942
        %v1020 = vsel %vm315, %v1016, -inf
        %1021 = vmax.xlane.f32.xlu0 %v1020
        %v1022 = vpop.xlane.xlu0 %1021
        %v1023 = vsel %vm315, %v1017, -inf
        %1024 = vmax.xlane.f32.xlu0 %v1023
        %v1025 = vpop.xlane.xlu0 %1024
        %v1026 = vsel %vm315, %v1018, -inf
        %1027 = vmax.xlane.f32.xlu0 %v1026
        %v1028 = vpop.xlane.xlu0 %1027
        %v1029 = vsel %vm315, %v1019, -inf
        %1030 = vmax.xlane.f32.xlu0 %v1029
        %v1031 = vpop.xlane.xlu0 %1030
        %v1032 = vsub.f32 %v1016, %v1022
        %v1033 = vsub.f32 %v1017, %v1025
        %v1034 = vsub.f32 %v1018, %v1028
        %v1035 = vsub.f32 %v1019, %v1031
        %v1036 = vmul.f32 %v1032, 1.442695
        %v1037 = vpow.pop %v1036
        %v1038 = vmul.f32 %v1033, 1.442695
        %v1039 = vpow.pop %v1038
        %v1040 = vmul.f32 %v1034, 1.442695
        %v1041 = vpow.pop %v1040
        %v1042 = vmul.f32 %v1035, 1.442695
        %v1043 = vpow.pop %v1042
        %v1044 = vsel %vm315, %v1037, 0.0
        %1045 = vadd.xlane.f32.xlu0 %v1044
        %v1046 = vpop.xlane.xlu0 %1045
        %v1047 = vsel %vm315, %v1039, 0.0
        %1048 = vadd.xlane.f32.xlu0 %v1047
        %v1049 = vpop.xlane.xlu0 %1048
        %v1050 = vsel %vm315, %v1041, 0.0
        %1051 = vadd.xlane.f32.xlu0 %v1050
        %v1052 = vpop.xlane.xlu0 %1051
        %v1053 = vsel %vm315, %v1043, 0.0
        %1054 = vadd.xlane.f32.xlu0 %v1053
        %v1055 = vpop.xlane.xlu0 %1054
        %v1056 = vrcp.pop %v1046
        %v1057 = vrcp.pop %v1049
        %v1058 = vrcp.pop %v1052
        %v1059 = vrcp.pop %v1055
        %v1060 = vmul.f32 %v1037, %v1056
        %v1061 = vmul.f32 %v1039, %v1057
        %v1062 = vmul.f32 %v1041, %v1058
        %v1063 = vmul.f32 %v1043, %v1059
        %v1064 = vpack.c.bf16 %v1061, %v1060
        %v1065 = vpack.c.bf16 %v1063, %v1062
        %1066 = vrot.lane.b32.xlu0 %v375, 40
        %v1067 = vpop.permute.xlu0 %1066
        %1068 = vrot.lane.b32.xlu0 %v376, 40
        %v1069 = vpop.permute.xlu0 %1068
        %v1073 = vsel %vm315, %v1064, 0
        %v1076 = vsel %vm315, %v1065, 0
        %1078 = vmatprep.subr.bf16.mxu0 0
        %1079 = vmatpush1.bf16.msra.mxu0 0
        %1080 = vmatprep.subr.bf16.mxu0 0
        %1081 = vmatpush1.bf16.msra.mxu0 0
        %1082 = vmatprep.subr.bf16.mxu0 0
        %1083 = vmatpush1.bf16.msra.mxu0 0
        %1084 = vmatprep.subr.bf16.mxu0 0
        %1085 = vmatpush1.bf16.msra.mxu0 0
        %1086 = vmatprep.subr.bf16.mxu0 0
        %1087 = vmatpush1.bf16.msra.mxu0 0
        %1088 = vmatprep.subr.bf16.mxu0 0
        %1089 = vmatpush1.bf16.msra.mxu0 0
        %1090 = vmatprep.subr.bf16.mxu0 0
        %1091 = vmatpush1.bf16.msra.mxu0 %v1069
        %1092 = vmatprep.subr.bf16.mxu0 0
        %1093 = vmatpush1.bf16.msra.mxu0 %v1067
        %1094 = vmatprep.subr.bf16.mxu0 0
        %1095 = vmatpush2.bf16.msra.mxu0 0
        %1096 = vmatprep.subr.bf16.mxu0 0
        %1097 = vmatpush2.bf16.msra.mxu0 0
        %1098 = vmatprep.subr.bf16.mxu0 0
        %1099 = vmatpush2.bf16.msra.mxu0 0
        %1100 = vmatprep.subr.bf16.mxu0 0
        %1101 = vmatpush2.bf16.msra.mxu0 0
        %1102 = vmatprep.subr.bf16.mxu0 0
        %1103 = vmatpush2.bf16.msra.mxu0 0
        %1104 = vmatprep.subr.bf16.mxu0 0
        %1105 = vmatpush2.bf16.msra.mxu0 0
        %1106 = vmatprep.subr.bf16.mxu0 0
        %1107 = vmatpush2.bf16.msra.mxu0 0
        %1108 = vmatprep.subr.bf16.mxu0 0
        %1109 = vmatpush2.bf16.msra.mxu0 0
        %1110 = vmatprep.mubr.bf16.mxu0 0
        %1111 = vmatmul.mubr.bf16.gmra.mxu0 %v1073
        %v1112 = vpop.f32.mrf.mxu0
        %v1113 = vadd.f32 0.0, %v1112
        %v1114 = vpop.f32.mrf.mxu0
        %v1115 = vpop.f32.mrf.mxu0
        %v1116 = vadd.f32 0.0, %v1115
        %v1117 = vpop.f32.mrf.mxu0
        %1118 = vmatprep.mubr.bf16.mxu0 0
        %1119 = vmatmul.mubr.bf16.gmra.mxu0 %v1076
        %v1120 = vpop.f32.mrf.mxu0
        %v1121 = vadd.f32 0.0, %v1120
        %v1122 = vpop.f32.mrf.mxu0
        %v1123 = vpop.f32.mrf.mxu0
        %v1124 = vadd.f32 0.0, %v1123
        %v1125 = vpop.f32.mrf.mxu0
        %1126 = vdwg.mxu0
        %1131 = vrot.lane.b32.xlu0 %v735, 8
        %v1132 = vpop.permute.xlu0 %1131
        %1133 = vrot.lane.b32.xlu0 %v738, 8
        %v1134 = vpop.permute.xlu0 %1133
        %1135 = vrot.lane.b32.xlu0 %v743, 8
        %v1136 = vpop.permute.xlu0 %1135
        %1137 = vrot.lane.b32.xlu0 %v746, 8
        %v1138 = vpop.permute.xlu0 %1137
        %1147 = vrot.lane.b32.xlu0 %v924, 16
        %v1148 = vpop.permute.xlu0 %1147
        %1149 = vrot.lane.b32.xlu0 %v927, 16
        %v1150 = vpop.permute.xlu0 %1149
        %1151 = vrot.lane.b32.xlu0 %v932, 16
        %v1152 = vpop.permute.xlu0 %1151
        %1153 = vrot.lane.b32.xlu0 %v935, 16
        %v1154 = vpop.permute.xlu0 %1153
        %1163 = vrot.lane.b32.xlu0 %v1113, 24
        %v1164 = vpop.permute.xlu0 %1163
        %1165 = vrot.lane.b32.xlu0 %v1116, 24
        %v1166 = vpop.permute.xlu0 %1165
        %1167 = vrot.lane.b32.xlu0 %v1121, 24
        %v1168 = vpop.permute.xlu0 %1167
        %1169 = vrot.lane.b32.xlu0 %v1124, 24
        %v1170 = vpop.permute.xlu0 %1169
        %v1175 = vsel %vm383, %v546, %v1132
        %v1176 = vsel %vm383, %v549, %v1134
        %v1177 = vsel %vm383, %v554, %v1136
        %v1178 = vsel %vm383, %v557, %v1138
        %vm1179 = vcmask 130048
        %v1180 = vsel %vm1179, %v1175, %v1148
        %v1181 = vsel %vm1179, %v1176, %v1150
        %v1182 = vsel %vm1179, %v1177, %v1152
        %v1183 = vsel %vm1179, %v1178, %v1154
        %vm1184 = vcmask 195584
        %v1185 = vsel %vm1184, %v1180, %v1164
        %v1186 = vsel %vm1184, %v1181, %v1166
        %v1187 = vsel %vm1184, %v1182, %v1168
        %v1188 = vsel %vm1184, %v1183, %v1170
        %v1189 = vld [vmem:[#allocation2] sm:$0xff]
        %v1190 = vld [vmem:[#allocation2 + $0x8] sm:$0xff]
        %v1191 = vld [vmem:[#allocation2 + $0x10] sm:$0xff]
        %v1192 = vld [vmem:[#allocation2 + $0x18] sm:$0xff]
        %v1193 = vadd.f32 %v293, %v1189
        %v1194 = vadd.f32 %v294, %v1190
        %v1195 = vadd.f32 %v295, %v1191
        %v1196 = vadd.f32 %v296, %v1192
        %v1197 = vld [vmem:[%s4] sm:$0xf]
        %v1198 = vld [vmem:[%s4 + $0x4] sm:$0xf]
        %v1199 = vld [vmem:[%s4 + $0x8] sm:$0xf]
        %v1200 = vld [vmem:[%s4 + $0xc] sm:$0xf]
        %v1201 = vpack.c.bf16 %v1194, %v1193
        %v1202 = vpack.c.bf16 %v1196, %v1195
        %v1207 = vunpack.c.l.b16 %v1197
        %v1208 = vunpack.c.l.b16 %v1198
        %v1209 = vunpack.c.l.b16 %v1199
        %v1210 = vunpack.c.l.b16 %v1200
        %v1211 = vpack.c.b16 %v1208, %v1207
        %v1212 = vpack.c.b16 %v1210, %v1209
        %v1216 = vsel %vm315, %v1201, 0
        %v1219 = vsel %vm315, %v1202, 0
        %1221 = vmatprep.subr.bf16.mxu0 0
        %1222 = vmatpush1.bf16.msra.mxu0 0
        %1223 = vmatprep.subr.bf16.mxu0 0
        %1224 = vmatpush1.bf16.msra.mxu0 0
        %1225 = vmatprep.subr.bf16.mxu0 0
        %1226 = vmatpush1.bf16.msra.mxu0 0
        %1227 = vmatprep.subr.bf16.mxu0 0
        %1228 = vmatpush1.bf16.msra.mxu0 0
        %1229 = vmatprep.subr.bf16.mxu0 0
        %1230 = vmatpush1.bf16.msra.mxu0 0
        %1231 = vmatprep.subr.bf16.mxu0 0
        %1232 = vmatpush1.bf16.msra.mxu0 0
        %1233 = vmatprep.subr.bf16.mxu0 0
        %1234 = vmatpush1.bf16.msra.mxu0 %v1212
        %1235 = vmatprep.subr.bf16.mxu0 0
        %1236 = vmatpush1.bf16.msra.mxu0 %v1211
        %1237 = vmatprep.subr.bf16.mxu0 0
        %1238 = vmatpush2.bf16.msra.mxu0 0
        %1239 = vmatprep.subr.bf16.mxu0 0
        %1240 = vmatpush2.bf16.msra.mxu0 0
        %1241 = vmatprep.subr.bf16.mxu0 0
        %1242 = vmatpush2.bf16.msra.mxu0 0
        %1243 = vmatprep.subr.bf16.mxu0 0
        %1244 = vmatpush2.bf16.msra.mxu0 0
        %1245 = vmatprep.subr.bf16.mxu0 0
        %1246 = vmatpush2.bf16.msra.mxu0 0
        %1247 = vmatprep.subr.bf16.mxu0 0
        %1248 = vmatpush2.bf16.msra.mxu0 0
        %1249 = vmatprep.subr.bf16.mxu0 0
        %1250 = vmatpush2.bf16.msra.mxu0 0
        %1251 = vmatprep.subr.bf16.mxu0 0
        %1252 = vmatpush2.bf16.msra.mxu0 0
        %1253 = vmatprep.mubr.bf16.mxu0 0
        %1254 = vmatmul.mubr.bf16.gmra.mxu0 %v1216
        %v1255 = vpop.f32.mrf.mxu0
        %v1256 = vadd.f32 0.0, %v1255
        %v1257 = vpop.f32.mrf.mxu0
        %v1258 = vpop.f32.mrf.mxu0
        %v1259 = vadd.f32 0.0, %v1258
        %v1260 = vpop.f32.mrf.mxu0
        %1261 = vmatprep.mubr.bf16.mxu0 0
        %1262 = vmatmul.mubr.bf16.gmra.mxu0 %v1219
        %v1263 = vpop.f32.mrf.mxu0
        %v1264 = vadd.f32 0.0, %v1263
        %v1265 = vpop.f32.mrf.mxu0
        %v1266 = vpop.f32.mrf.mxu0
        %v1267 = vadd.f32 0.0, %v1266
        %v1268 = vpop.f32.mrf.mxu0
        %1269 = vdwg.mxu0
        %v1270 = vpack.c.bf16 %v1267, %v1264
        %v1271 = vpack.c.bf16 %v1259, %v1256
        %1273 = vrot.lane.b32.xlu0 %v1271, 96
        %v1274 = vpop.permute.xlu0 %1273
        %v1276 = vsel %vm383, %v1270, 0
        %v1279 = vsel %vm383, %v1274, 0
        %1281 = vmatprep.subr.bf16.mxu0 0
        %1282 = vmatpush1.bf16.xpose.msra.mxu0 0
        %1283 = vmatprep.subr.bf16.mxu0 0
        %1284 = vmatpush1.bf16.xpose.msra.mxu0 0
        %1285 = vmatprep.subr.bf16.mxu0 0
        %1286 = vmatpush1.bf16.xpose.msra.mxu0 0
        %1287 = vmatprep.subr.bf16.mxu0 0
        %1288 = vmatpush1.bf16.xpose.msra.mxu0 0
        %1289 = vmatprep.subr.bf16.mxu0 0
        %1290 = vmatpush1.bf16.xpose.msra.mxu0 0
        %1291 = vmatprep.subr.bf16.mxu0 0
        %1292 = vmatpush1.bf16.xpose.msra.mxu0 0
        %1293 = vmatprep.subr.bf16.mxu0 0
        %1294 = vmatpush1.bf16.xpose.msra.mxu0 0
        %1295 = vmatprep.subr.bf16.mxu0 0
        %1296 = vmatpush1.bf16.xpose.msra.mxu0 %v1279
        %1297 = vmatprep.subr.bf16.mxu0 0
        %1298 = vmatpush2.bf16.xpose.msra.mxu0 0
        %1299 = vmatprep.subr.bf16.mxu0 0
        %1300 = vmatpush2.bf16.xpose.msra.mxu0 0
        %1301 = vmatprep.subr.bf16.mxu0 0
        %1302 = vmatpush2.bf16.xpose.msra.mxu0 0
        %1303 = vmatprep.subr.bf16.mxu0 0
        %1304 = vmatpush2.bf16.xpose.msra.mxu0 0
        %1305 = vmatprep.subr.bf16.mxu0 0
        %1306 = vmatpush2.bf16.xpose.msra.mxu0 0
        %1307 = vmatprep.subr.bf16.mxu0 0
        %1308 = vmatpush2.bf16.xpose.msra.mxu0 0
        %1309 = vmatprep.subr.bf16.mxu0 0
        %1310 = vmatpush2.bf16.xpose.msra.mxu0 0
        %1311 = vmatprep.subr.bf16.mxu0 0
        %1312 = vmatpush2.bf16.xpose.msra.mxu0 0
        %1313 = vmatprep.mubr.bf16.mxu0 0
        %1314 = vmatmul.mubr.bf16.gmra.mxu0 %v1276
        %v1315 = vpop.f32.mrf.mxu0
        %v1316 = vadd.f32 0.0, %v1315
        %v1317 = vpop.f32.mrf.mxu0
        %v1318 = vpop.f32.mrf.mxu0
        %v1319 = vadd.f32 0.0, %v1318
        %v1320 = vpop.f32.mrf.mxu0
        %1321 = vdwg.mxu0
        %v1322 = vmul.f32 %v1316, 0.35355338
        %v1323 = vmul.f32 %v1319, 0.35355338
        %v1324 = vsel %vm1179, %v1322, -inf
        %1325 = vmax.xlane.f32.xlu0 %v1324
        %v1326 = vpop.xlane.xlu0 %1325
        %v1327 = vsel %vm1179, %v1323, -inf
        %1328 = vmax.xlane.f32.xlu0 %v1327
        %v1329 = vpop.xlane.xlu0 %1328
        %v1330 = vsub.f32 %v1322, %v1326
        %v1331 = vsub.f32 %v1323, %v1329
        %v1332 = vmul.f32 %v1330, 1.442695
        %v1333 = vpow.pop %v1332
        %v1334 = vmul.f32 %v1331, 1.442695
        %v1335 = vpow.pop %v1334
        %v1336 = vsel %vm1179, %v1333, 0.0
        %1337 = vadd.xlane.f32.xlu0 %v1336
        %v1338 = vpop.xlane.xlu0 %1337
        %v1339 = vsel %vm1179, %v1335, 0.0
        %1340 = vadd.xlane.f32.xlu0 %v1339
        %v1341 = vpop.xlane.xlu0 %1340
        %v1342 = vrcp.pop %v1338
        %v1343 = vrcp.pop %v1341
        %v1344 = vmul.f32 %v1333, %v1342
        %v1345 = vmul.f32 %v1335, %v1343
        %v1346 = vpack.c.bf16 %v1345, %v1344
        %1347 = vrot.lane.b32.xlu0 %v1271, 64
        %v1348 = vpop.permute.xlu0 %1347
        %v1351 = vsel %vm1179, %v1346, 0
        %1353 = vmatprep.subr.bf16.mxu0 0
        %1354 = vmatpush1.bf16.msra.mxu0 0
        %1355 = vmatprep.subr.bf16.mxu0 0
        %1356 = vmatpush1.bf16.msra.mxu0 0
        %1357 = vmatprep.subr.bf16.mxu0 0
        %1358 = vmatpush1.bf16.msra.mxu0 0
        %1359 = vmatprep.subr.bf16.mxu0 0
        %1360 = vmatpush1.bf16.msra.mxu0 0
        %1361 = vmatprep.subr.bf16.mxu0 0
        %1362 = vmatpush1.bf16.msra.mxu0 0
        %1363 = vmatprep.subr.bf16.mxu0 0
        %1364 = vmatpush1.bf16.msra.mxu0 0
        %1365 = vmatprep.subr.bf16.mxu0 0
        %1366 = vmatpush1.bf16.msra.mxu0 0
        %1367 = vmatprep.subr.bf16.mxu0 0
        %1368 = vmatpush1.bf16.msra.mxu0 %v1348
        %1369 = vmatprep.subr.bf16.mxu0 0
        %1370 = vmatpush2.bf16.msra.mxu0 0
        %1371 = vmatprep.subr.bf16.mxu0 0
        %1372 = vmatpush2.bf16.msra.mxu0 0
        %1373 = vmatprep.subr.bf16.mxu0 0
        %1374 = vmatpush2.bf16.msra.mxu0 0
        %1375 = vmatprep.subr.bf16.mxu0 0
        %1376 = vmatpush2.bf16.msra.mxu0 0
        %1377 = vmatprep.subr.bf16.mxu0 0
        %1378 = vmatpush2.bf16.msra.mxu0 0
        %1379 = vmatprep.subr.bf16.mxu0 0
        %1380 = vmatpush2.bf16.msra.mxu0 0
        %1381 = vmatprep.subr.bf16.mxu0 0
        %1382 = vmatpush2.bf16.msra.mxu0 0
        %1383 = vmatprep.subr.bf16.mxu0 0
        %1384 = vmatpush2.bf16.msra.mxu0 0
        %1385 = vmatprep.mubr.bf16.mxu0 0
        %1386 = vmatmul.mubr.bf16.gmra.mxu0 %v1351
        %v1387 = vpop.f32.mrf.mxu0
        %v1388 = vadd.f32 0.0, %v1387
        %v1389 = vpop.f32.mrf.mxu0
        %v1390 = vpop.f32.mrf.mxu0
        %v1391 = vadd.f32 0.0, %v1390
        %v1392 = vpop.f32.mrf.mxu0
        %1393 = vdwg.mxu0
        %1395 = vrot.lane.b32.xlu0 %v1270, 96
        %v1396 = vpop.permute.xlu0 %1395
        %v1398 = vsel %vm383, %v1271, 0
        %v1401 = vsel %vm383, %v1396, 0
        %1403 = vmatprep.subr.bf16.mxu0 0
        %1404 = vmatpush1.bf16.xpose.msra.mxu0 0
        %1405 = vmatprep.subr.bf16.mxu0 0
        %1406 = vmatpush1.bf16.xpose.msra.mxu0 0
        %1407 = vmatprep.subr.bf16.mxu0 0
        %1408 = vmatpush1.bf16.xpose.msra.mxu0 0
        %1409 = vmatprep.subr.bf16.mxu0 0
        %1410 = vmatpush1.bf16.xpose.msra.mxu0 0
        %1411 = vmatprep.subr.bf16.mxu0 0
        %1412 = vmatpush1.bf16.xpose.msra.mxu0 0
        %1413 = vmatprep.subr.bf16.mxu0 0
        %1414 = vmatpush1.bf16.xpose.msra.mxu0 0
        %1415 = vmatprep.subr.bf16.mxu0 0
        %1416 = vmatpush1.bf16.xpose.msra.mxu0 0
        %1417 = vmatprep.subr.bf16.mxu0 0
        %1418 = vmatpush1.bf16.xpose.msra.mxu0 %v1401
        %1419 = vmatprep.subr.bf16.mxu0 0
        %1420 = vmatpush2.bf16.xpose.msra.mxu0 0
        %1421 = vmatprep.subr.bf16.mxu0 0
        %1422 = vmatpush2.bf16.xpose.msra.mxu0 0
        %1423 = vmatprep.subr.bf16.mxu0 0
        %1424 = vmatpush2.bf16.xpose.msra.mxu0 0
        %1425 = vmatprep.subr.bf16.mxu0 0
        %1426 = vmatpush2.bf16.xpose.msra.mxu0 0
        %1427 = vmatprep.subr.bf16.mxu0 0
        %1428 = vmatpush2.bf16.xpose.msra.mxu0 0
        %1429 = vmatprep.subr.bf16.mxu0 0
        %1430 = vmatpush2.bf16.xpose.msra.mxu0 0
        %1431 = vmatprep.subr.bf16.mxu0 0
        %1432 = vmatpush2.bf16.xpose.msra.mxu0 0
        %1433 = vmatprep.subr.bf16.mxu0 0
        %1434 = vmatpush2.bf16.xpose.msra.mxu0 0
        %1435 = vmatprep.mubr.bf16.mxu0 0
        %1436 = vmatmul.mubr.bf16.gmra.mxu0 %v1398
        %v1437 = vpop.f32.mrf.mxu0
        %v1438 = vadd.f32 0.0, %v1437
        %v1439 = vpop.f32.mrf.mxu0
        %v1440 = vpop.f32.mrf.mxu0
        %v1441 = vadd.f32 0.0, %v1440
        %v1442 = vpop.f32.mrf.mxu0
        %1443 = vdwg.mxu0
        %v1444 = vmul.f32 %v1438, 0.35355338
        %v1445 = vmul.f32 %v1441, 0.35355338
        %v1446 = vsel %vm1179, %v1444, -inf
        %1447 = vmax.xlane.f32.xlu0 %v1446
        %v1448 = vpop.xlane.xlu0 %1447
        %v1449 = vsel %vm1179, %v1445, -inf
        %1450 = vmax.xlane.f32.xlu0 %v1449
        %v1451 = vpop.xlane.xlu0 %1450
        %v1452 = vsub.f32 %v1444, %v1448
        %v1453 = vsub.f32 %v1445, %v1451
        %v1454 = vmul.f32 %v1452, 1.442695
        %v1455 = vpow.pop %v1454
        %v1456 = vmul.f32 %v1453, 1.442695
        %v1457 = vpow.pop %v1456
        %v1458 = vsel %vm1179, %v1455, 0.0
        %1459 = vadd.xlane.f32.xlu0 %v1458
        %v1460 = vpop.xlane.xlu0 %1459
        %v1461 = vsel %vm1179, %v1457, 0.0
        %1462 = vadd.xlane.f32.xlu0 %v1461
        %v1463 = vpop.xlane.xlu0 %1462
        %v1464 = vrcp.pop %v1460
        %v1465 = vrcp.pop %v1463
        %v1466 = vmul.f32 %v1455, %v1464
        %v1467 = vmul.f32 %v1457, %v1465
        %v1468 = vpack.c.bf16 %v1467, %v1466
        %1469 = vrot.lane.b32.xlu0 %v1270, 64
        %v1470 = vpop.permute.xlu0 %1469
        %v1473 = vsel %vm1179, %v1468, 0
        %1475 = vmatprep.subr.bf16.mxu0 0
        %1476 = vmatpush1.bf16.msra.mxu0 0
        %1477 = vmatprep.subr.bf16.mxu0 0
        %1478 = vmatpush1.bf16.msra.mxu0 0
        %1479 = vmatprep.subr.bf16.mxu0 0
        %1480 = vmatpush1.bf16.msra.mxu0 0
        %1481 = vmatprep.subr.bf16.mxu0 0
        %1482 = vmatpush1.bf16.msra.mxu0 0
        %1483 = vmatprep.subr.bf16.mxu0 0
        %1484 = vmatpush1.bf16.msra.mxu0 0
        %1485 = vmatprep.subr.bf16.mxu0 0
        %1486 = vmatpush1.bf16.msra.mxu0 0
        %1487 = vmatprep.subr.bf16.mxu0 0
        %1488 = vmatpush1.bf16.msra.mxu0 0
        %1489 = vmatprep.subr.bf16.mxu0 0
        %1490 = vmatpush1.bf16.msra.mxu0 %v1470
        %1491 = vmatprep.subr.bf16.mxu0 0
        %1492 = vmatpush2.bf16.msra.mxu0 0
        %1493 = vmatprep.subr.bf16.mxu0 0
        %1494 = vmatpush2.bf16.msra.mxu0 0
        %1495 = vmatprep.subr.bf16.mxu0 0
        %1496 = vmatpush2.bf16.msra.mxu0 0
        %1497 = vmatprep.subr.bf16.mxu0 0
        %1498 = vmatpush2.bf16.msra.mxu0 0
        %1499 = vmatprep.subr.bf16.mxu0 0
        %1500 = vmatpush2.bf16.msra.mxu0 0
        %1501 = vmatprep.subr.bf16.mxu0 0
        %1502 = vmatpush2.bf16.msra.mxu0 0
        %1503 = vmatprep.subr.bf16.mxu0 0
        %1504 = vmatpush2.bf16.msra.mxu0 0
        %1505 = vmatprep.subr.bf16.mxu0 0
        %1506 = vmatpush2.bf16.msra.mxu0 0
        %1507 = vmatprep.mubr.bf16.mxu0 0
        %1508 = vmatmul.mubr.bf16.gmra.mxu0 %v1473
        %v1509 = vpop.f32.mrf.mxu0
        %v1510 = vadd.f32 0.0, %v1509
        %v1511 = vpop.f32.mrf.mxu0
        %v1512 = vpop.f32.mrf.mxu0
        %v1513 = vadd.f32 0.0, %v1512
        %v1514 = vpop.f32.mrf.mxu0
        %1515 = vdwg.mxu0
        %1516 = vrot.lane.b32.xlu0 %v1270, 120
        %v1517 = vpop.permute.xlu0 %1516
        %1518 = vrot.lane.b32.xlu0 %v1271, 88
        %v1519 = vpop.permute.xlu0 %1518
        %v1521 = vsel %vm383, %v1517, 0
        %v1524 = vsel %vm383, %v1519, 0
        %1526 = vmatprep.subr.bf16.mxu0 0
        %1527 = vmatpush1.bf16.xpose.msra.mxu0 0
        %1528 = vmatprep.subr.bf16.mxu0 0
        %1529 = vmatpush1.bf16.xpose.msra.mxu0 0
        %1530 = vmatprep.subr.bf16.mxu0 0
        %1531 = vmatpush1.bf16.xpose.msra.mxu0 0
        %1532 = vmatprep.subr.bf16.mxu0 0
        %1533 = vmatpush1.bf16.xpose.msra.mxu0 0
        %1534 = vmatprep.subr.bf16.mxu0 0
        %1535 = vmatpush1.bf16.xpose.msra.mxu0 0
        %1536 = vmatprep.subr.bf16.mxu0 0
        %1537 = vmatpush1.bf16.xpose.msra.mxu0 0
        %1538 = vmatprep.subr.bf16.mxu0 0
        %1539 = vmatpush1.bf16.xpose.msra.mxu0 0
        %1540 = vmatprep.subr.bf16.mxu0 0
        %1541 = vmatpush1.bf16.xpose.msra.mxu0 %v1524
        %1542 = vmatprep.subr.bf16.mxu0 0
        %1543 = vmatpush2.bf16.xpose.msra.mxu0 0
        %1544 = vmatprep.subr.bf16.mxu0 0
        %1545 = vmatpush2.bf16.xpose.msra.mxu0 0
        %1546 = vmatprep.subr.bf16.mxu0 0
        %1547 = vmatpush2.bf16.xpose.msra.mxu0 0
        %1548 = vmatprep.subr.bf16.mxu0 0
        %1549 = vmatpush2.bf16.xpose.msra.mxu0 0
        %1550 = vmatprep.subr.bf16.mxu0 0
        %1551 = vmatpush2.bf16.xpose.msra.mxu0 0
        %1552 = vmatprep.subr.bf16.mxu0 0
        %1553 = vmatpush2.bf16.xpose.msra.mxu0 0
        %1554 = vmatprep.subr.bf16.mxu0 0
        %1555 = vmatpush2.bf16.xpose.msra.mxu0 0
        %1556 = vmatprep.subr.bf16.mxu0 0
        %1557 = vmatpush2.bf16.xpose.msra.mxu0 0
        %1558 = vmatprep.mubr.bf16.mxu0 0
        %1559 = vmatmul.mubr.bf16.gmra.mxu0 %v1521
        %v1560 = vpop.f32.mrf.mxu0
        %v1561 = vadd.f32 0.0, %v1560
        %v1562 = vpop.f32.mrf.mxu0
        %v1563 = vpop.f32.mrf.mxu0
        %v1564 = vadd.f32 0.0, %v1563
        %v1565 = vpop.f32.mrf.mxu0
        %1566 = vdwg.mxu0
        %v1567 = vmul.f32 %v1561, 0.35355338
        %v1568 = vmul.f32 %v1564, 0.35355338
        %v1569 = vsel %vm1179, %v1567, -inf
        %1570 = vmax.xlane.f32.xlu0 %v1569
        %v1571 = vpop.xlane.xlu0 %1570
        %v1572 = vsel %vm1179, %v1568, -inf
        %1573 = vmax.xlane.f32.xlu0 %v1572
        %v1574 = vpop.xlane.xlu0 %1573
        %v1575 = vsub.f32 %v1567, %v1571
        %v1576 = vsub.f32 %v1568, %v1574
        %v1577 = vmul.f32 %v1575, 1.442695
        %v1578 = vpow.pop %v1577
        %v1579 = vmul.f32 %v1576, 1.442695
        %v1580 = vpow.pop %v1579
        %v1581 = vsel %vm1179, %v1578, 0.0
        %1582 = vadd.xlane.f32.xlu0 %v1581
        %v1583 = vpop.xlane.xlu0 %1582
        %v1584 = vsel %vm1179, %v1580, 0.0
        %1585 = vadd.xlane.f32.xlu0 %v1584
        %v1586 = vpop.xlane.xlu0 %1585
        %v1587 = vrcp.pop %v1583
        %v1588 = vrcp.pop %v1586
        %v1589 = vmul.f32 %v1578, %v1587
        %v1590 = vmul.f32 %v1580, %v1588
        %v1591 = vpack.c.bf16 %v1590, %v1589
        %1592 = vrot.lane.b32.xlu0 %v1271, 56
        %v1593 = vpop.permute.xlu0 %1592
        %v1596 = vsel %vm1179, %v1591, 0
        %1598 = vmatprep.subr.bf16.mxu0 0
        %1599 = vmatpush1.bf16.msra.mxu0 0
        %1600 = vmatprep.subr.bf16.mxu0 0
        %1601 = vmatpush1.bf16.msra.mxu0 0
        %1602 = vmatprep.subr.bf16.mxu0 0
        %1603 = vmatpush1.bf16.msra.mxu0 0
        %1604 = vmatprep.subr.bf16.mxu0 0
        %1605 = vmatpush1.bf16.msra.mxu0 0
        %1606 = vmatprep.subr.bf16.mxu0 0
        %1607 = vmatpush1.bf16.msra.mxu0 0
        %1608 = vmatprep.subr.bf16.mxu0 0
        %1609 = vmatpush1.bf16.msra.mxu0 0
        %1610 = vmatprep.subr.bf16.mxu0 0
        %1611 = vmatpush1.bf16.msra.mxu0 0
        %1612 = vmatprep.subr.bf16.mxu0 0
        %1613 = vmatpush1.bf16.msra.mxu0 %v1593
        %1614 = vmatprep.subr.bf16.mxu0 0
        %1615 = vmatpush2.bf16.msra.mxu0 0
        %1616 = vmatprep.subr.bf16.mxu0 0
        %1617 = vmatpush2.bf16.msra.mxu0 0
        %1618 = vmatprep.subr.bf16.mxu0 0
        %1619 = vmatpush2.bf16.msra.mxu0 0
        %1620 = vmatprep.subr.bf16.mxu0 0
        %1621 = vmatpush2.bf16.msra.mxu0 0
        %1622 = vmatprep.subr.bf16.mxu0 0
        %1623 = vmatpush2.bf16.msra.mxu0 0
        %1624 = vmatprep.subr.bf16.mxu0 0
        %1625 = vmatpush2.bf16.msra.mxu0 0
        %1626 = vmatprep.subr.bf16.mxu0 0
        %1627 = vmatpush2.bf16.msra.mxu0 0
        %1628 = vmatprep.subr.bf16.mxu0 0
        %1629 = vmatpush2.bf16.msra.mxu0 0
        %1630 = vmatprep.mubr.bf16.mxu0 0
        %1631 = vmatmul.mubr.bf16.gmra.mxu0 %v1596
        %v1632 = vpop.f32.mrf.mxu0
        %v1633 = vadd.f32 0.0, %v1632
        %v1634 = vpop.f32.mrf.mxu0
        %v1635 = vpop.f32.mrf.mxu0
        %v1636 = vadd.f32 0.0, %v1635
        %v1637 = vpop.f32.mrf.mxu0
        %1638 = vdwg.mxu0
        %1639 = vrot.lane.b32.xlu0 %v1271, 120
        %v1640 = vpop.permute.xlu0 %1639
        %1641 = vrot.lane.b32.xlu0 %v1270, 88
        %v1642 = vpop.permute.xlu0 %1641
        %v1644 = vsel %vm383, %v1640, 0
        %v1647 = vsel %vm383, %v1642, 0
        %1649 = vmatprep.subr.bf16.mxu0 0
        %1650 = vmatpush1.bf16.xpose.msra.mxu0 0
        %1651 = vmatprep.subr.bf16.mxu0 0
        %1652 = vmatpush1.bf16.xpose.msra.mxu0 0
        %1653 = vmatprep.subr.bf16.mxu0 0
        %1654 = vmatpush1.bf16.xpose.msra.mxu0 0
        %1655 = vmatprep.subr.bf16.mxu0 0
        %1656 = vmatpush1.bf16.xpose.msra.mxu0 0
        %1657 = vmatprep.subr.bf16.mxu0 0
        %1658 = vmatpush1.bf16.xpose.msra.mxu0 0
        %1659 = vmatprep.subr.bf16.mxu0 0
        %1660 = vmatpush1.bf16.xpose.msra.mxu0 0
        %1661 = vmatprep.subr.bf16.mxu0 0
        %1662 = vmatpush1.bf16.xpose.msra.mxu0 0
        %1663 = vmatprep.subr.bf16.mxu0 0
        %1664 = vmatpush1.bf16.xpose.msra.mxu0 %v1647
        %1665 = vmatprep.subr.bf16.mxu0 0
        %1666 = vmatpush2.bf16.xpose.msra.mxu0 0
        %1667 = vmatprep.subr.bf16.mxu0 0
        %1668 = vmatpush2.bf16.xpose.msra.mxu0 0
        %1669 = vmatprep.subr.bf16.mxu0 0
        %1670 = vmatpush2.bf16.xpose.msra.mxu0 0
        %1671 = vmatprep.subr.bf16.mxu0 0
        %1672 = vmatpush2.bf16.xpose.msra.mxu0 0
        %1673 = vmatprep.subr.bf16.mxu0 0
        %1674 = vmatpush2.bf16.xpose.msra.mxu0 0
        %1675 = vmatprep.subr.bf16.mxu0 0
        %1676 = vmatpush2.bf16.xpose.msra.mxu0 0
        %1677 = vmatprep.subr.bf16.mxu0 0
        %1678 = vmatpush2.bf16.xpose.msra.mxu0 0
        %1679 = vmatprep.subr.bf16.mxu0 0
        %1680 = vmatpush2.bf16.xpose.msra.mxu0 0
        %1681 = vmatprep.mubr.bf16.mxu0 0
        %1682 = vmatmul.mubr.bf16.gmra.mxu0 %v1644
        %v1683 = vpop.f32.mrf.mxu0
        %v1684 = vadd.f32 0.0, %v1683
        %v1685 = vpop.f32.mrf.mxu0
        %v1686 = vpop.f32.mrf.mxu0
        %v1687 = vadd.f32 0.0, %v1686
        %v1688 = vpop.f32.mrf.mxu0
        %1689 = vdwg.mxu0
        %v1690 = vmul.f32 %v1684, 0.35355338
        %v1691 = vmul.f32 %v1687, 0.35355338
        %v1692 = vsel %vm1179, %v1690, -inf
        %1693 = vmax.xlane.f32.xlu0 %v1692
        %v1694 = vpop.xlane.xlu0 %1693
        %v1695 = vsel %vm1179, %v1691, -inf
        %1696 = vmax.xlane.f32.xlu0 %v1695
        %v1697 = vpop.xlane.xlu0 %1696
        %v1698 = vsub.f32 %v1690, %v1694
        %v1699 = vsub.f32 %v1691, %v1697
        %v1700 = vmul.f32 %v1698, 1.442695
        %v1701 = vpow.pop %v1700
        %v1702 = vmul.f32 %v1699, 1.442695
        %v1703 = vpow.pop %v1702
        %v1704 = vsel %vm1179, %v1701, 0.0
        %1705 = vadd.xlane.f32.xlu0 %v1704
        %v1706 = vpop.xlane.xlu0 %1705
        %v1707 = vsel %vm1179, %v1703, 0.0
        %1708 = vadd.xlane.f32.xlu0 %v1707
        %v1709 = vpop.xlane.xlu0 %1708
        %v1710 = vrcp.pop %v1706
        %v1711 = vrcp.pop %v1709
        %v1712 = vmul.f32 %v1701, %v1710
        %v1713 = vmul.f32 %v1703, %v1711
        %v1714 = vpack.c.bf16 %v1713, %v1712
        %1715 = vrot.lane.b32.xlu0 %v1270, 56
        %v1716 = vpop.permute.xlu0 %1715
        %v1719 = vsel %vm1179, %v1714, 0
        %1721 = vmatprep.subr.bf16.mxu0 0
        %1722 = vmatpush1.bf16.msra.mxu0 0
        %1723 = vmatprep.subr.bf16.mxu0 0
        %1724 = vmatpush1.bf16.msra.mxu0 0
        %1725 = vmatprep.subr.bf16.mxu0 0
        %1726 = vmatpush1.bf16.msra.mxu0 0
        %1727 = vmatprep.subr.bf16.mxu0 0
        %1728 = vmatpush1.bf16.msra.mxu0 0
        %1729 = vmatprep.subr.bf16.mxu0 0
        %1730 = vmatpush1.bf16.msra.mxu0 0
        %1731 = vmatprep.subr.bf16.mxu0 0
        %1732 = vmatpush1.bf16.msra.mxu0 0
        %1733 = vmatprep.subr.bf16.mxu0 0
        %1734 = vmatpush1.bf16.msra.mxu0 0
        %1735 = vmatprep.subr.bf16.mxu0 0
        %1736 = vmatpush1.bf16.msra.mxu0 %v1716
        %1737 = vmatprep.subr.bf16.mxu0 0
        %1738 = vmatpush2.bf16.msra.mxu0 0
        %1739 = vmatprep.subr.bf16.mxu0 0
        %1740 = vmatpush2.bf16.msra.mxu0 0
        %1741 = vmatprep.subr.bf16.mxu0 0
        %1742 = vmatpush2.bf16.msra.mxu0 0
        %1743 = vmatprep.subr.bf16.mxu0 0
        %1744 = vmatpush2.bf16.msra.mxu0 0
        %1745 = vmatprep.subr.bf16.mxu0 0
        %1746 = vmatpush2.bf16.msra.mxu0 0
        %1747 = vmatprep.subr.bf16.mxu0 0
        %1748 = vmatpush2.bf16.msra.mxu0 0
        %1749 = vmatprep.subr.bf16.mxu0 0
        %1750 = vmatpush2.bf16.msra.mxu0 0
        %1751 = vmatprep.subr.bf16.mxu0 0
        %1752 = vmatpush2.bf16.msra.mxu0 0
        %1753 = vmatprep.mubr.bf16.mxu0 0
        %1754 = vmatmul.mubr.bf16.gmra.mxu0 %v1719
        %v1755 = vpop.f32.mrf.mxu0
        %v1756 = vadd.f32 0.0, %v1755
        %v1757 = vpop.f32.mrf.mxu0
        %v1758 = vpop.f32.mrf.mxu0
        %v1759 = vadd.f32 0.0, %v1758
        %v1760 = vpop.f32.mrf.mxu0
        %1761 = vdwg.mxu0
        %1762 = vrot.lane.b32.xlu0 %v1270, 112
        %v1763 = vpop.permute.xlu0 %1762
        %1764 = vrot.lane.b32.xlu0 %v1271, 80
        %v1765 = vpop.permute.xlu0 %1764
        %v1767 = vsel %vm383, %v1763, 0
        %v1770 = vsel %vm383, %v1765, 0
        %1772 = vmatprep.subr.bf16.mxu0 0
        %1773 = vmatpush1.bf16.xpose.msra.mxu0 0
        %1774 = vmatprep.subr.bf16.mxu0 0
        %1775 = vmatpush1.bf16.xpose.msra.mxu0 0
        %1776 = vmatprep.subr.bf16.mxu0 0
        %1777 = vmatpush1.bf16.xpose.msra.mxu0 0
        %1778 = vmatprep.subr.bf16.mxu0 0
        %1779 = vmatpush1.bf16.xpose.msra.mxu0 0
        %1780 = vmatprep.subr.bf16.mxu0 0
        %1781 = vmatpush1.bf16.xpose.msra.mxu0 0
        %1782 = vmatprep.subr.bf16.mxu0 0
        %1783 = vmatpush1.bf16.xpose.msra.mxu0 0
        %1784 = vmatprep.subr.bf16.mxu0 0
        %1785 = vmatpush1.bf16.xpose.msra.mxu0 0
        %1786 = vmatprep.subr.bf16.mxu0 0
        %1787 = vmatpush1.bf16.xpose.msra.mxu0 %v1770
        %1788 = vmatprep.subr.bf16.mxu0 0
        %1789 = vmatpush2.bf16.xpose.msra.mxu0 0
        %1790 = vmatprep.subr.bf16.mxu0 0
        %1791 = vmatpush2.bf16.xpose.msra.mxu0 0
        %1792 = vmatprep.subr.bf16.mxu0 0
        %1793 = vmatpush2.bf16.xpose.msra.mxu0 0
        %1794 = vmatprep.subr.bf16.mxu0 0
        %1795 = vmatpush2.bf16.xpose.msra.mxu0 0
        %1796 = vmatprep.subr.bf16.mxu0 0
        %1797 = vmatpush2.bf16.xpose.msra.mxu0 0
        %1798 = vmatprep.subr.bf16.mxu0 0
        %1799 = vmatpush2.bf16.xpose.msra.mxu0 0
        %1800 = vmatprep.subr.bf16.mxu0 0
        %1801 = vmatpush2.bf16.xpose.msra.mxu0 0
        %1802 = vmatprep.subr.bf16.mxu0 0
        %1803 = vmatpush2.bf16.xpose.msra.mxu0 0
        %1804 = vmatprep.mubr.bf16.mxu0 0
        %1805 = vmatmul.mubr.bf16.gmra.mxu0 %v1767
        %v1806 = vpop.f32.mrf.mxu0
        %v1807 = vadd.f32 0.0, %v1806
        %v1808 = vpop.f32.mrf.mxu0
        %v1809 = vpop.f32.mrf.mxu0
        %v1810 = vadd.f32 0.0, %v1809
        %v1811 = vpop.f32.mrf.mxu0
        %1812 = vdwg.mxu0
        %v1813 = vmul.f32 %v1807, 0.35355338
        %v1814 = vmul.f32 %v1810, 0.35355338
        %v1815 = vsel %vm1179, %v1813, -inf
        %1816 = vmax.xlane.f32.xlu0 %v1815
        %v1817 = vpop.xlane.xlu0 %1816
        %v1818 = vsel %vm1179, %v1814, -inf
        %1819 = vmax.xlane.f32.xlu0 %v1818
        %v1820 = vpop.xlane.xlu0 %1819
        %v1821 = vsub.f32 %v1813, %v1817
        %v1822 = vsub.f32 %v1814, %v1820
        %v1823 = vmul.f32 %v1821, 1.442695
        %v1824 = vpow.pop %v1823
        %v1825 = vmul.f32 %v1822, 1.442695
        %v1826 = vpow.pop %v1825
        %v1827 = vsel %vm1179, %v1824, 0.0
        %1828 = vadd.xlane.f32.xlu0 %v1827
        %v1829 = vpop.xlane.xlu0 %1828
        %v1830 = vsel %vm1179, %v1826, 0.0
        %1831 = vadd.xlane.f32.xlu0 %v1830
        %v1832 = vpop.xlane.xlu0 %1831
        %v1833 = vrcp.pop %v1829
        %v1834 = vrcp.pop %v1832
        %v1835 = vmul.f32 %v1824, %v1833
        %v1836 = vmul.f32 %v1826, %v1834
        %v1837 = vpack.c.bf16 %v1836, %v1835
        %1838 = vrot.lane.b32.xlu0 %v1271, 48
        %v1839 = vpop.permute.xlu0 %1838
        %v1842 = vsel %vm1179, %v1837, 0
        %1844 = vmatprep.subr.bf16.mxu0 0
        %1845 = vmatpush1.bf16.msra.mxu0 0
        %1846 = vmatprep.subr.bf16.mxu0 0
        %1847 = vmatpush1.bf16.msra.mxu0 0
        %1848 = vmatprep.subr.bf16.mxu0 0
        %1849 = vmatpush1.bf16.msra.mxu0 0
        %1850 = vmatprep.subr.bf16.mxu0 0
        %1851 = vmatpush1.bf16.msra.mxu0 0
        %1852 = vmatprep.subr.bf16.mxu0 0
        %1853 = vmatpush1.bf16.msra.mxu0 0
        %1854 = vmatprep.subr.bf16.mxu0 0
        %1855 = vmatpush1.bf16.msra.mxu0 0
        %1856 = vmatprep.subr.bf16.mxu0 0
        %1857 = vmatpush1.bf16.msra.mxu0 0
        %1858 = vmatprep.subr.bf16.mxu0 0
        %1859 = vmatpush1.bf16.msra.mxu0 %v1839
        %1860 = vmatprep.subr.bf16.mxu0 0
        %1861 = vmatpush2.bf16.msra.mxu0 0
        %1862 = vmatprep.subr.bf16.mxu0 0
        %1863 = vmatpush2.bf16.msra.mxu0 0
        %1864 = vmatprep.subr.bf16.mxu0 0
        %1865 = vmatpush2.bf16.msra.mxu0 0
        %1866 = vmatprep.subr.bf16.mxu0 0
        %1867 = vmatpush2.bf16.msra.mxu0 0
        %1868 = vmatprep.subr.bf16.mxu0 0
        %1869 = vmatpush2.bf16.msra.mxu0 0
        %1870 = vmatprep.subr.bf16.mxu0 0
        %1871 = vmatpush2.bf16.msra.mxu0 0
        %1872 = vmatprep.subr.bf16.mxu0 0
        %1873 = vmatpush2.bf16.msra.mxu0 0
        %1874 = vmatprep.subr.bf16.mxu0 0
        %1875 = vmatpush2.bf16.msra.mxu0 0
        %1876 = vmatprep.mubr.bf16.mxu0 0
        %1877 = vmatmul.mubr.bf16.gmra.mxu0 %v1842
        %v1878 = vpop.f32.mrf.mxu0
        %v1879 = vadd.f32 0.0, %v1878
        %v1880 = vpop.f32.mrf.mxu0
        %v1881 = vpop.f32.mrf.mxu0
        %v1882 = vadd.f32 0.0, %v1881
        %v1883 = vpop.f32.mrf.mxu0
        %1884 = vdwg.mxu0
        %1885 = vrot.lane.b32.xlu0 %v1271, 112
        %v1886 = vpop.permute.xlu0 %1885
        %1887 = vrot.lane.b32.xlu0 %v1270, 80
        %v1888 = vpop.permute.xlu0 %1887
        %v1890 = vsel %vm383, %v1886, 0
        %v1893 = vsel %vm383, %v1888, 0
        %1895 = vmatprep.subr.bf16.mxu0 0
        %1896 = vmatpush1.bf16.xpose.msra.mxu0 0
        %1897 = vmatprep.subr.bf16.mxu0 0
        %1898 = vmatpush1.bf16.xpose.msra.mxu0 0
        %1899 = vmatprep.subr.bf16.mxu0 0
        %1900 = vmatpush1.bf16.xpose.msra.mxu0 0
        %1901 = vmatprep.subr.bf16.mxu0 0
        %1902 = vmatpush1.bf16.xpose.msra.mxu0 0
        %1903 = vmatprep.subr.bf16.mxu0 0
        %1904 = vmatpush1.bf16.xpose.msra.mxu0 0
        %1905 = vmatprep.subr.bf16.mxu0 0
        %1906 = vmatpush1.bf16.xpose.msra.mxu0 0
        %1907 = vmatprep.subr.bf16.mxu0 0
        %1908 = vmatpush1.bf16.xpose.msra.mxu0 0
        %1909 = vmatprep.subr.bf16.mxu0 0
        %1910 = vmatpush1.bf16.xpose.msra.mxu0 %v1893
        %1911 = vmatprep.subr.bf16.mxu0 0
        %1912 = vmatpush2.bf16.xpose.msra.mxu0 0
        %1913 = vmatprep.subr.bf16.mxu0 0
        %1914 = vmatpush2.bf16.xpose.msra.mxu0 0
        %1915 = vmatprep.subr.bf16.mxu0 0
        %1916 = vmatpush2.bf16.xpose.msra.mxu0 0
        %1917 = vmatprep.subr.bf16.mxu0 0
        %1918 = vmatpush2.bf16.xpose.msra.mxu0 0
        %1919 = vmatprep.subr.bf16.mxu0 0
        %1920 = vmatpush2.bf16.xpose.msra.mxu0 0
        %1921 = vmatprep.subr.bf16.mxu0 0
        %1922 = vmatpush2.bf16.xpose.msra.mxu0 0
        %1923 = vmatprep.subr.bf16.mxu0 0
        %1924 = vmatpush2.bf16.xpose.msra.mxu0 0
        %1925 = vmatprep.subr.bf16.mxu0 0
        %1926 = vmatpush2.bf16.xpose.msra.mxu0 0
        %1927 = vmatprep.mubr.bf16.mxu0 0
        %1928 = vmatmul.mubr.bf16.gmra.mxu0 %v1890
        %v1929 = vpop.f32.mrf.mxu0
        %v1930 = vadd.f32 0.0, %v1929
        %v1931 = vpop.f32.mrf.mxu0
        %v1932 = vpop.f32.mrf.mxu0
        %v1933 = vadd.f32 0.0, %v1932
        %v1934 = vpop.f32.mrf.mxu0
        %1935 = vdwg.mxu0
        %v1936 = vmul.f32 %v1930, 0.35355338
        %v1937 = vmul.f32 %v1933, 0.35355338
        %v1938 = vsel %vm1179, %v1936, -inf
        %1939 = vmax.xlane.f32.xlu0 %v1938
        %v1940 = vpop.xlane.xlu0 %1939
        %v1941 = vsel %vm1179, %v1937, -inf
        %1942 = vmax.xlane.f32.xlu0 %v1941
        %v1943 = vpop.xlane.xlu0 %1942
        %v1944 = vsub.f32 %v1936, %v1940
        %v1945 = vsub.f32 %v1937, %v1943
        %v1946 = vmul.f32 %v1944, 1.442695
        %v1947 = vpow.pop %v1946
        %v1948 = vmul.f32 %v1945, 1.442695
        %v1949 = vpow.pop %v1948
        %v1950 = vsel %vm1179, %v1947, 0.0
        %1951 = vadd.xlane.f32.xlu0 %v1950
        %v1952 = vpop.xlane.xlu0 %1951
        %v1953 = vsel %vm1179, %v1949, 0.0
        %1954 = vadd.xlane.f32.xlu0 %v1953
        %v1955 = vpop.xlane.xlu0 %1954
        %v1956 = vrcp.pop %v1952
        %v1957 = vrcp.pop %v1955
        %v1958 = vmul.f32 %v1947, %v1956
        %v1959 = vmul.f32 %v1949, %v1957
        %v1960 = vpack.c.bf16 %v1959, %v1958
        %1961 = vrot.lane.b32.xlu0 %v1270, 48
        %v1962 = vpop.permute.xlu0 %1961
        %v1965 = vsel %vm1179, %v1960, 0
        %1967 = vmatprep.subr.bf16.mxu0 0
        %1968 = vmatpush1.bf16.msra.mxu0 0
        %1969 = vmatprep.subr.bf16.mxu0 0
        %1970 = vmatpush1.bf16.msra.mxu0 0
        %1971 = vmatprep.subr.bf16.mxu0 0
        %1972 = vmatpush1.bf16.msra.mxu0 0
        %1973 = vmatprep.subr.bf16.mxu0 0
        %1974 = vmatpush1.bf16.msra.mxu0 0
        %1975 = vmatprep.subr.bf16.mxu0 0
        %1976 = vmatpush1.bf16.msra.mxu0 0
        %1977 = vmatprep.subr.bf16.mxu0 0
        %1978 = vmatpush1.bf16.msra.mxu0 0
        %1979 = vmatprep.subr.bf16.mxu0 0
        %1980 = vmatpush1.bf16.msra.mxu0 0
        %1981 = vmatprep.subr.bf16.mxu0 0
        %1982 = vmatpush1.bf16.msra.mxu0 %v1962
        %1983 = vmatprep.subr.bf16.mxu0 0
        %1984 = vmatpush2.bf16.msra.mxu0 0
        %1985 = vmatprep.subr.bf16.mxu0 0
        %1986 = vmatpush2.bf16.msra.mxu0 0
        %1987 = vmatprep.subr.bf16.mxu0 0
        %1988 = vmatpush2.bf16.msra.mxu0 0
        %1989 = vmatprep.subr.bf16.mxu0 0
        %1990 = vmatpush2.bf16.msra.mxu0 0
        %1991 = vmatprep.subr.bf16.mxu0 0
        %1992 = vmatpush2.bf16.msra.mxu0 0
        %1993 = vmatprep.subr.bf16.mxu0 0
        %1994 = vmatpush2.bf16.msra.mxu0 0
        %1995 = vmatprep.subr.bf16.mxu0 0
        %1996 = vmatpush2.bf16.msra.mxu0 0
        %1997 = vmatprep.subr.bf16.mxu0 0
        %1998 = vmatpush2.bf16.msra.mxu0 0
        %1999 = vmatprep.mubr.bf16.mxu0 0
        %2000 = vmatmul.mubr.bf16.gmra.mxu0 %v1965
        %v2001 = vpop.f32.mrf.mxu0
        %v2002 = vadd.f32 0.0, %v2001
        %v2003 = vpop.f32.mrf.mxu0
        %v2004 = vpop.f32.mrf.mxu0
        %v2005 = vadd.f32 0.0, %v2004
        %v2006 = vpop.f32.mrf.mxu0
        %2007 = vdwg.mxu0
        %2008 = vrot.lane.b32.xlu0 %v1270, 104
        %v2009 = vpop.permute.xlu0 %2008
        %2010 = vrot.lane.b32.xlu0 %v1271, 72
        %v2011 = vpop.permute.xlu0 %2010
        %v2013 = vsel %vm383, %v2009, 0
        %v2016 = vsel %vm383, %v2011, 0
        %2018 = vmatprep.subr.bf16.mxu0 0
        %2019 = vmatpush1.bf16.xpose.msra.mxu0 0
        %2020 = vmatprep.subr.bf16.mxu0 0
        %2021 = vmatpush1.bf16.xpose.msra.mxu0 0
        %2022 = vmatprep.subr.bf16.mxu0 0
        %2023 = vmatpush1.bf16.xpose.msra.mxu0 0
        %2024 = vmatprep.subr.bf16.mxu0 0
        %2025 = vmatpush1.bf16.xpose.msra.mxu0 0
        %2026 = vmatprep.subr.bf16.mxu0 0
        %2027 = vmatpush1.bf16.xpose.msra.mxu0 0
        %2028 = vmatprep.subr.bf16.mxu0 0
        %2029 = vmatpush1.bf16.xpose.msra.mxu0 0
        %2030 = vmatprep.subr.bf16.mxu0 0
        %2031 = vmatpush1.bf16.xpose.msra.mxu0 0
        %2032 = vmatprep.subr.bf16.mxu0 0
        %2033 = vmatpush1.bf16.xpose.msra.mxu0 %v2016
        %2034 = vmatprep.subr.bf16.mxu0 0
        %2035 = vmatpush2.bf16.xpose.msra.mxu0 0
        %2036 = vmatprep.subr.bf16.mxu0 0
        %2037 = vmatpush2.bf16.xpose.msra.mxu0 0
        %2038 = vmatprep.subr.bf16.mxu0 0
        %2039 = vmatpush2.bf16.xpose.msra.mxu0 0
        %2040 = vmatprep.subr.bf16.mxu0 0
        %2041 = vmatpush2.bf16.xpose.msra.mxu0 0
        %2042 = vmatprep.subr.bf16.mxu0 0
        %2043 = vmatpush2.bf16.xpose.msra.mxu0 0
        %2044 = vmatprep.subr.bf16.mxu0 0
        %2045 = vmatpush2.bf16.xpose.msra.mxu0 0
        %2046 = vmatprep.subr.bf16.mxu0 0
        %2047 = vmatpush2.bf16.xpose.msra.mxu0 0
        %2048 = vmatprep.subr.bf16.mxu0 0
        %2049 = vmatpush2.bf16.xpose.msra.mxu0 0
        %2050 = vmatprep.mubr.bf16.mxu0 0
        %2051 = vmatmul.mubr.bf16.gmra.mxu0 %v2013
        %v2052 = vpop.f32.mrf.mxu0
        %v2053 = vadd.f32 0.0, %v2052
        %v2054 = vpop.f32.mrf.mxu0
        %v2055 = vpop.f32.mrf.mxu0
        %v2056 = vadd.f32 0.0, %v2055
        %v2057 = vpop.f32.mrf.mxu0
        %2058 = vdwg.mxu0
        %v2059 = vmul.f32 %v2053, 0.35355338
        %v2060 = vmul.f32 %v2056, 0.35355338
        %v2061 = vsel %vm1179, %v2059, -inf
        %2062 = vmax.xlane.f32.xlu0 %v2061
        %v2063 = vpop.xlane.xlu0 %2062
        %v2064 = vsel %vm1179, %v2060, -inf
        %2065 = vmax.xlane.f32.xlu0 %v2064
        %v2066 = vpop.xlane.xlu0 %2065
        %v2067 = vsub.f32 %v2059, %v2063
        %v2068 = vsub.f32 %v2060, %v2066
        %v2069 = vmul.f32 %v2067, 1.442695
        %v2070 = vpow.pop %v2069
        %v2071 = vmul.f32 %v2068, 1.442695
        %v2072 = vpow.pop %v2071
        %v2073 = vsel %vm1179, %v2070, 0.0
        %2074 = vadd.xlane.f32.xlu0 %v2073
        %v2075 = vpop.xlane.xlu0 %2074
        %v2076 = vsel %vm1179, %v2072, 0.0
        %2077 = vadd.xlane.f32.xlu0 %v2076
        %v2078 = vpop.xlane.xlu0 %2077
        %v2079 = vrcp.pop %v2075
        %v2080 = vrcp.pop %v2078
        %v2081 = vmul.f32 %v2070, %v2079
        %v2082 = vmul.f32 %v2072, %v2080
        %v2083 = vpack.c.bf16 %v2082, %v2081
        %2084 = vrot.lane.b32.xlu0 %v1271, 40
        %v2085 = vpop.permute.xlu0 %2084
        %v2088 = vsel %vm1179, %v2083, 0
        %2090 = vmatprep.subr.bf16.mxu0 0
        %2091 = vmatpush1.bf16.msra.mxu0 0
        %2092 = vmatprep.subr.bf16.mxu0 0
        %2093 = vmatpush1.bf16.msra.mxu0 0
        %2094 = vmatprep.subr.bf16.mxu0 0
        %2095 = vmatpush1.bf16.msra.mxu0 0
        %2096 = vmatprep.subr.bf16.mxu0 0
        %2097 = vmatpush1.bf16.msra.mxu0 0
        %2098 = vmatprep.subr.bf16.mxu0 0
        %2099 = vmatpush1.bf16.msra.mxu0 0
        %2100 = vmatprep.subr.bf16.mxu0 0
        %2101 = vmatpush1.bf16.msra.mxu0 0
        %2102 = vmatprep.subr.bf16.mxu0 0
        %2103 = vmatpush1.bf16.msra.mxu0 0
        %2104 = vmatprep.subr.bf16.mxu0 0
        %2105 = vmatpush1.bf16.msra.mxu0 %v2085
        %2106 = vmatprep.subr.bf16.mxu0 0
        %2107 = vmatpush2.bf16.msra.mxu0 0
        %2108 = vmatprep.subr.bf16.mxu0 0
        %2109 = vmatpush2.bf16.msra.mxu0 0
        %2110 = vmatprep.subr.bf16.mxu0 0
        %2111 = vmatpush2.bf16.msra.mxu0 0
        %2112 = vmatprep.subr.bf16.mxu0 0
        %2113 = vmatpush2.bf16.msra.mxu0 0
        %2114 = vmatprep.subr.bf16.mxu0 0
        %2115 = vmatpush2.bf16.msra.mxu0 0
        %2116 = vmatprep.subr.bf16.mxu0 0
        %2117 = vmatpush2.bf16.msra.mxu0 0
        %2118 = vmatprep.subr.bf16.mxu0 0
        %2119 = vmatpush2.bf16.msra.mxu0 0
        %2120 = vmatprep.subr.bf16.mxu0 0
        %2121 = vmatpush2.bf16.msra.mxu0 0
        %2122 = vmatprep.mubr.bf16.mxu0 0
        %2123 = vmatmul.mubr.bf16.gmra.mxu0 %v2088
        %v2124 = vpop.f32.mrf.mxu0
        %v2125 = vadd.f32 0.0, %v2124
        %v2126 = vpop.f32.mrf.mxu0
        %v2127 = vpop.f32.mrf.mxu0
        %v2128 = vadd.f32 0.0, %v2127
        %v2129 = vpop.f32.mrf.mxu0
        %2130 = vdwg.mxu0
        %2131 = vrot.lane.b32.xlu0 %v1271, 104
        %v2132 = vpop.permute.xlu0 %2131
        %2133 = vrot.lane.b32.xlu0 %v1270, 72
        %v2134 = vpop.permute.xlu0 %2133
        %v2136 = vsel %vm383, %v2132, 0
        %v2139 = vsel %vm383, %v2134, 0
        %2141 = vmatprep.subr.bf16.mxu0 0
        %2142 = vmatpush1.bf16.xpose.msra.mxu0 0
        %2143 = vmatprep.subr.bf16.mxu0 0
        %2144 = vmatpush1.bf16.xpose.msra.mxu0 0
        %2145 = vmatprep.subr.bf16.mxu0 0
        %2146 = vmatpush1.bf16.xpose.msra.mxu0 0
        %2147 = vmatprep.subr.bf16.mxu0 0
        %2148 = vmatpush1.bf16.xpose.msra.mxu0 0
        %2149 = vmatprep.subr.bf16.mxu0 0
        %2150 = vmatpush1.bf16.xpose.msra.mxu0 0
        %2151 = vmatprep.subr.bf16.mxu0 0
        %2152 = vmatpush1.bf16.xpose.msra.mxu0 0
        %2153 = vmatprep.subr.bf16.mxu0 0
        %2154 = vmatpush1.bf16.xpose.msra.mxu0 0
        %2155 = vmatprep.subr.bf16.mxu0 0
        %2156 = vmatpush1.bf16.xpose.msra.mxu0 %v2139
        %2157 = vmatprep.subr.bf16.mxu0 0
        %2158 = vmatpush2.bf16.xpose.msra.mxu0 0
        %2159 = vmatprep.subr.bf16.mxu0 0
        %2160 = vmatpush2.bf16.xpose.msra.mxu0 0
        %2161 = vmatprep.subr.bf16.mxu0 0
        %2162 = vmatpush2.bf16.xpose.msra.mxu0 0
        %2163 = vmatprep.subr.bf16.mxu0 0
        %2164 = vmatpush2.bf16.xpose.msra.mxu0 0
        %2165 = vmatprep.subr.bf16.mxu0 0
        %2166 = vmatpush2.bf16.xpose.msra.mxu0 0
        %2167 = vmatprep.subr.bf16.mxu0 0
        %2168 = vmatpush2.bf16.xpose.msra.mxu0 0
        %2169 = vmatprep.subr.bf16.mxu0 0
        %2170 = vmatpush2.bf16.xpose.msra.mxu0 0
        %2171 = vmatprep.subr.bf16.mxu0 0
        %2172 = vmatpush2.bf16.xpose.msra.mxu0 0
        %2173 = vmatprep.mubr.bf16.mxu0 0
        %2174 = vmatmul.mubr.bf16.gmra.mxu0 %v2136
        %v2175 = vpop.f32.mrf.mxu0
        %v2176 = vadd.f32 0.0, %v2175
        %v2177 = vpop.f32.mrf.mxu0
        %v2178 = vpop.f32.mrf.mxu0
        %v2179 = vadd.f32 0.0, %v2178
        %v2180 = vpop.f32.mrf.mxu0
        %2181 = vdwg.mxu0
        %v2182 = vmul.f32 %v2176, 0.35355338
        %v2183 = vmul.f32 %v2179, 0.35355338
        %v2184 = vsel %vm1179, %v2182, -inf
        %2185 = vmax.xlane.f32.xlu0 %v2184
        %v2186 = vpop.xlane.xlu0 %2185
        %v2187 = vsel %vm1179, %v2183, -inf
        %2188 = vmax.xlane.f32.xlu0 %v2187
        %v2189 = vpop.xlane.xlu0 %2188
        %v2190 = vsub.f32 %v2182, %v2186
        %v2191 = vsub.f32 %v2183, %v2189
        %v2192 = vmul.f32 %v2190, 1.442695
        %v2193 = vpow.pop %v2192
        %v2194 = vmul.f32 %v2191, 1.442695
        %v2195 = vpow.pop %v2194
        %v2196 = vsel %vm1179, %v2193, 0.0
        %2197 = vadd.xlane.f32.xlu0 %v2196
        %v2198 = vpop.xlane.xlu0 %2197
        %v2199 = vsel %vm1179, %v2195, 0.0
        %2200 = vadd.xlane.f32.xlu0 %v2199
        %v2201 = vpop.xlane.xlu0 %2200
        %v2202 = vrcp.pop %v2198
        %v2203 = vrcp.pop %v2201
        %v2204 = vmul.f32 %v2193, %v2202
        %v2205 = vmul.f32 %v2195, %v2203
        %v2206 = vpack.c.bf16 %v2205, %v2204
        %2207 = vrot.lane.b32.xlu0 %v1270, 40
        %v2208 = vpop.permute.xlu0 %2207
        %v2211 = vsel %vm1179, %v2206, 0
        %2213 = vmatprep.subr.bf16.mxu0 0
        %2214 = vmatpush1.bf16.msra.mxu0 0
        %2215 = vmatprep.subr.bf16.mxu0 0
        %2216 = vmatpush1.bf16.msra.mxu0 0
        %2217 = vmatprep.subr.bf16.mxu0 0
        %2218 = vmatpush1.bf16.msra.mxu0 0
        %2219 = vmatprep.subr.bf16.mxu0 0
        %2220 = vmatpush1.bf16.msra.mxu0 0
        %2221 = vmatprep.subr.bf16.mxu0 0
        %2222 = vmatpush1.bf16.msra.mxu0 0
        %2223 = vmatprep.subr.bf16.mxu0 0
        %2224 = vmatpush1.bf16.msra.mxu0 0
        %2225 = vmatprep.subr.bf16.mxu0 0
        %2226 = vmatpush1.bf16.msra.mxu0 0
        %2227 = vmatprep.subr.bf16.mxu0 0
        %2228 = vmatpush1.bf16.msra.mxu0 %v2208
        %2229 = vmatprep.subr.bf16.mxu0 0
        %2230 = vmatpush2.bf16.msra.mxu0 0
        %2231 = vmatprep.subr.bf16.mxu0 0
        %2232 = vmatpush2.bf16.msra.mxu0 0
        %2233 = vmatprep.subr.bf16.mxu0 0
        %2234 = vmatpush2.bf16.msra.mxu0 0
        %2235 = vmatprep.subr.bf16.mxu0 0
        %2236 = vmatpush2.bf16.msra.mxu0 0
        %2237 = vmatprep.subr.bf16.mxu0 0
        %2238 = vmatpush2.bf16.msra.mxu0 0
        %2239 = vmatprep.subr.bf16.mxu0 0
        %2240 = vmatpush2.bf16.msra.mxu0 0
        %2241 = vmatprep.subr.bf16.mxu0 0
        %2242 = vmatpush2.bf16.msra.mxu0 0
        %2243 = vmatprep.subr.bf16.mxu0 0
        %2244 = vmatpush2.bf16.msra.mxu0 0
        %2245 = vmatprep.mubr.bf16.mxu0 0
        %2246 = vmatmul.mubr.bf16.gmra.mxu0 %v2211
        %v2247 = vpop.f32.mrf.mxu0
        %v2248 = vadd.f32 0.0, %v2247
        %v2249 = vpop.f32.mrf.mxu0
        %v2250 = vpop.f32.mrf.mxu0
        %v2251 = vadd.f32 0.0, %v2250
        %v2252 = vpop.f32.mrf.mxu0
        %2253 = vdwg.mxu0
        %2256 = vrot.lane.b32.xlu0 %v1633, 8
        %v2257 = vpop.permute.xlu0 %2256
        %2258 = vrot.lane.b32.xlu0 %v1636, 8
        %v2259 = vpop.permute.xlu0 %2258
        %2264 = vrot.lane.b32.xlu0 %v1879, 16
        %v2265 = vpop.permute.xlu0 %2264
        %2266 = vrot.lane.b32.xlu0 %v1882, 16
        %v2267 = vpop.permute.xlu0 %2266
        %2272 = vrot.lane.b32.xlu0 %v2125, 24
        %v2273 = vpop.permute.xlu0 %2272
        %2274 = vrot.lane.b32.xlu0 %v2128, 24
        %v2275 = vpop.permute.xlu0 %2274
        %v2278 = vsel %vm383, %v1388, %v2257
        %v2279 = vsel %vm383, %v1391, %v2259
        %v2280 = vsel %vm1179, %v2278, %v2265
        %v2281 = vsel %vm1179, %v2279, %v2267
        %v2282 = vsel %vm1184, %v2280, %v2273
        %v2283 = vsel %vm1184, %v2281, %v2275
        %2286 = vrot.lane.b32.xlu0 %v1756, 8
        %v2287 = vpop.permute.xlu0 %2286
        %2288 = vrot.lane.b32.xlu0 %v1759, 8
        %v2289 = vpop.permute.xlu0 %2288
        %2294 = vrot.lane.b32.xlu0 %v2002, 16
        %v2295 = vpop.permute.xlu0 %2294
        %2296 = vrot.lane.b32.xlu0 %v2005, 16
        %v2297 = vpop.permute.xlu0 %2296
        %2302 = vrot.lane.b32.xlu0 %v2248, 24
        %v2303 = vpop.permute.xlu0 %2302
        %2304 = vrot.lane.b32.xlu0 %v2251, 24
        %v2305 = vpop.permute.xlu0 %2304
        %v2308 = vsel %vm383, %v1510, %v2287
        %v2309 = vsel %vm383, %v1513, %v2289
        %v2310 = vsel %vm1179, %v2308, %v2295
        %v2311 = vsel %vm1179, %v2309, %v2297
        %v2312 = vsel %vm1184, %v2310, %v2303
        %v2313 = vsel %vm1184, %v2311, %v2305
        %2318 = vrot.lane.b32.xlu0 %v1185, 32
        %v2319 = vpop.permute.xlu0 %2318
        %2320 = vrot.lane.b32.xlu0 %v1186, 32
        %v2321 = vpop.permute.xlu0 %2320
        %2322 = vrot.lane.b32.xlu0 %v1187, 32
        %v2323 = vpop.permute.xlu0 %2322
        %2324 = vrot.lane.b32.xlu0 %v1188, 32
        %v2325 = vpop.permute.xlu0 %2324
        %v2330 = vsel %vm315, %v2282, %v2319
        %v2331 = vsel %vm315, %v2283, %v2321
        %v2332 = vsel %vm315, %v2312, %v2323
        %v2333 = vsel %vm315, %v2313, %v2325
        %v2334 = vld [vmem:[%s5] sm:$0xf]
        %v2335 = vld [vmem:[%s5 + $0x4] sm:$0xf]
        %v2336 = vld [vmem:[%s5 + $0x8] sm:$0xf]
        %v2337 = vld [vmem:[%s5 + $0xc] sm:$0xf]
        %v2338 = vld [vmem:[%s5 + $0x10] sm:$0xf]
        %v2339 = vld [vmem:[%s5 + $0x14] sm:$0xf]
        %v2340 = vld [vmem:[%s5 + $0x18] sm:$0xf]
        %v2341 = vld [vmem:[%s5 + $0x1c] sm:$0xf]
        %v2342 = vpack.c.bf16 %v2331, %v2330
        %v2343 = vpack.c.bf16 %v2333, %v2332
        %v2344 = vld [vmem:[%s6] sm:$0x1]
        %v2346 = vlaneseq
        %v2347 = vshrl.u32 %v2346, 7
        %v2348 = vsub.s32 0, %v2347
        %v2349 = vrot.slane %v2344, %v2348
        %v2359 = vunpack.c.l.b16 %v2334
        %v2360 = vunpack.c.l.b16 %v2335
        %v2361 = vunpack.c.l.b16 %v2336
        %v2362 = vunpack.c.l.b16 %v2337
        %v2363 = vunpack.c.l.b16 %v2338
        %v2364 = vunpack.c.l.b16 %v2339
        %v2365 = vunpack.c.l.b16 %v2340
        %v2366 = vunpack.c.l.b16 %v2341
        %v2367 = vpack.c.b16 %v2360, %v2359
        %v2368 = vpack.c.b16 %v2362, %v2361
        %v2369 = vpack.c.b16 %v2364, %v2363
        %v2370 = vpack.c.b16 %v2366, %v2365
        %vm2375 = vcmask 523264
        %v2377 = vsel %vm2375, %v2342, 0
        %v2380 = vsel %vm2375, %v2343, 0
        %2382 = vmatprep.subr.bf16.mxu0 0
        %2383 = vmatpush1.bf16.msra.mxu0 0
        %2384 = vmatprep.subr.bf16.mxu0 0
        %2385 = vmatpush1.bf16.msra.mxu0 0
        %2386 = vmatprep.subr.bf16.mxu0 0
        %2387 = vmatpush1.bf16.msra.mxu0 0
        %2388 = vmatprep.subr.bf16.mxu0 0
        %2389 = vmatpush1.bf16.msra.mxu0 0
        %2390 = vmatprep.subr.bf16.mxu0 0
        %2391 = vmatpush1.bf16.msra.mxu0 %v2370
        %2392 = vmatprep.subr.bf16.mxu0 0
        %2393 = vmatpush1.bf16.msra.mxu0 %v2369
        %2394 = vmatprep.subr.bf16.mxu0 0
        %2395 = vmatpush1.bf16.msra.mxu0 %v2368
        %2396 = vmatprep.subr.bf16.mxu0 0
        %2397 = vmatpush1.bf16.msra.mxu0 %v2367
        %2398 = vmatprep.subr.bf16.mxu0 0
        %2399 = vmatpush2.bf16.msra.mxu0 0
        %2400 = vmatprep.subr.bf16.mxu0 0
        %2401 = vmatpush2.bf16.msra.mxu0 0
        %2402 = vmatprep.subr.bf16.mxu0 0
        %2403 = vmatpush2.bf16.msra.mxu0 0
        %2404 = vmatprep.subr.bf16.mxu0 0
        %2405 = vmatpush2.bf16.msra.mxu0 0
        %2406 = vmatprep.subr.bf16.mxu0 0
        %2407 = vmatpush2.bf16.msra.mxu0 0
        %2408 = vmatprep.subr.bf16.mxu0 0
        %2409 = vmatpush2.bf16.msra.mxu0 0
        %2410 = vmatprep.subr.bf16.mxu0 0
        %2411 = vmatpush2.bf16.msra.mxu0 0
        %2412 = vmatprep.subr.bf16.mxu0 0
        %2413 = vmatpush2.bf16.msra.mxu0 0
        %2414 = vmatprep.mubr.bf16.mxu0 0
        %2415 = vmatmul.mubr.bf16.gmra.mxu0 %v2377
        %v2416 = vpop.f32.mrf.mxu0
        %v2417 = vadd.f32 %v2349, %v2416
        %v2418 = vpop.f32.mrf.mxu0
        %v2419 = vpop.f32.mrf.mxu0
        %v2420 = vadd.f32 %v2349, %v2419
        %v2421 = vpop.f32.mrf.mxu0
        %2422 = vmatprep.mubr.bf16.mxu0 0
        %2423 = vmatmul.mubr.bf16.gmra.mxu0 %v2380
        %v2424 = vpop.f32.mrf.mxu0
        %v2425 = vadd.f32 %v2349, %v2424
        %v2426 = vpop.f32.mrf.mxu0
        %v2427 = vpop.f32.mrf.mxu0
        %v2428 = vadd.f32 %v2349, %v2427
        %v2429 = vpop.f32.mrf.mxu0
        %2430 = vdwg.mxu0
        %2431 = vst.msk [vmem:[%s286] sm:$0xff] %vm315, %v2417
        %2432 = vst.msk [vmem:[%s286 + $0x8] sm:$0xff] %vm315, %v2420
        %2433 = vst.msk [vmem:[%s286 + $0x10] sm:$0xff] %vm315, %v2425
        %2434 = vst.msk [vmem:[%s286 + $0x18] sm:$0xff] %vm315, %v2428
        %s2435 = sand.u32 %s182, 1
        %s2436 = scalar_lea.sflag [#allocation4], %s2435
        %s2437 = sand.u32 %s182, 1
        %s2438 = smul.addr %s2437, 32
        %s2439 = scalar_lea.vmem [#allocation5], %s2438
        // Predicated region
        $region53: #{window_attention_forward.1} parent=47 // pred_check
          %p2440 = pneg %p192
        $region54: #{window_attention_forward.1} parent=47 // pred_check_branch
          %2442 = sbr.rel (%p2440) target = $region56
        $region55: #{window_attention_forward.1} parent=47 // pred_region
          %s2444 = ssub.s32 512, 512
          %2445 = vsyncadd %s2436, %s2444
          %s2446 = smul.addr %s22, 4
          %s2447 = smul.addr %s2446, 128
          %s2448 = scalar_lea.hbm %s7, %s2447
          %s2449 = sshll.u32 %s2439, 4
          %s2450 = int_to_ptr.vmem [resolvable:$true] %s2449
          %2455 = dma.vmem_to_hbm [thread:$0]  %s2450, 512, %s2448, %s2436, 128, 128, 8
        $region56: #{window_attention_forward.1} parent=47 // pred_fallthru
          _
      $region48: #{window_attention_forward.1} parent=5 // pred_fallthru
        _
      %p2456 = scmp.le.s32.totalorder 2, %s17
      // Predicated region
      $region57: #{window_attention_forward.1} parent=5 // pred_check
        %p2457 = pneg %p2456
      $region58: #{window_attention_forward.1} parent=5 // pred_check_branch
        %2459 = sbr.rel (%p2457) target = $region60
      $region59: #{window_attention_forward.1} parent=5 // pred_region
        %s2460 = ssub.s32 %s17, 2
        // Predicated region
        $region61: #{window_attention_forward.1} parent=59 // pred_check
          %p2461 = pneg %p198
        $region62: #{window_attention_forward.1} parent=59 // pred_check_branch
          %2463 = sbr.rel (%p2461) target = $region64
        $region63: #{window_attention_forward.1} parent=59 // pred_region
          %s2464 = sand.u32 %s183, 1
          %s2465 = scalar_lea.sflag [#allocation4], %s2464
          %s2466 = sand.u32 %s183, 1
          %s2467 = smul.addr %s2466, 32
          %s2468 = scalar_lea.vmem [#allocation5], %s2467
          %2469 = dma.done %s2465, 512
        $region64: #{window_attention_forward.1} parent=59 // pred_fallthru
          _
      $region60: #{window_attention_forward.1} parent=5 // pred_fallthru
        _
    $region6: #{window_attention_forward.1} parent=1 // loop_footer
      %s21 = sadd.s32 1, %s17
    $region7: #{window_attention_forward.1} parent=1 // loop_footer_branch
      %16 = sbr.rel target = $region3
    $region8: #{window_attention_forward.1} parent=1 // loop_exit
      _
    %2470 = vsyncpa [#allocation3], 1
    %s2471 = scalar_lea.sflag [#allocation3], 1
    %2472 = vsyncpa %s2471, 1
    %2473 = vsyncpa [#allocation4], 1
    %s2474 = scalar_lea.sflag [#allocation4], 1
    %2475 = vsyncpa %s2474, 1

</llo_original>
